<compile_context>
chip_gen: v6e
topology: v6e:2x2x1
jax: 0.10.0
libtpu: 0.0.40
codegen_flags: <defaults>
</compile_context>

<pallas_src>
import jax
import jax.numpy as jnp
from jax.experimental import pallas as pl
from jax.experimental.pallas import tpu as pltpu


def _round_up(x, m):
    return (x + m - 1) // m * m


def _default_vmem_limit():
    # ~3/4 of physical VMEM: ~96 MiB on v5e/v6e (128 MiB), 48 MiB on v7x (64 MiB).
    try:
        cap = int(pltpu.get_tpu_info().vmem_capacity_bytes)
        return min((cap * 3) // 4, 100 * 1024 * 1024)
    except Exception:
        return 48 * 1024 * 1024


def recurrent_lm_forward(tokens, params, *, compute_dtype=jnp.bfloat16,
                         block_t=16, block_b=128, block_rows=512, block_v=512):
    """tokens: (B, T) int32 -> (logits (B, T, V) f32, hidden_state (1, B, H) f32)."""
    emb = params["embedding"]          # (V, E)
    w_ih = params["w_ih"]              # (3H, E) torch layout (r, z, n)
    w_hh = params["w_hh"]              # (3H, H)
    b_ih = params["b_ih"]              # (3H,)
    b_hh = params["b_hh"]              # (3H,)
    gamma = params["ln_w"]             # (H,)
    beta = params["ln_b"]              # (H,)
    w_c = params["cls_w"]              # (V, H) torch layout
    b_c = params["cls_b"]              # (V,)

    B, T = tokens.shape
    V, E = emb.shape
    H = w_hh.shape[1]
    vmem_limit = _default_vmem_limit()

    # ---- padding / tiling choices -------------------------------------------------
    Bp = _round_up(B, 16)                       # sublane granule (covers bf16 packing)
    Bt = min(block_b, Bp)                       # block_b is a multiple of 16
    Bp = _round_up(Bp, Bt)
    # prefer >= 2 batch tiles so the "parallel" axis feeds both TensorCores (v7x).
    if Bp == Bt and Bp >= 32 and (Bp // 2) % 16 == 0:
        Bt = Bp // 2
    n_b = Bp // Bt

    TT = min(block_t, T)                        # timesteps per grid step
    T_pad = _round_up(T, TT)
    n_tb = T_pad // TT

    # ---- glue: embedding gather (XLA) + time-major layout ---------------------------
    # TODO(synk): fold the embedding gather into the GRU kernel via scalar-prefetch of
    # the token ids (worthwhile for large E / long T); kept as plain XLA indexing here.
    tok_p = jnp.pad(tokens.astype(jnp.int32), ((0, Bp - B), (0, T_pad - T)))
    x_tm = jnp.transpose(jnp.take(emb, tok_p, axis=0), (1, 0, 2))    # (T_pad, Bp, E)
    x_tm = x_tm.astype(compute_dtype)

    # ---- fused gate weights (E,3H)/(H,3H), folded biases ----------------------------
    w_i3 = w_ih.T.astype(compute_dtype)                              # (E, 3H): r|z|n
    w_h3 = w_hh.T.astype(compute_dtype)                              # (H, 3H): r|z|n
    b_i3 = jnp.concatenate(
        [b_ih[0:H] + b_hh[0:H], b_ih[H:2 * H] + b_hh[H:2 * H], b_ih[2 * H:]]
    ).reshape(1, 3 * H).astype(jnp.float32)
    b_h3 = jnp.concatenate(
        [jnp.zeros((2 * H,), jnp.float32), b_hh[2 * H:].astype(jnp.float32)]
    ).reshape(1, 3 * H)
    g2 = gamma.reshape(1, H).astype(jnp.float32)
    be2 = beta.reshape(1, H).astype(jnp.float32)

    # ===================== kernel 1: GRU recurrence + LayerNorm ======================
    def gru_kernel(x_ref, wi_ref, wh_ref, bi_ref, bh_ref, g_ref, be_ref,
                   hn_ref, hfin_ref, h_scr, gi_scr):
        tb = pl.program_id(1)

        @pl.when(tb == 0)
        def _():
            h_scr[...] = jnp.zeros_like(h_scr)

        # ONE fused input->hidden projection for all TT timesteps of this block.
        x2 = x_ref[...].reshape(TT * Bt, E)
        gi = jnp.dot(x2, wi_ref[...], preferred_element_type=jnp.float32) + bi_ref[...]
        gi_scr[...] = gi.reshape(TT, Bt, 3 * H).astype(gi_scr.dtype)

        # Hoist (1,·)->(Bt,·) broadcasts out of the unrolled recurrence (no CSE in JAX).
        bh_b = jnp.broadcast_to(bh_ref[...], (Bt, 3 * H)).astype(jnp.float32)
        g_b = jnp.broadcast_to(g_ref[...], (Bt, H)).astype(jnp.float32)
        be_b = jnp.broadcast_to(be_ref[...], (Bt, H)).astype(jnp.float32)

        for i in range(TT):                                    # static unroll
            h_prev = h_scr[...]                                # (Bt, H) f32
            hc = h_prev.astype(wh_ref.dtype)
            # ONE fused recurrent matmul, sliced at lane offsets 0 / H / 2H.
            gh = jnp.dot(hc, wh_ref[...], preferred_element_type=jnp.float32) + bh_b
            gi_t = gi_scr[i].astype(jnp.float32)               # (Bt, 3H)
            r = jax.nn.sigmoid(gi_t[:, 0:H] + gh[:, 0:H])
            z = jax.nn.sigmoid(gi_t[:, H:2 * H] + gh[:, H:2 * H])
            n = jnp.tanh(gi_t[:, 2 * H:3 * H] + r * gh[:, 2 * H:3 * H])
            h_t = (1.0 - z) * n + z * h_prev
            if T_pad == T:
                h_new = h_t
            else:                                              # mask padded timesteps
                valid = ((tb * TT + i) < T).astype(jnp.float32)
                h_new = valid * h_t + (1.0 - valid) * h_prev
            h_scr[...] = h_new

            # LayerNorm over the hidden dim (f32, eps matches torch default 1e-5).
            mean = jnp.mean(h_t, axis=-1, keepdims=True)
            var = jnp.mean((h_t - mean) ** 2, axis=-1, keepdims=True)
            hn = (h_t - mean) * jax.lax.rsqrt(var + 1e-5) * g_b + be_b
            hn_ref[:, i, :] = hn.astype(hn_ref.dtype)          # (B, T, H) order directly

        @pl.when(tb == pl.num_programs(1) - 1)
        def _():
            hfin_ref[...] = h_scr[...]

    const = lambda b, t: (0, 0)
    wspec = lambda shp: pl.BlockSpec(shp, const, pipeline_mode=pl.Buffered(1))

    hn_bth, h_final = pl.pallas_call(
        gru_kernel,
        out_shape=(jax.ShapeDtypeStruct((Bp, T_pad, H), compute_dtype),
                   jax.ShapeDtypeStruct((Bp, H), jnp.float32)),
        grid_spec=pltpu.PrefetchScalarGridSpec(
            num_scalar_prefetch=0,
            grid=(n_b, n_tb),
            in_specs=[
                pl.BlockSpec((TT, Bt, E), lambda b, t: (t, b, 0)),   # x (time-major)
                wspec((E, 3 * H)),                                   # fused W_i
                wspec((H, 3 * H)),                                   # fused W_h
                wspec((1, 3 * H)), wspec((1, 3 * H)),                # fused biases
                wspec((1, H)), wspec((1, H)),                        # gamma, beta
            ],
            out_specs=[
                pl.BlockSpec((Bt, TT, H), lambda b, t: (b, t, 0)),   # LN(h_t), (B,T,H)
                pl.BlockSpec((Bt, H), lambda b, t: (b, 0)),          # final hidden
            ],
            scratch_shapes=[pltpu.VMEM((Bt, H), jnp.float32),
                            pltpu.VMEM((TT, Bt, 3 * H), compute_dtype)]),
        compiler_params=pltpu.CompilerParams(
            dimension_semantics=("parallel", "arbitrary"),
            vmem_limit_bytes=vmem_limit),
    )(x_tm, w_i3, w_h3, b_i3, b_h3, g2, be2)

    hidden_state = h_final[:B][None, :, :]                           # (1, B, H) f32

    # =============== kernel 2: batched (rows, H) @ (H, V) classifier =================
    rows = B * T
    TM = min(block_rows, _round_up(rows, 8))
    if rows % TM != 0:
        for cand in range(TM, 7, -8):        # prefer a tile that divides rows exactly
            if rows % cand == 0:
                TM = cand
                break
    rows_pad = _round_up(rows, TM)

    Vp = _round_up(V, 128)
    if Vp >= block_v:
        TV = block_v
        Vp = _round_up(V, TV)
    else:
        TV = Vp

    # (Bp, T_pad, H) -> (B*T, H): slice only the small state tensor, no big transpose.
    hn_bt = hn_bth[:B, :T].reshape(rows, H)
    if rows_pad != rows:
        hn_bt = jnp.pad(hn_bt, ((0, rows_pad - rows), (0, 0)))
    hn_bt = hn_bt.astype(compute_dtype)

    # TODO(synk): optional fp8 (per-column scaled) classifier weight on v7x.
    w_c_p = jnp.pad(w_c.T, ((0, 0), (0, Vp - V))).astype(compute_dtype)   # (H, Vp)
    b_c_p = jnp.pad(b_c, (0, Vp - V)).reshape(1, Vp).astype(jnp.float32)

    def cls_kernel(x_ref, w_ref, b_ref, o_ref):
        o_ref[...] = (jnp.dot(x_ref[...], w_ref[...],
                              preferred_element_type=jnp.float32)
                      + b_ref[...]).astype(o_ref.dtype)

    n_r, n_v = rows_pad // TM, Vp // TV
    # Choose grid order so the smaller total of re-streamed bytes wins:
    #   rows outer  -> W re-fetched n_r times;  vocab outer -> X re-fetched n_v times.
    if n_r * Vp <= n_v * rows_pad:
        grid = (n_r, n_v)
        in_specs = [pl.BlockSpec((TM, H), lambda r, v: (r, 0)),
                    pl.BlockSpec((H, TV), lambda r, v: (0, v)),
                    pl.BlockSpec((1, TV), lambda r, v: (0, v))]
        out_spec = pl.BlockSpec((TM, TV), lambda r, v: (r, v))
    else:
        grid = (n_v, n_r)
        in_specs = [pl.BlockSpec((TM, H), lambda v, r: (r, 0)),
                    pl.BlockSpec((H, TV), lambda v, r: (0, v)),
                    pl.BlockSpec((1, TV), lambda v, r: (0, v))]
        out_spec = pl.BlockSpec((TM, TV), lambda v, r: (r, v))

    logits_flat = pl.pallas_call(
        cls_kernel,
        out_shape=jax.ShapeDtypeStruct((rows_pad, Vp), jnp.float32),
        grid_spec=pltpu.PrefetchScalarGridSpec(
            num_scalar_prefetch=0, grid=grid,
            in_specs=in_specs, out_specs=out_spec),
        compiler_params=pltpu.CompilerParams(
            dimension_semantics=("parallel", "parallel"),
            vmem_limit_bytes=vmem_limit),
    )(hn_bt, w_c_p, b_c_p)

    # Slice away lane padding only when V is not a multiple of 128 (module semantics
    # require exactly (B, T, V)); rows_pad == rows whenever TM divides B*T.
    logits = logits_flat[:rows, :V].reshape(B, T, V)
    return logits, hidden_state


def reference_forward(tokens, params):
    """Pure-JAX f32 reference (mirrors torch semantics)."""
    emb = params["embedding"]
    w_ih, w_hh = params["w_ih"], params["w_hh"]
    b_ih, b_hh = params["b_ih"], params["b_hh"]
    gamma, beta = params["ln_w"], params["ln_b"]
    w_c, b_c = params["cls_w"], params["cls_b"]
    H = w_hh.shape[1]

    x = jnp.take(emb, tokens, axis=0)              # (B, T, E)
    B = x.shape[0]

    def step(h, x_t):
        gi = x_t @ w_ih.T + b_ih
        gh = h @ w_hh.T + b_hh
        r = jax.nn.sigmoid(gi[:, :H] + gh[:, :H])
        z = jax.nn.sigmoid(gi[:, H:2 * H] + gh[:, H:2 * H])
        n = jnp.tanh(gi[:, 2 * H:] + r * gh[:, 2 * H:])
        h_new = (1.0 - z) * n + z * h
        return h_new, h_new

    h0 = jnp.zeros((B, H), jnp.float32)
    h_last, hs = jax.lax.scan(step, h0, jnp.transpose(x, (1, 0, 2)))
    hs = jnp.transpose(hs, (1, 0, 2))              # (B, T, H)
    mean = jnp.mean(hs, axis=-1, keepdims=True)
    var = jnp.mean((hs - mean) ** 2, axis=-1, keepdims=True)
    hs_n = (hs - mean) / jnp.sqrt(var + 1e-5) * gamma + beta
    logits = hs_n @ w_c.T + b_c
    return logits, h_last[None]


def init_params(key, vocab_size, embed_dim, hidden_dim):
    ks = jax.random.split(key, 6)
    s = 1.0 / jnp.sqrt(hidden_dim)
    return {
        "embedding": jax.random.normal(ks[0], (vocab_size, embed_dim), jnp.float32),
        "w_ih": jax.random.uniform(ks[1], (3 * hidden_dim, embed_dim), jnp.float32, -s, s),
        "w_hh": jax.random.uniform(ks[2], (3 * hidden_dim, hidden_dim), jnp.float32, -s, s),
        "b_ih": jax.random.uniform(ks[3], (3 * hidden_dim,), jnp.float32, -s, s),
        "b_hh": jax.random.uniform(ks[4], (3 * hidden_dim,), jnp.float32, -s, s),
        "ln_w": jnp.ones((hidden_dim,), jnp.float32),
        "ln_b": jnp.zeros((hidden_dim,), jnp.float32),
        "cls_w": jax.random.uniform(ks[5], (vocab_size, hidden_dim), jnp.float32, -s, s),
        "cls_b": jnp.zeros((vocab_size,), jnp.float32),
    }


if __name__ == "__main__":
    VOCAB, EMBED, HIDDEN = 32, 16, 32
    B, T = 2, 8

    key = jax.random.PRNGKey(0)
    k_par, k_tok = jax.random.split(key)
    params = init_params(k_par, VOCAB, EMBED, HIDDEN)
    tokens = jax.random.randint(k_tok, (B, T), 0, VOCAB, dtype=jnp.int32)

    ref_logits, ref_hidden = reference_forward(tokens, params)

    # f32 MXU-operand path: tight correctness check against the pure-JAX reference.
    fwd_f32 = jax.jit(lambda t, p: recurrent_lm_forward(t, p, compute_dtype=jnp.float32))
    logits, hidden = fwd_f32(tokens, params)
    jax.block_until_ready((logits, hidden))
    assert logits.shape == (B, T, VOCAB)
    assert hidden.shape == (1, B, HIDDEN)
    assert jnp.max(jnp.abs(logits - ref_logits)) < 1e-3
    assert jnp.max(jnp.abs(hidden - ref_hidden)) < 1e-3

    # bf16 MXU-operand path (f32 accumulation / gate math): looser tolerance.
    fwd_bf16 = jax.jit(lambda t, p: recurrent_lm_forward(t, p, compute_dtype=jnp.bfloat16))
    logits_bf, hidden_bf = fwd_bf16(tokens, params)
    jax.block_until_ready((logits_bf, hidden_bf))
    assert logits_bf.shape == (B, T, VOCAB)
    assert bool(jnp.all(jnp.isfinite(logits_bf)))
    assert jnp.max(jnp.abs(logits_bf - ref_logits)) < 0.5
    assert jnp.max(jnp.abs(hidden_bf - ref_hidden)) < 0.25

    print("KERNEL_OK")
</pallas_src>

<mosaic_0001>
module attributes {stable_mosaic.version = 11 : i64} {
  func.func @gru_kernel(%arg0: i32, %arg1: i32, %arg2: memref<8x16x16xf32, #tpu.memory_space<vmem>>, %arg3: memref<16x96xf32, #tpu.memory_space<vmem>>, %arg4: memref<32x96xf32, #tpu.memory_space<vmem>>, %arg5: memref<1x96xf32, #tpu.memory_space<vmem>>, %arg6: memref<1x96xf32, #tpu.memory_space<vmem>>, %arg7: memref<1x32xf32, #tpu.memory_space<vmem>>, %arg8: memref<1x32xf32, #tpu.memory_space<vmem>>, %arg9: memref<16x8x32xf32, #tpu.memory_space<vmem>>, %arg10: memref<16x32xf32, #tpu.memory_space<vmem>>, %arg11: memref<16x32xf32, #tpu.memory_space<vmem>>, %arg12: memref<8x16x96xf32, #tpu.memory_space<vmem>>) attributes {dimension_semantics = [#tpu.dimension_semantics<parallel>, #tpu.dimension_semantics<arbitrary>], iteration_bounds = array<i64: 1, 1>, scalar_prefetch = 0 : i64, scratch_operands = 2 : i64, tpu.core_type = #tpu.core_type<tc>, window_params = [{transform_indices = @transform_0, window_bounds = array<i64: 8, 16, 16>}, {pipeline_mode = #tpu.pipeline_mode<synchronous>, transform_indices = @transform_1, window_bounds = array<i64: 16, 96>}, {pipeline_mode = #tpu.pipeline_mode<synchronous>, transform_indices = @transform_2, window_bounds = array<i64: 32, 96>}, {pipeline_mode = #tpu.pipeline_mode<synchronous>, transform_indices = @transform_3, window_bounds = array<i64: 1, 96>}, {pipeline_mode = #tpu.pipeline_mode<synchronous>, transform_indices = @transform_4, window_bounds = array<i64: 1, 96>}, {pipeline_mode = #tpu.pipeline_mode<synchronous>, transform_indices = @transform_5, window_bounds = array<i64: 1, 32>}, {pipeline_mode = #tpu.pipeline_mode<synchronous>, transform_indices = @transform_6, window_bounds = array<i64: 1, 32>}, {transform_indices = @transform_7, window_bounds = array<i64: 16, 8, 32>}, {transform_indices = @transform_8, window_bounds = array<i64: 16, 32>}]} {
    %c0_i32 = arith.constant 0 : i32
    %0 = arith.cmpi eq, %arg1, %c0_i32 : i32
    %1 = arith.extui %0 : i1 to i32
    %c0_i32_0 = arith.constant 0 : i32
    %2 = arith.cmpi ne, %1, %c0_i32_0 : i32
    scf.if %2 {
      %cst_179 = arith.constant 0.000000e+00 : f32
      %472 = vector.broadcast %cst_179 : f32 to vector<16x32xf32>
      %c0_180 = arith.constant 0 : index
      %c0_181 = arith.constant 0 : index
      %473 = vector.load %arg11[%c0_180, %c0_181] : memref<16x32xf32, #tpu.memory_space<vmem>>, vector<16x32xf32>
      tpu.vector_store %arg11[%c0_180, %c0_181], %472 {strides = array<i32>} : memref<16x32xf32, #tpu.memory_space<vmem>>, vector<16x32xf32>,
    } else {
    }
    %c0 = arith.constant 0 : index
    %c0_1 = arith.constant 0 : index
    %c0_2 = arith.constant 0 : index
    %3 = vector.load %arg2[%c0, %c0_1, %c0_2] : memref<8x16x16xf32, #tpu.memory_space<vmem>>, vector<8x16x16xf32>
    %4 = vector.shape_cast %3 : vector<8x16x16xf32> to vector<128x16xf32>
    %c0_3 = arith.constant 0 : index
    %c0_4 = arith.constant 0 : index
    %5 = vector.load %arg3[%c0_3, %c0_4] : memref<16x96xf32, #tpu.memory_space<vmem>>, vector<16x96xf32>
    %cst = arith.constant dense<0.000000e+00> : vector<128x96xf32>
    %6 = tpu.matmul %4, %5, %cst {dimension_numbers = #tpu.dot_dimension_numbers<[1], [0], [0], [1], [0, 0, 1, 1], [], []>} : vector<128x16xf32>, vector<16x96xf32>, vector<128x96xf32> -> vector<128x96xf32>
    %c0_5 = arith.constant 0 : index
    %c0_6 = arith.constant 0 : index
    %7 = vector.load %arg5[%c0_5, %c0_6] : memref<1x96xf32, #tpu.memory_space<vmem>>, vector<1x96xf32>
    %8 = vector.broadcast %7 : vector<1x96xf32> to vector<128x96xf32>
    %9 = arith.addf %6, %8 : vector<128x96xf32>
    %10 = vector.shape_cast %9 : vector<128x96xf32> to vector<8x16x96xf32>
    %c0_7 = arith.constant 0 : index
    %c0_8 = arith.constant 0 : index
    %c0_9 = arith.constant 0 : index
    %11 = vector.load %arg12[%c0_7, %c0_8, %c0_9] : memref<8x16x96xf32, #tpu.memory_space<vmem>>, vector<8x16x96xf32>
    tpu.vector_store %arg12[%c0_7, %c0_8, %c0_9], %10 {strides = array<i32>} : memref<8x16x96xf32, #tpu.memory_space<vmem>>, vector<8x16x96xf32>,
    %c0_10 = arith.constant 0 : index
    %c0_11 = arith.constant 0 : index
    %12 = vector.load %arg6[%c0_10, %c0_11] : memref<1x96xf32, #tpu.memory_space<vmem>>, vector<1x96xf32>
    %13 = vector.shape_cast %12 : vector<1x96xf32> to vector<1x96xf32>
    %14 = vector.broadcast %13 : vector<1x96xf32> to vector<16x96xf32>
    %c0_12 = arith.constant 0 : index
    %c0_13 = arith.constant 0 : index
    %15 = vector.load %arg7[%c0_12, %c0_13] : memref<1x32xf32, #tpu.memory_space<vmem>>, vector<1x32xf32>
    %16 = vector.shape_cast %15 : vector<1x32xf32> to vector<1x32xf32>
    %17 = vector.broadcast %16 : vector<1x32xf32> to vector<16x32xf32>
    %c0_14 = arith.constant 0 : index
    %c0_15 = arith.constant 0 : index
    %18 = vector.load %arg8[%c0_14, %c0_15] : memref<1x32xf32, #tpu.memory_space<vmem>>, vector<1x32xf32>
    %19 = vector.shape_cast %18 : vector<1x32xf32> to vector<1x32xf32>
    %20 = vector.broadcast %19 : vector<1x32xf32> to vector<16x32xf32>
    %c0_16 = arith.constant 0 : index
    %c0_17 = arith.constant 0 : index
    %21 = vector.load %arg11[%c0_16, %c0_17] : memref<16x32xf32, #tpu.memory_space<vmem>>, vector<16x32xf32>
    %c0_18 = arith.constant 0 : index
    %c0_19 = arith.constant 0 : index
    %22 = vector.load %arg4[%c0_18, %c0_19] : memref<32x96xf32, #tpu.memory_space<vmem>>, vector<32x96xf32>
    %cst_20 = arith.constant dense<0.000000e+00> : vector<16x96xf32>
    %23 = tpu.matmul %21, %22, %cst_20 {dimension_numbers = #tpu.dot_dimension_numbers<[1], [0], [0], [1], [0, 0, 1, 1], [], []>} : vector<16x32xf32>, vector<32x96xf32>, vector<16x96xf32> -> vector<16x96xf32>
    %24 = arith.addf %23, %14 : vector<16x96xf32>
    %c0_21 = arith.constant 0 : index
    %c0_22 = arith.constant 0 : index
    %c0_23 = arith.constant 0 : index
    %25 = vector.load %arg12[%c0_21, %c0_22, %c0_23] : memref<8x16x96xf32, #tpu.memory_space<vmem>>, vector<1x16x96xf32>
    %26 = vector.shape_cast %25 : vector<1x16x96xf32> to vector<16x96xf32>
    %27 = vector.extract_strided_slice %26 {offsets = [0, 0], sizes = [16, 32], strides = [1, 1]} : vector<16x96xf32> to vector<16x32xf32>
    %28 = vector.extract_strided_slice %24 {offsets = [0, 0], sizes = [16, 32], strides = [1, 1]} : vector<16x96xf32> to vector<16x32xf32>
    %29 = arith.addf %27, %28 : vector<16x32xf32>
    %30 = arith.negf %29 : vector<16x32xf32>
    %31 = math.exp %30 : vector<16x32xf32>
    %cst_24 = arith.constant 1.000000e+00 : f32
    %32 = vector.broadcast %cst_24 : f32 to vector<16x32xf32>
    %33 = arith.addf %32, %31 : vector<16x32xf32>
    %34 = arith.divf %32, %33 : vector<16x32xf32>
    %35 = vector.extract_strided_slice %26 {offsets = [0, 32], sizes = [16, 32], strides = [1, 1]} : vector<16x96xf32> to vector<16x32xf32>
    %36 = vector.extract_strided_slice %24 {offsets = [0, 32], sizes = [16, 32], strides = [1, 1]} : vector<16x96xf32> to vector<16x32xf32>
    %37 = arith.addf %35, %36 : vector<16x32xf32>
    %38 = arith.negf %37 : vector<16x32xf32>
    %39 = math.exp %38 : vector<16x32xf32>
    %cst_25 = arith.constant 1.000000e+00 : f32
    %40 = vector.broadcast %cst_25 : f32 to vector<16x32xf32>
    %41 = arith.addf %40, %39 : vector<16x32xf32>
    %42 = arith.divf %40, %41 : vector<16x32xf32>
    %43 = vector.extract_strided_slice %26 {offsets = [0, 64], sizes = [16, 32], strides = [1, 1]} : vector<16x96xf32> to vector<16x32xf32>
    %44 = vector.extract_strided_slice %24 {offsets = [0, 64], sizes = [16, 32], strides = [1, 1]} : vector<16x96xf32> to vector<16x32xf32>
    %45 = arith.mulf %34, %44 : vector<16x32xf32>
    %46 = arith.addf %43, %45 : vector<16x32xf32>
    %47 = math.tanh %46 : vector<16x32xf32>
    %cst_26 = arith.constant 1.000000e+00 : f32
    %48 = vector.broadcast %cst_26 : f32 to vector<16x32xf32>
    %49 = arith.subf %48, %42 : vector<16x32xf32>
    %50 = arith.mulf %49, %47 : vector<16x32xf32>
    %51 = arith.mulf %42, %21 : vector<16x32xf32>
    %52 = arith.addf %50, %51 : vector<16x32xf32>
    %c0_27 = arith.constant 0 : index
    %c0_28 = arith.constant 0 : index
    %53 = vector.load %arg11[%c0_27, %c0_28] : memref<16x32xf32, #tpu.memory_space<vmem>>, vector<16x32xf32>
    tpu.vector_store %arg11[%c0_27, %c0_28], %52 {strides = array<i32>} : memref<16x32xf32, #tpu.memory_space<vmem>>, vector<16x32xf32>,
    %cst_29 = arith.constant dense<0.000000e+00> : vector<16xf32>
    %54 = vector.multi_reduction <add>, %52, %cst_29 [1] : vector<16x32xf32> to vector<16xf32>
    %55 = vector.shape_cast %54 : vector<16xf32> to vector<16x1xf32>
    %cst_30 = arith.constant 3.200000e+01 : f32
    %56 = vector.broadcast %cst_30 : f32 to vector<16x1xf32>
    %57 = arith.divf %55, %56 : vector<16x1xf32>
    %58 = vector.broadcast %57 : vector<16x1xf32> to vector<16x32xf32>
    %59 = arith.subf %52, %58 : vector<16x32xf32>
    %60 = arith.mulf %59, %59 : vector<16x32xf32>
    %cst_31 = arith.constant dense<0.000000e+00> : vector<16xf32>
    %61 = vector.multi_reduction <add>, %60, %cst_31 [1] : vector<16x32xf32> to vector<16xf32>
    %62 = vector.shape_cast %61 : vector<16xf32> to vector<16x1xf32>
    %cst_32 = arith.constant 3.200000e+01 : f32
    %63 = vector.broadcast %cst_32 : f32 to vector<16x1xf32>
    %64 = arith.divf %62, %63 : vector<16x1xf32>
    %65 = vector.broadcast %57 : vector<16x1xf32> to vector<16x32xf32>
    %66 = arith.subf %52, %65 : vector<16x32xf32>
    %cst_33 = arith.constant 9.99999974E-6 : f32
    %67 = vector.broadcast %cst_33 : f32 to vector<16x1xf32>
    %68 = arith.addf %64, %67 : vector<16x1xf32>
    %69 = math.rsqrt %68 : vector<16x1xf32>
    %70 = vector.broadcast %69 : vector<16x1xf32> to vector<16x32xf32>
    %71 = arith.mulf %66, %70 : vector<16x32xf32>
    %72 = arith.mulf %71, %17 : vector<16x32xf32>
    %73 = arith.addf %72, %20 : vector<16x32xf32>
    %c0_34 = arith.constant 0 : index
    %c0_35 = arith.constant 0 : index
    %c0_36 = arith.constant 0 : index
    %74 = vector.load %arg9[%c0_34, %c0_35, %c0_36] : memref<16x8x32xf32, #tpu.memory_space<vmem>>, vector<16x1x32xf32>
    %75 = vector.shape_cast %74 : vector<16x1x32xf32> to vector<16x32xf32>
    %76 = vector.shape_cast %73 : vector<16x32xf32> to vector<16x1x32xf32>
    tpu.vector_store %arg9[%c0_34, %c0_35, %c0_36], %76 {strides = array<i32>} : memref<16x8x32xf32, #tpu.memory_space<vmem>>, vector<16x1x32xf32>,
    %c0_37 = arith.constant 0 : index
    %c0_38 = arith.constant 0 : index
    %77 = vector.load %arg11[%c0_37, %c0_38] : memref<16x32xf32, #tpu.memory_space<vmem>>, vector<16x32xf32>
    %c0_39 = arith.constant 0 : index
    %c0_40 = arith.constant 0 : index
    %78 = vector.load %arg4[%c0_39, %c0_40] : memref<32x96xf32, #tpu.memory_space<vmem>>, vector<32x96xf32>
    %cst_41 = arith.constant dense<0.000000e+00> : vector<16x96xf32>
    %79 = tpu.matmul %77, %78, %cst_41 {dimension_numbers = #tpu.dot_dimension_numbers<[1], [0], [0], [1], [0, 0, 1, 1], [], []>} : vector<16x32xf32>, vector<32x96xf32>, vector<16x96xf32> -> vector<16x96xf32>
    %80 = arith.addf %79, %14 : vector<16x96xf32>
    %c1 = arith.constant 1 : index
    %c0_42 = arith.constant 0 : index
    %c0_43 = arith.constant 0 : index
    %81 = vector.load %arg12[%c1, %c0_42, %c0_43] : memref<8x16x96xf32, #tpu.memory_space<vmem>>, vector<1x16x96xf32>
    %82 = vector.shape_cast %81 : vector<1x16x96xf32> to vector<16x96xf32>
    %83 = vector.extract_strided_slice %82 {offsets = [0, 0], sizes = [16, 32], strides = [1, 1]} : vector<16x96xf32> to vector<16x32xf32>
    %84 = vector.extract_strided_slice %80 {offsets = [0, 0], sizes = [16, 32], strides = [1, 1]} : vector<16x96xf32> to vector<16x32xf32>
    %85 = arith.addf %83, %84 : vector<16x32xf32>
    %86 = arith.negf %85 : vector<16x32xf32>
    %87 = math.exp %86 : vector<16x32xf32>
    %cst_44 = arith.constant 1.000000e+00 : f32
    %88 = vector.broadcast %cst_44 : f32 to vector<16x32xf32>
    %89 = arith.addf %88, %87 : vector<16x32xf32>
    %90 = arith.divf %88, %89 : vector<16x32xf32>
    %91 = vector.extract_strided_slice %82 {offsets = [0, 32], sizes = [16, 32], strides = [1, 1]} : vector<16x96xf32> to vector<16x32xf32>
    %92 = vector.extract_strided_slice %80 {offsets = [0, 32], sizes = [16, 32], strides = [1, 1]} : vector<16x96xf32> to vector<16x32xf32>
    %93 = arith.addf %91, %92 : vector<16x32xf32>
    %94 = arith.negf %93 : vector<16x32xf32>
    %95 = math.exp %94 : vector<16x32xf32>
    %cst_45 = arith.constant 1.000000e+00 : f32
    %96 = vector.broadcast %cst_45 : f32 to vector<16x32xf32>
    %97 = arith.addf %96, %95 : vector<16x32xf32>
    %98 = arith.divf %96, %97 : vector<16x32xf32>
    %99 = vector.extract_strided_slice %82 {offsets = [0, 64], sizes = [16, 32], strides = [1, 1]} : vector<16x96xf32> to vector<16x32xf32>
    %100 = vector.extract_strided_slice %80 {offsets = [0, 64], sizes = [16, 32], strides = [1, 1]} : vector<16x96xf32> to vector<16x32xf32>
    %101 = arith.mulf %90, %100 : vector<16x32xf32>
    %102 = arith.addf %99, %101 : vector<16x32xf32>
    %103 = math.tanh %102 : vector<16x32xf32>
    %cst_46 = arith.constant 1.000000e+00 : f32
    %104 = vector.broadcast %cst_46 : f32 to vector<16x32xf32>
    %105 = arith.subf %104, %98 : vector<16x32xf32>
    %106 = arith.mulf %105, %103 : vector<16x32xf32>
    %107 = arith.mulf %98, %77 : vector<16x32xf32>
    %108 = arith.addf %106, %107 : vector<16x32xf32>
    %c0_47 = arith.constant 0 : index
    %c0_48 = arith.constant 0 : index
    %109 = vector.load %arg11[%c0_47, %c0_48] : memref<16x32xf32, #tpu.memory_space<vmem>>, vector<16x32xf32>
    tpu.vector_store %arg11[%c0_47, %c0_48], %108 {strides = array<i32>} : memref<16x32xf32, #tpu.memory_space<vmem>>, vector<16x32xf32>,
    %cst_49 = arith.constant dense<0.000000e+00> : vector<16xf32>
    %110 = vector.multi_reduction <add>, %108, %cst_49 [1] : vector<16x32xf32> to vector<16xf32>
    %111 = vector.shape_cast %110 : vector<16xf32> to vector<16x1xf32>
    %cst_50 = arith.constant 3.200000e+01 : f32
    %112 = vector.broadcast %cst_50 : f32 to vector<16x1xf32>
    %113 = arith.divf %111, %112 : vector<16x1xf32>
    %114 = vector.broadcast %113 : vector<16x1xf32> to vector<16x32xf32>
    %115 = arith.subf %108, %114 : vector<16x32xf32>
    %116 = arith.mulf %115, %115 : vector<16x32xf32>
    %cst_51 = arith.constant dense<0.000000e+00> : vector<16xf32>
    %117 = vector.multi_reduction <add>, %116, %cst_51 [1] : vector<16x32xf32> to vector<16xf32>
    %118 = vector.shape_cast %117 : vector<16xf32> to vector<16x1xf32>
    %cst_52 = arith.constant 3.200000e+01 : f32
    %119 = vector.broadcast %cst_52 : f32 to vector<16x1xf32>
    %120 = arith.divf %118, %119 : vector<16x1xf32>
    %121 = vector.broadcast %113 : vector<16x1xf32> to vector<16x32xf32>
    %122 = arith.subf %108, %121 : vector<16x32xf32>
    %cst_53 = arith.constant 9.99999974E-6 : f32
    %123 = vector.broadcast %cst_53 : f32 to vector<16x1xf32>
    %124 = arith.addf %120, %123 : vector<16x1xf32>
    %125 = math.rsqrt %124 : vector<16x1xf32>
    %126 = vector.broadcast %125 : vector<16x1xf32> to vector<16x32xf32>
    %127 = arith.mulf %122, %126 : vector<16x32xf32>
    %128 = arith.mulf %127, %17 : vector<16x32xf32>
    %129 = arith.addf %128, %20 : vector<16x32xf32>
    %c0_54 = arith.constant 0 : index
    %c1_55 = arith.constant 1 : index
    %c0_56 = arith.constant 0 : index
    %130 = vector.load %arg9[%c0_54, %c1_55, %c0_56] : memref<16x8x32xf32, #tpu.memory_space<vmem>>, vector<16x1x32xf32>
    %131 = vector.shape_cast %130 : vector<16x1x32xf32> to vector<16x32xf32>
    %132 = vector.shape_cast %129 : vector<16x32xf32> to vector<16x1x32xf32>
    tpu.vector_store %arg9[%c0_54, %c1_55, %c0_56], %132 {strides = array<i32>} : memref<16x8x32xf32, #tpu.memory_space<vmem>>, vector<16x1x32xf32>,
    %c0_57 = arith.constant 0 : index
    %c0_58 = arith.constant 0 : index
    %133 = vector.load %arg11[%c0_57, %c0_58] : memref<16x32xf32, #tpu.memory_space<vmem>>, vector<16x32xf32>
    %c0_59 = arith.constant 0 : index
    %c0_60 = arith.constant 0 : index
    %134 = vector.load %arg4[%c0_59, %c0_60] : memref<32x96xf32, #tpu.memory_space<vmem>>, vector<32x96xf32>
    %cst_61 = arith.constant dense<0.000000e+00> : vector<16x96xf32>
    %135 = tpu.matmul %133, %134, %cst_61 {dimension_numbers = #tpu.dot_dimension_numbers<[1], [0], [0], [1], [0, 0, 1, 1], [], []>} : vector<16x32xf32>, vector<32x96xf32>, vector<16x96xf32> -> vector<16x96xf32>
    %136 = arith.addf %135, %14 : vector<16x96xf32>
    %c2 = arith.constant 2 : index
    %c0_62 = arith.constant 0 : index
    %c0_63 = arith.constant 0 : index
    %137 = vector.load %arg12[%c2, %c0_62, %c0_63] : memref<8x16x96xf32, #tpu.memory_space<vmem>>, vector<1x16x96xf32>
    %138 = vector.shape_cast %137 : vector<1x16x96xf32> to vector<16x96xf32>
    %139 = vector.extract_strided_slice %138 {offsets = [0, 0], sizes = [16, 32], strides = [1, 1]} : vector<16x96xf32> to vector<16x32xf32>
    %140 = vector.extract_strided_slice %136 {offsets = [0, 0], sizes = [16, 32], strides = [1, 1]} : vector<16x96xf32> to vector<16x32xf32>
    %141 = arith.addf %139, %140 : vector<16x32xf32>
    %142 = arith.negf %141 : vector<16x32xf32>
    %143 = math.exp %142 : vector<16x32xf32>
    %cst_64 = arith.constant 1.000000e+00 : f32
    %144 = vector.broadcast %cst_64 : f32 to vector<16x32xf32>
    %145 = arith.addf %144, %143 : vector<16x32xf32>
    %146 = arith.divf %144, %145 : vector<16x32xf32>
    %147 = vector.extract_strided_slice %138 {offsets = [0, 32], sizes = [16, 32], strides = [1, 1]} : vector<16x96xf32> to vector<16x32xf32>
    %148 = vector.extract_strided_slice %136 {offsets = [0, 32], sizes = [16, 32], strides = [1, 1]} : vector<16x96xf32> to vector<16x32xf32>
    %149 = arith.addf %147, %148 : vector<16x32xf32>
    %150 = arith.negf %149 : vector<16x32xf32>
    %151 = math.exp %150 : vector<16x32xf32>
    %cst_65 = arith.constant 1.000000e+00 : f32
    %152 = vector.broadcast %cst_65 : f32 to vector<16x32xf32>
    %153 = arith.addf %152, %151 : vector<16x32xf32>
    %154 = arith.divf %152, %153 : vector<16x32xf32>
    %155 = vector.extract_strided_slice %138 {offsets = [0, 64], sizes = [16, 32], strides = [1, 1]} : vector<16x96xf32> to vector<16x32xf32>
    %156 = vector.extract_strided_slice %136 {offsets = [0, 64], sizes = [16, 32], strides = [1, 1]} : vector<16x96xf32> to vector<16x32xf32>
    %157 = arith.mulf %146, %156 : vector<16x32xf32>
    %158 = arith.addf %155, %157 : vector<16x32xf32>
    %159 = math.tanh %158 : vector<16x32xf32>
    %cst_66 = arith.constant 1.000000e+00 : f32
    %160 = vector.broadcast %cst_66 : f32 to vector<16x32xf32>
    %161 = arith.subf %160, %154 : vector<16x32xf32>
    %162 = arith.mulf %161, %159 : vector<16x32xf32>
    %163 = arith.mulf %154, %133 : vector<16x32xf32>
    %164 = arith.addf %162, %163 : vector<16x32xf32>
    %c0_67 = arith.constant 0 : index
    %c0_68 = arith.constant 0 : index
    %165 = vector.load %arg11[%c0_67, %c0_68] : memref<16x32xf32, #tpu.memory_space<vmem>>, vector<16x32xf32>
    tpu.vector_store %arg11[%c0_67, %c0_68], %164 {strides = array<i32>} : memref<16x32xf32, #tpu.memory_space<vmem>>, vector<16x32xf32>,
    %cst_69 = arith.constant dense<0.000000e+00> : vector<16xf32>
    %166 = vector.multi_reduction <add>, %164, %cst_69 [1] : vector<16x32xf32> to vector<16xf32>
    %167 = vector.shape_cast %166 : vector<16xf32> to vector<16x1xf32>
    %cst_70 = arith.constant 3.200000e+01 : f32
    %168 = vector.broadcast %cst_70 : f32 to vector<16x1xf32>
    %169 = arith.divf %167, %168 : vector<16x1xf32>
    %170 = vector.broadcast %169 : vector<16x1xf32> to vector<16x32xf32>
    %171 = arith.subf %164, %170 : vector<16x32xf32>
    %172 = arith.mulf %171, %171 : vector<16x32xf32>
    %cst_71 = arith.constant dense<0.000000e+00> : vector<16xf32>
    %173 = vector.multi_reduction <add>, %172, %cst_71 [1] : vector<16x32xf32> to vector<16xf32>
    %174 = vector.shape_cast %173 : vector<16xf32> to vector<16x1xf32>
    %cst_72 = arith.constant 3.200000e+01 : f32
    %175 = vector.broadcast %cst_72 : f32 to vector<16x1xf32>
    %176 = arith.divf %174, %175 : vector<16x1xf32>
    %177 = vector.broadcast %169 : vector<16x1xf32> to vector<16x32xf32>
    %178 = arith.subf %164, %177 : vector<16x32xf32>
    %cst_73 = arith.constant 9.99999974E-6 : f32
    %179 = vector.broadcast %cst_73 : f32 to vector<16x1xf32>
    %180 = arith.addf %176, %179 : vector<16x1xf32>
    %181 = math.rsqrt %180 : vector<16x1xf32>
    %182 = vector.broadcast %181 : vector<16x1xf32> to vector<16x32xf32>
    %183 = arith.mulf %178, %182 : vector<16x32xf32>
    %184 = arith.mulf %183, %17 : vector<16x32xf32>
    %185 = arith.addf %184, %20 : vector<16x32xf32>
    %c0_74 = arith.constant 0 : index
    %c2_75 = arith.constant 2 : index
    %c0_76 = arith.constant 0 : index
    %186 = vector.load %arg9[%c0_74, %c2_75, %c0_76] : memref<16x8x32xf32, #tpu.memory_space<vmem>>, vector<16x1x32xf32>
    %187 = vector.shape_cast %186 : vector<16x1x32xf32> to vector<16x32xf32>
    %188 = vector.shape_cast %185 : vector<16x32xf32> to vector<16x1x32xf32>
    tpu.vector_store %arg9[%c0_74, %c2_75, %c0_76], %188 {strides = array<i32>} : memref<16x8x32xf32, #tpu.memory_space<vmem>>, vector<16x1x32xf32>,
    %c0_77 = arith.constant 0 : index
    %c0_78 = arith.constant 0 : index
    %189 = vector.load %arg11[%c0_77, %c0_78] : memref<16x32xf32, #tpu.memory_space<vmem>>, vector<16x32xf32>
    %c0_79 = arith.constant 0 : index
    %c0_80 = arith.constant 0 : index
    %190 = vector.load %arg4[%c0_79, %c0_80] : memref<32x96xf32, #tpu.memory_space<vmem>>, vector<32x96xf32>
    %cst_81 = arith.constant dense<0.000000e+00> : vector<16x96xf32>
    %191 = tpu.matmul %189, %190, %cst_81 {dimension_numbers = #tpu.dot_dimension_numbers<[1], [0], [0], [1], [0, 0, 1, 1], [], []>} : vector<16x32xf32>, vector<32x96xf32>, vector<16x96xf32> -> vector<16x96xf32>
    %192 = arith.addf %191, %14 : vector<16x96xf32>
    %c3 = arith.constant 3 : index
    %c0_82 = arith.constant 0 : index
    %c0_83 = arith.constant 0 : index
    %193 = vector.load %arg12[%c3, %c0_82, %c0_83] : memref<8x16x96xf32, #tpu.memory_space<vmem>>, vector<1x16x96xf32>
    %194 = vector.shape_cast %193 : vector<1x16x96xf32> to vector<16x96xf32>
    %195 = vector.extract_strided_slice %194 {offsets = [0, 0], sizes = [16, 32], strides = [1, 1]} : vector<16x96xf32> to vector<16x32xf32>
    %196 = vector.extract_strided_slice %192 {offsets = [0, 0], sizes = [16, 32], strides = [1, 1]} : vector<16x96xf32> to vector<16x32xf32>
    %197 = arith.addf %195, %196 : vector<16x32xf32>
    %198 = arith.negf %197 : vector<16x32xf32>
    %199 = math.exp %198 : vector<16x32xf32>
    %cst_84 = arith.constant 1.000000e+00 : f32
    %200 = vector.broadcast %cst_84 : f32 to vector<16x32xf32>
    %201 = arith.addf %200, %199 : vector<16x32xf32>
    %202 = arith.divf %200, %201 : vector<16x32xf32>
    %203 = vector.extract_strided_slice %194 {offsets = [0, 32], sizes = [16, 32], strides = [1, 1]} : vector<16x96xf32> to vector<16x32xf32>
    %204 = vector.extract_strided_slice %192 {offsets = [0, 32], sizes = [16, 32], strides = [1, 1]} : vector<16x96xf32> to vector<16x32xf32>
    %205 = arith.addf %203, %204 : vector<16x32xf32>
    %206 = arith.negf %205 : vector<16x32xf32>
    %207 = math.exp %206 : vector<16x32xf32>
    %cst_85 = arith.constant 1.000000e+00 : f32
    %208 = vector.broadcast %cst_85 : f32 to vector<16x32xf32>
    %209 = arith.addf %208, %207 : vector<16x32xf32>
    %210 = arith.divf %208, %209 : vector<16x32xf32>
    %211 = vector.extract_strided_slice %194 {offsets = [0, 64], sizes = [16, 32], strides = [1, 1]} : vector<16x96xf32> to vector<16x32xf32>
    %212 = vector.extract_strided_slice %192 {offsets = [0, 64], sizes = [16, 32], strides = [1, 1]} : vector<16x96xf32> to vector<16x32xf32>
    %213 = arith.mulf %202, %212 : vector<16x32xf32>
    %214 = arith.addf %211, %213 : vector<16x32xf32>
    %215 = math.tanh %214 : vector<16x32xf32>
    %cst_86 = arith.constant 1.000000e+00 : f32
    %216 = vector.broadcast %cst_86 : f32 to vector<16x32xf32>
    %217 = arith.subf %216, %210 : vector<16x32xf32>
    %218 = arith.mulf %217, %215 : vector<16x32xf32>
    %219 = arith.mulf %210, %189 : vector<16x32xf32>
    %220 = arith.addf %218, %219 : vector<16x32xf32>
    %c0_87 = arith.constant 0 : index
    %c0_88 = arith.constant 0 : index
    %221 = vector.load %arg11[%c0_87, %c0_88] : memref<16x32xf32, #tpu.memory_space<vmem>>, vector<16x32xf32>
    tpu.vector_store %arg11[%c0_87, %c0_88], %220 {strides = array<i32>} : memref<16x32xf32, #tpu.memory_space<vmem>>, vector<16x32xf32>,
    %cst_89 = arith.constant dense<0.000000e+00> : vector<16xf32>
    %222 = vector.multi_reduction <add>, %220, %cst_89 [1] : vector<16x32xf32> to vector<16xf32>
    %223 = vector.shape_cast %222 : vector<16xf32> to vector<16x1xf32>
    %cst_90 = arith.constant 3.200000e+01 : f32
    %224 = vector.broadcast %cst_90 : f32 to vector<16x1xf32>
    %225 = arith.divf %223, %224 : vector<16x1xf32>
    %226 = vector.broadcast %225 : vector<16x1xf32> to vector<16x32xf32>
    %227 = arith.subf %220, %226 : vector<16x32xf32>
    %228 = arith.mulf %227, %227 : vector<16x32xf32>
    %cst_91 = arith.constant dense<0.000000e+00> : vector<16xf32>
    %229 = vector.multi_reduction <add>, %228, %cst_91 [1] : vector<16x32xf32> to vector<16xf32>
    %230 = vector.shape_cast %229 : vector<16xf32> to vector<16x1xf32>
    %cst_92 = arith.constant 3.200000e+01 : f32
    %231 = vector.broadcast %cst_92 : f32 to vector<16x1xf32>
    %232 = arith.divf %230, %231 : vector<16x1xf32>
    %233 = vector.broadcast %225 : vector<16x1xf32> to vector<16x32xf32>
    %234 = arith.subf %220, %233 : vector<16x32xf32>
    %cst_93 = arith.constant 9.99999974E-6 : f32
    %235 = vector.broadcast %cst_93 : f32 to vector<16x1xf32>
    %236 = arith.addf %232, %235 : vector<16x1xf32>
    %237 = math.rsqrt %236 : vector<16x1xf32>
    %238 = vector.broadcast %237 : vector<16x1xf32> to vector<16x32xf32>
    %239 = arith.mulf %234, %238 : vector<16x32xf32>
    %240 = arith.mulf %239, %17 : vector<16x32xf32>
    %241 = arith.addf %240, %20 : vector<16x32xf32>
    %c0_94 = arith.constant 0 : index
    %c3_95 = arith.constant 3 : index
    %c0_96 = arith.constant 0 : index
    %242 = vector.load %arg9[%c0_94, %c3_95, %c0_96] : memref<16x8x32xf32, #tpu.memory_space<vmem>>, vector<16x1x32xf32>
    %243 = vector.shape_cast %242 : vector<16x1x32xf32> to vector<16x32xf32>
    %244 = vector.shape_cast %241 : vector<16x32xf32> to vector<16x1x32xf32>
    tpu.vector_store %arg9[%c0_94, %c3_95, %c0_96], %244 {strides = array<i32>} : memref<16x8x32xf32, #tpu.memory_space<vmem>>, vector<16x1x32xf32>,
    %c0_97 = arith.constant 0 : index
    %c0_98 = arith.constant 0 : index
    %245 = vector.load %arg11[%c0_97, %c0_98] : memref<16x32xf32, #tpu.memory_space<vmem>>, vector<16x32xf32>
    %c0_99 = arith.constant 0 : index
    %c0_100 = arith.constant 0 : index
    %246 = vector.load %arg4[%c0_99, %c0_100] : memref<32x96xf32, #tpu.memory_space<vmem>>, vector<32x96xf32>
    %cst_101 = arith.constant dense<0.000000e+00> : vector<16x96xf32>
    %247 = tpu.matmul %245, %246, %cst_101 {dimension_numbers = #tpu.dot_dimension_numbers<[1], [0], [0], [1], [0, 0, 1, 1], [], []>} : vector<16x32xf32>, vector<32x96xf32>, vector<16x96xf32> -> vector<16x96xf32>
    %248 = arith.addf %247, %14 : vector<16x96xf32>
    %c4 = arith.constant 4 : index
    %c0_102 = arith.constant 0 : index
    %c0_103 = arith.constant 0 : index
    %249 = vector.load %arg12[%c4, %c0_102, %c0_103] : memref<8x16x96xf32, #tpu.memory_space<vmem>>, vector<1x16x96xf32>
    %250 = vector.shape_cast %249 : vector<1x16x96xf32> to vector<16x96xf32>
    %251 = vector.extract_strided_slice %250 {offsets = [0, 0], sizes = [16, 32], strides = [1, 1]} : vector<16x96xf32> to vector<16x32xf32>
    %252 = vector.extract_strided_slice %248 {offsets = [0, 0], sizes = [16, 32], strides = [1, 1]} : vector<16x96xf32> to vector<16x32xf32>
    %253 = arith.addf %251, %252 : vector<16x32xf32>
    %254 = arith.negf %253 : vector<16x32xf32>
    %255 = math.exp %254 : vector<16x32xf32>
    %cst_104 = arith.constant 1.000000e+00 : f32
    %256 = vector.broadcast %cst_104 : f32 to vector<16x32xf32>
    %257 = arith.addf %256, %255 : vector<16x32xf32>
    %258 = arith.divf %256, %257 : vector<16x32xf32>
    %259 = vector.extract_strided_slice %250 {offsets = [0, 32], sizes = [16, 32], strides = [1, 1]} : vector<16x96xf32> to vector<16x32xf32>
    %260 = vector.extract_strided_slice %248 {offsets = [0, 32], sizes = [16, 32], strides = [1, 1]} : vector<16x96xf32> to vector<16x32xf32>
    %261 = arith.addf %259, %260 : vector<16x32xf32>
    %262 = arith.negf %261 : vector<16x32xf32>
    %263 = math.exp %262 : vector<16x32xf32>
    %cst_105 = arith.constant 1.000000e+00 : f32
    %264 = vector.broadcast %cst_105 : f32 to vector<16x32xf32>
    %265 = arith.addf %264, %263 : vector<16x32xf32>
    %266 = arith.divf %264, %265 : vector<16x32xf32>
    %267 = vector.extract_strided_slice %250 {offsets = [0, 64], sizes = [16, 32], strides = [1, 1]} : vector<16x96xf32> to vector<16x32xf32>
    %268 = vector.extract_strided_slice %248 {offsets = [0, 64], sizes = [16, 32], strides = [1, 1]} : vector<16x96xf32> to vector<16x32xf32>
    %269 = arith.mulf %258, %268 : vector<16x32xf32>
    %270 = arith.addf %267, %269 : vector<16x32xf32>
    %271 = math.tanh %270 : vector<16x32xf32>
    %cst_106 = arith.constant 1.000000e+00 : f32
    %272 = vector.broadcast %cst_106 : f32 to vector<16x32xf32>
    %273 = arith.subf %272, %266 : vector<16x32xf32>
    %274 = arith.mulf %273, %271 : vector<16x32xf32>
    %275 = arith.mulf %266, %245 : vector<16x32xf32>
    %276 = arith.addf %274, %275 : vector<16x32xf32>
    %c0_107 = arith.constant 0 : index
    %c0_108 = arith.constant 0 : index
    %277 = vector.load %arg11[%c0_107, %c0_108] : memref<16x32xf32, #tpu.memory_space<vmem>>, vector<16x32xf32>
    tpu.vector_store %arg11[%c0_107, %c0_108], %276 {strides = array<i32>} : memref<16x32xf32, #tpu.memory_space<vmem>>, vector<16x32xf32>,
    %cst_109 = arith.constant dense<0.000000e+00> : vector<16xf32>
    %278 = vector.multi_reduction <add>, %276, %cst_109 [1] : vector<16x32xf32> to vector<16xf32>
    %279 = vector.shape_cast %278 : vector<16xf32> to vector<16x1xf32>
    %cst_110 = arith.constant 3.200000e+01 : f32
    %280 = vector.broadcast %cst_110 : f32 to vector<16x1xf32>
    %281 = arith.divf %279, %280 : vector<16x1xf32>
    %282 = vector.broadcast %281 : vector<16x1xf32> to vector<16x32xf32>
    %283 = arith.subf %276, %282 : vector<16x32xf32>
    %284 = arith.mulf %283, %283 : vector<16x32xf32>
    %cst_111 = arith.constant dense<0.000000e+00> : vector<16xf32>
    %285 = vector.multi_reduction <add>, %284, %cst_111 [1] : vector<16x32xf32> to vector<16xf32>
    %286 = vector.shape_cast %285 : vector<16xf32> to vector<16x1xf32>
    %cst_112 = arith.constant 3.200000e+01 : f32
    %287 = vector.broadcast %cst_112 : f32 to vector<16x1xf32>
    %288 = arith.divf %286, %287 : vector<16x1xf32>
    %289 = vector.broadcast %281 : vector<16x1xf32> to vector<16x32xf32>
    %290 = arith.subf %276, %289 : vector<16x32xf32>
    %cst_113 = arith.constant 9.99999974E-6 : f32
    %291 = vector.broadcast %cst_113 : f32 to vector<16x1xf32>
    %292 = arith.addf %288, %291 : vector<16x1xf32>
    %293 = math.rsqrt %292 : vector<16x1xf32>
    %294 = vector.broadcast %293 : vector<16x1xf32> to vector<16x32xf32>
    %295 = arith.mulf %290, %294 : vector<16x32xf32>
    %296 = arith.mulf %295, %17 : vector<16x32xf32>
    %297 = arith.addf %296, %20 : vector<16x32xf32>
    %c0_114 = arith.constant 0 : index
    %c4_115 = arith.constant 4 : index
    %c0_116 = arith.constant 0 : index
    %298 = vector.load %arg9[%c0_114, %c4_115, %c0_116] : memref<16x8x32xf32, #tpu.memory_space<vmem>>, vector<16x1x32xf32>
    %299 = vector.shape_cast %298 : vector<16x1x32xf32> to vector<16x32xf32>
    %300 = vector.shape_cast %297 : vector<16x32xf32> to vector<16x1x32xf32>
    tpu.vector_store %arg9[%c0_114, %c4_115, %c0_116], %300 {strides = array<i32>} : memref<16x8x32xf32, #tpu.memory_space<vmem>>, vector<16x1x32xf32>,
    %c0_117 = arith.constant 0 : index
    %c0_118 = arith.constant 0 : index
    %301 = vector.load %arg11[%c0_117, %c0_118] : memref<16x32xf32, #tpu.memory_space<vmem>>, vector<16x32xf32>
    %c0_119 = arith.constant 0 : index
    %c0_120 = arith.constant 0 : index
    %302 = vector.load %arg4[%c0_119, %c0_120] : memref<32x96xf32, #tpu.memory_space<vmem>>, vector<32x96xf32>
    %cst_121 = arith.constant dense<0.000000e+00> : vector<16x96xf32>
    %303 = tpu.matmul %301, %302, %cst_121 {dimension_numbers = #tpu.dot_dimension_numbers<[1], [0], [0], [1], [0, 0, 1, 1], [], []>} : vector<16x32xf32>, vector<32x96xf32>, vector<16x96xf32> -> vector<16x96xf32>
    %304 = arith.addf %303, %14 : vector<16x96xf32>
    %c5 = arith.constant 5 : index
    %c0_122 = arith.constant 0 : index
    %c0_123 = arith.constant 0 : index
    %305 = vector.load %arg12[%c5, %c0_122, %c0_123] : memref<8x16x96xf32, #tpu.memory_space<vmem>>, vector<1x16x96xf32>
    %306 = vector.shape_cast %305 : vector<1x16x96xf32> to vector<16x96xf32>
    %307 = vector.extract_strided_slice %306 {offsets = [0, 0], sizes = [16, 32], strides = [1, 1]} : vector<16x96xf32> to vector<16x32xf32>
    %308 = vector.extract_strided_slice %304 {offsets = [0, 0], sizes = [16, 32], strides = [1, 1]} : vector<16x96xf32> to vector<16x32xf32>
    %309 = arith.addf %307, %308 : vector<16x32xf32>
    %310 = arith.negf %309 : vector<16x32xf32>
    %311 = math.exp %310 : vector<16x32xf32>
    %cst_124 = arith.constant 1.000000e+00 : f32
    %312 = vector.broadcast %cst_124 : f32 to vector<16x32xf32>
    %313 = arith.addf %312, %311 : vector<16x32xf32>
    %314 = arith.divf %312, %313 : vector<16x32xf32>
    %315 = vector.extract_strided_slice %306 {offsets = [0, 32], sizes = [16, 32], strides = [1, 1]} : vector<16x96xf32> to vector<16x32xf32>
    %316 = vector.extract_strided_slice %304 {offsets = [0, 32], sizes = [16, 32], strides = [1, 1]} : vector<16x96xf32> to vector<16x32xf32>
    %317 = arith.addf %315, %316 : vector<16x32xf32>
    %318 = arith.negf %317 : vector<16x32xf32>
    %319 = math.exp %318 : vector<16x32xf32>
    %cst_125 = arith.constant 1.000000e+00 : f32
    %320 = vector.broadcast %cst_125 : f32 to vector<16x32xf32>
    %321 = arith.addf %320, %319 : vector<16x32xf32>
    %322 = arith.divf %320, %321 : vector<16x32xf32>
    %323 = vector.extract_strided_slice %306 {offsets = [0, 64], sizes = [16, 32], strides = [1, 1]} : vector<16x96xf32> to vector<16x32xf32>
    %324 = vector.extract_strided_slice %304 {offsets = [0, 64], sizes = [16, 32], strides = [1, 1]} : vector<16x96xf32> to vector<16x32xf32>
    %325 = arith.mulf %314, %324 : vector<16x32xf32>
    %326 = arith.addf %323, %325 : vector<16x32xf32>
    %327 = math.tanh %326 : vector<16x32xf32>
    %cst_126 = arith.constant 1.000000e+00 : f32
    %328 = vector.broadcast %cst_126 : f32 to vector<16x32xf32>
    %329 = arith.subf %328, %322 : vector<16x32xf32>
    %330 = arith.mulf %329, %327 : vector<16x32xf32>
    %331 = arith.mulf %322, %301 : vector<16x32xf32>
    %332 = arith.addf %330, %331 : vector<16x32xf32>
    %c0_127 = arith.constant 0 : index
    %c0_128 = arith.constant 0 : index
    %333 = vector.load %arg11[%c0_127, %c0_128] : memref<16x32xf32, #tpu.memory_space<vmem>>, vector<16x32xf32>
    tpu.vector_store %arg11[%c0_127, %c0_128], %332 {strides = array<i32>} : memref<16x32xf32, #tpu.memory_space<vmem>>, vector<16x32xf32>,
    %cst_129 = arith.constant dense<0.000000e+00> : vector<16xf32>
    %334 = vector.multi_reduction <add>, %332, %cst_129 [1] : vector<16x32xf32> to vector<16xf32>
    %335 = vector.shape_cast %334 : vector<16xf32> to vector<16x1xf32>
    %cst_130 = arith.constant 3.200000e+01 : f32
    %336 = vector.broadcast %cst_130 : f32 to vector<16x1xf32>
    %337 = arith.divf %335, %336 : vector<16x1xf32>
    %338 = vector.broadcast %337 : vector<16x1xf32> to vector<16x32xf32>
    %339 = arith.subf %332, %338 : vector<16x32xf32>
    %340 = arith.mulf %339, %339 : vector<16x32xf32>
    %cst_131 = arith.constant dense<0.000000e+00> : vector<16xf32>
    %341 = vector.multi_reduction <add>, %340, %cst_131 [1] : vector<16x32xf32> to vector<16xf32>
    %342 = vector.shape_cast %341 : vector<16xf32> to vector<16x1xf32>
    %cst_132 = arith.constant 3.200000e+01 : f32
    %343 = vector.broadcast %cst_132 : f32 to vector<16x1xf32>
    %344 = arith.divf %342, %343 : vector<16x1xf32>
    %345 = vector.broadcast %337 : vector<16x1xf32> to vector<16x32xf32>
    %346 = arith.subf %332, %345 : vector<16x32xf32>
    %cst_133 = arith.constant 9.99999974E-6 : f32
    %347 = vector.broadcast %cst_133 : f32 to vector<16x1xf32>
    %348 = arith.addf %344, %347 : vector<16x1xf32>
    %349 = math.rsqrt %348 : vector<16x1xf32>
    %350 = vector.broadcast %349 : vector<16x1xf32> to vector<16x32xf32>
    %351 = arith.mulf %346, %350 : vector<16x32xf32>
    %352 = arith.mulf %351, %17 : vector<16x32xf32>
    %353 = arith.addf %352, %20 : vector<16x32xf32>
    %c0_134 = arith.constant 0 : index
    %c5_135 = arith.constant 5 : index
    %c0_136 = arith.constant 0 : index
    %354 = vector.load %arg9[%c0_134, %c5_135, %c0_136] : memref<16x8x32xf32, #tpu.memory_space<vmem>>, vector<16x1x32xf32>
    %355 = vector.shape_cast %354 : vector<16x1x32xf32> to vector<16x32xf32>
    %356 = vector.shape_cast %353 : vector<16x32xf32> to vector<16x1x32xf32>
    tpu.vector_store %arg9[%c0_134, %c5_135, %c0_136], %356 {strides = array<i32>} : memref<16x8x32xf32, #tpu.memory_space<vmem>>, vector<16x1x32xf32>,
    %c0_137 = arith.constant 0 : index
    %c0_138 = arith.constant 0 : index
    %357 = vector.load %arg11[%c0_137, %c0_138] : memref<16x32xf32, #tpu.memory_space<vmem>>, vector<16x32xf32>
    %c0_139 = arith.constant 0 : index
    %c0_140 = arith.constant 0 : index
    %358 = vector.load %arg4[%c0_139, %c0_140] : memref<32x96xf32, #tpu.memory_space<vmem>>, vector<32x96xf32>
    %cst_141 = arith.constant dense<0.000000e+00> : vector<16x96xf32>
    %359 = tpu.matmul %357, %358, %cst_141 {dimension_numbers = #tpu.dot_dimension_numbers<[1], [0], [0], [1], [0, 0, 1, 1], [], []>} : vector<16x32xf32>, vector<32x96xf32>, vector<16x96xf32> -> vector<16x96xf32>
    %360 = arith.addf %359, %14 : vector<16x96xf32>
    %c6 = arith.constant 6 : index
    %c0_142 = arith.constant 0 : index
    %c0_143 = arith.constant 0 : index
    %361 = vector.load %arg12[%c6, %c0_142, %c0_143] : memref<8x16x96xf32, #tpu.memory_space<vmem>>, vector<1x16x96xf32>
    %362 = vector.shape_cast %361 : vector<1x16x96xf32> to vector<16x96xf32>
    %363 = vector.extract_strided_slice %362 {offsets = [0, 0], sizes = [16, 32], strides = [1, 1]} : vector<16x96xf32> to vector<16x32xf32>
    %364 = vector.extract_strided_slice %360 {offsets = [0, 0], sizes = [16, 32], strides = [1, 1]} : vector<16x96xf32> to vector<16x32xf32>
    %365 = arith.addf %363, %364 : vector<16x32xf32>
    %366 = arith.negf %365 : vector<16x32xf32>
    %367 = math.exp %366 : vector<16x32xf32>
    %cst_144 = arith.constant 1.000000e+00 : f32
    %368 = vector.broadcast %cst_144 : f32 to vector<16x32xf32>
    %369 = arith.addf %368, %367 : vector<16x32xf32>
    %370 = arith.divf %368, %369 : vector<16x32xf32>
    %371 = vector.extract_strided_slice %362 {offsets = [0, 32], sizes = [16, 32], strides = [1, 1]} : vector<16x96xf32> to vector<16x32xf32>
    %372 = vector.extract_strided_slice %360 {offsets = [0, 32], sizes = [16, 32], strides = [1, 1]} : vector<16x96xf32> to vector<16x32xf32>
    %373 = arith.addf %371, %372 : vector<16x32xf32>
    %374 = arith.negf %373 : vector<16x32xf32>
    %375 = math.exp %374 : vector<16x32xf32>
    %cst_145 = arith.constant 1.000000e+00 : f32
    %376 = vector.broadcast %cst_145 : f32 to vector<16x32xf32>
    %377 = arith.addf %376, %375 : vector<16x32xf32>
    %378 = arith.divf %376, %377 : vector<16x32xf32>
    %379 = vector.extract_strided_slice %362 {offsets = [0, 64], sizes = [16, 32], strides = [1, 1]} : vector<16x96xf32> to vector<16x32xf32>
    %380 = vector.extract_strided_slice %360 {offsets = [0, 64], sizes = [16, 32], strides = [1, 1]} : vector<16x96xf32> to vector<16x32xf32>
    %381 = arith.mulf %370, %380 : vector<16x32xf32>
    %382 = arith.addf %379, %381 : vector<16x32xf32>
    %383 = math.tanh %382 : vector<16x32xf32>
    %cst_146 = arith.constant 1.000000e+00 : f32
    %384 = vector.broadcast %cst_146 : f32 to vector<16x32xf32>
    %385 = arith.subf %384, %378 : vector<16x32xf32>
    %386 = arith.mulf %385, %383 : vector<16x32xf32>
    %387 = arith.mulf %378, %357 : vector<16x32xf32>
    %388 = arith.addf %386, %387 : vector<16x32xf32>
    %c0_147 = arith.constant 0 : index
    %c0_148 = arith.constant 0 : index
    %389 = vector.load %arg11[%c0_147, %c0_148] : memref<16x32xf32, #tpu.memory_space<vmem>>, vector<16x32xf32>
    tpu.vector_store %arg11[%c0_147, %c0_148], %388 {strides = array<i32>} : memref<16x32xf32, #tpu.memory_space<vmem>>, vector<16x32xf32>,
    %cst_149 = arith.constant dense<0.000000e+00> : vector<16xf32>
    %390 = vector.multi_reduction <add>, %388, %cst_149 [1] : vector<16x32xf32> to vector<16xf32>
    %391 = vector.shape_cast %390 : vector<16xf32> to vector<16x1xf32>
    %cst_150 = arith.constant 3.200000e+01 : f32
    %392 = vector.broadcast %cst_150 : f32 to vector<16x1xf32>
    %393 = arith.divf %391, %392 : vector<16x1xf32>
    %394 = vector.broadcast %393 : vector<16x1xf32> to vector<16x32xf32>
    %395 = arith.subf %388, %394 : vector<16x32xf32>
    %396 = arith.mulf %395, %395 : vector<16x32xf32>
    %cst_151 = arith.constant dense<0.000000e+00> : vector<16xf32>
    %397 = vector.multi_reduction <add>, %396, %cst_151 [1] : vector<16x32xf32> to vector<16xf32>
    %398 = vector.shape_cast %397 : vector<16xf32> to vector<16x1xf32>
    %cst_152 = arith.constant 3.200000e+01 : f32
    %399 = vector.broadcast %cst_152 : f32 to vector<16x1xf32>
    %400 = arith.divf %398, %399 : vector<16x1xf32>
    %401 = vector.broadcast %393 : vector<16x1xf32> to vector<16x32xf32>
    %402 = arith.subf %388, %401 : vector<16x32xf32>
    %cst_153 = arith.constant 9.99999974E-6 : f32
    %403 = vector.broadcast %cst_153 : f32 to vector<16x1xf32>
    %404 = arith.addf %400, %403 : vector<16x1xf32>
    %405 = math.rsqrt %404 : vector<16x1xf32>
    %406 = vector.broadcast %405 : vector<16x1xf32> to vector<16x32xf32>
    %407 = arith.mulf %402, %406 : vector<16x32xf32>
    %408 = arith.mulf %407, %17 : vector<16x32xf32>
    %409 = arith.addf %408, %20 : vector<16x32xf32>
    %c0_154 = arith.constant 0 : index
    %c6_155 = arith.constant 6 : index
    %c0_156 = arith.constant 0 : index
    %410 = vector.load %arg9[%c0_154, %c6_155, %c0_156] : memref<16x8x32xf32, #tpu.memory_space<vmem>>, vector<16x1x32xf32>
    %411 = vector.shape_cast %410 : vector<16x1x32xf32> to vector<16x32xf32>
    %412 = vector.shape_cast %409 : vector<16x32xf32> to vector<16x1x32xf32>
    tpu.vector_store %arg9[%c0_154, %c6_155, %c0_156], %412 {strides = array<i32>} : memref<16x8x32xf32, #tpu.memory_space<vmem>>, vector<16x1x32xf32>,
    %c0_157 = arith.constant 0 : index
    %c0_158 = arith.constant 0 : index
    %413 = vector.load %arg11[%c0_157, %c0_158] : memref<16x32xf32, #tpu.memory_space<vmem>>, vector<16x32xf32>
    %c0_159 = arith.constant 0 : index
    %c0_160 = arith.constant 0 : index
    %414 = vector.load %arg4[%c0_159, %c0_160] : memref<32x96xf32, #tpu.memory_space<vmem>>, vector<32x96xf32>
    %cst_161 = arith.constant dense<0.000000e+00> : vector<16x96xf32>
    %415 = tpu.matmul %413, %414, %cst_161 {dimension_numbers = #tpu.dot_dimension_numbers<[1], [0], [0], [1], [0, 0, 1, 1], [], []>} : vector<16x32xf32>, vector<32x96xf32>, vector<16x96xf32> -> vector<16x96xf32>
    %416 = arith.addf %415, %14 : vector<16x96xf32>
    %c7 = arith.constant 7 : index
    %c0_162 = arith.constant 0 : index
    %c0_163 = arith.constant 0 : index
    %417 = vector.load %arg12[%c7, %c0_162, %c0_163] : memref<8x16x96xf32, #tpu.memory_space<vmem>>, vector<1x16x96xf32>
    %418 = vector.shape_cast %417 : vector<1x16x96xf32> to vector<16x96xf32>
    %419 = vector.extract_strided_slice %418 {offsets = [0, 0], sizes = [16, 32], strides = [1, 1]} : vector<16x96xf32> to vector<16x32xf32>
    %420 = vector.extract_strided_slice %416 {offsets = [0, 0], sizes = [16, 32], strides = [1, 1]} : vector<16x96xf32> to vector<16x32xf32>
    %421 = arith.addf %419, %420 : vector<16x32xf32>
    %422 = arith.negf %421 : vector<16x32xf32>
    %423 = math.exp %422 : vector<16x32xf32>
    %cst_164 = arith.constant 1.000000e+00 : f32
    %424 = vector.broadcast %cst_164 : f32 to vector<16x32xf32>
    %425 = arith.addf %424, %423 : vector<16x32xf32>
    %426 = arith.divf %424, %425 : vector<16x32xf32>
    %427 = vector.extract_strided_slice %418 {offsets = [0, 32], sizes = [16, 32], strides = [1, 1]} : vector<16x96xf32> to vector<16x32xf32>
    %428 = vector.extract_strided_slice %416 {offsets = [0, 32], sizes = [16, 32], strides = [1, 1]} : vector<16x96xf32> to vector<16x32xf32>
    %429 = arith.addf %427, %428 : vector<16x32xf32>
    %430 = arith.negf %429 : vector<16x32xf32>
    %431 = math.exp %430 : vector<16x32xf32>
    %cst_165 = arith.constant 1.000000e+00 : f32
    %432 = vector.broadcast %cst_165 : f32 to vector<16x32xf32>
    %433 = arith.addf %432, %431 : vector<16x32xf32>
    %434 = arith.divf %432, %433 : vector<16x32xf32>
    %435 = vector.extract_strided_slice %418 {offsets = [0, 64], sizes = [16, 32], strides = [1, 1]} : vector<16x96xf32> to vector<16x32xf32>
    %436 = vector.extract_strided_slice %416 {offsets = [0, 64], sizes = [16, 32], strides = [1, 1]} : vector<16x96xf32> to vector<16x32xf32>
    %437 = arith.mulf %426, %436 : vector<16x32xf32>
    %438 = arith.addf %435, %437 : vector<16x32xf32>
    %439 = math.tanh %438 : vector<16x32xf32>
    %cst_166 = arith.constant 1.000000e+00 : f32
    %440 = vector.broadcast %cst_166 : f32 to vector<16x32xf32>
    %441 = arith.subf %440, %434 : vector<16x32xf32>
    %442 = arith.mulf %441, %439 : vector<16x32xf32>
    %443 = arith.mulf %434, %413 : vector<16x32xf32>
    %444 = arith.addf %442, %443 : vector<16x32xf32>
    %c0_167 = arith.constant 0 : index
    %c0_168 = arith.constant 0 : index
    %445 = vector.load %arg11[%c0_167, %c0_168] : memref<16x32xf32, #tpu.memory_space<vmem>>, vector<16x32xf32>
    tpu.vector_store %arg11[%c0_167, %c0_168], %444 {strides = array<i32>} : memref<16x32xf32, #tpu.memory_space<vmem>>, vector<16x32xf32>,
    %cst_169 = arith.constant dense<0.000000e+00> : vector<16xf32>
    %446 = vector.multi_reduction <add>, %444, %cst_169 [1] : vector<16x32xf32> to vector<16xf32>
    %447 = vector.shape_cast %446 : vector<16xf32> to vector<16x1xf32>
    %cst_170 = arith.constant 3.200000e+01 : f32
    %448 = vector.broadcast %cst_170 : f32 to vector<16x1xf32>
    %449 = arith.divf %447, %448 : vector<16x1xf32>
    %450 = vector.broadcast %449 : vector<16x1xf32> to vector<16x32xf32>
    %451 = arith.subf %444, %450 : vector<16x32xf32>
    %452 = arith.mulf %451, %451 : vector<16x32xf32>
    %cst_171 = arith.constant dense<0.000000e+00> : vector<16xf32>
    %453 = vector.multi_reduction <add>, %452, %cst_171 [1] : vector<16x32xf32> to vector<16xf32>
    %454 = vector.shape_cast %453 : vector<16xf32> to vector<16x1xf32>
    %cst_172 = arith.constant 3.200000e+01 : f32
    %455 = vector.broadcast %cst_172 : f32 to vector<16x1xf32>
    %456 = arith.divf %454, %455 : vector<16x1xf32>
    %457 = vector.broadcast %449 : vector<16x1xf32> to vector<16x32xf32>
    %458 = arith.subf %444, %457 : vector<16x32xf32>
    %cst_173 = arith.constant 9.99999974E-6 : f32
    %459 = vector.broadcast %cst_173 : f32 to vector<16x1xf32>
    %460 = arith.addf %456, %459 : vector<16x1xf32>
    %461 = math.rsqrt %460 : vector<16x1xf32>
    %462 = vector.broadcast %461 : vector<16x1xf32> to vector<16x32xf32>
    %463 = arith.mulf %458, %462 : vector<16x32xf32>
    %464 = arith.mulf %463, %17 : vector<16x32xf32>
    %465 = arith.addf %464, %20 : vector<16x32xf32>
    %c0_174 = arith.constant 0 : index
    %c7_175 = arith.constant 7 : index
    %c0_176 = arith.constant 0 : index
    %466 = vector.load %arg9[%c0_174, %c7_175, %c0_176] : memref<16x8x32xf32, #tpu.memory_space<vmem>>, vector<16x1x32xf32>
    %467 = vector.shape_cast %466 : vector<16x1x32xf32> to vector<16x32xf32>
    %468 = vector.shape_cast %465 : vector<16x32xf32> to vector<16x1x32xf32>
    tpu.vector_store %arg9[%c0_174, %c7_175, %c0_176], %468 {strides = array<i32>} : memref<16x8x32xf32, #tpu.memory_space<vmem>>, vector<16x1x32xf32>,
    %c0_i32_177 = arith.constant 0 : i32
    %469 = arith.cmpi eq, %arg1, %c0_i32_177 : i32
    %470 = arith.extui %469 : i1 to i32
    %c0_i32_178 = arith.constant 0 : i32
    %471 = arith.cmpi ne, %470, %c0_i32_178 : i32
    scf.if %471 {
      %c0_179 = arith.constant 0 : index
      %c0_180 = arith.constant 0 : index
      %472 = vector.load %arg11[%c0_179, %c0_180] : memref<16x32xf32, #tpu.memory_space<vmem>>, vector<16x32xf32>
      %c0_181 = arith.constant 0 : index
      %c0_182 = arith.constant 0 : index
      %473 = vector.load %arg10[%c0_181, %c0_182] : memref<16x32xf32, #tpu.memory_space<vmem>>, vector<16x32xf32>
      tpu.vector_store %arg10[%c0_181, %c0_182], %472 {strides = array<i32>} : memref<16x32xf32, #tpu.memory_space<vmem>>, vector<16x32xf32>,
    } else {
    }
    return
  }
  func.func @transform_0(%arg0: i32, %arg1: i32) -> (i32, i32, i32) {
    %c0_i32 = arith.constant 0 : i32
    %c0_i32_0 = arith.constant 0 : i32
    return %arg1, %arg0, %c0_i32 : i32, i32, i32
  }
  func.func @transform_1(%arg0: i32, %arg1: i32) -> (i32, i32) {
    %c0_i32 = arith.constant 0 : i32
    %c0_i32_0 = arith.constant 0 : i32
    %c0_i32_1 = arith.constant 0 : i32
    return %c0_i32, %c0_i32_0 : i32, i32
  }
  func.func @transform_2(%arg0: i32, %arg1: i32) -> (i32, i32) {
    %c0_i32 = arith.constant 0 : i32
    %c0_i32_0 = arith.constant 0 : i32
    %c0_i32_1 = arith.constant 0 : i32
    return %c0_i32, %c0_i32_0 : i32, i32
  }
  func.func @transform_3(%arg0: i32, %arg1: i32) -> (i32, i32) {
    %c0_i32 = arith.constant 0 : i32
    %c0_i32_0 = arith.constant 0 : i32
    %c0_i32_1 = arith.constant 0 : i32
    return %c0_i32, %c0_i32_0 : i32, i32
  }
  func.func @transform_4(%arg0: i32, %arg1: i32) -> (i32, i32) {
    %c0_i32 = arith.constant 0 : i32
    %c0_i32_0 = arith.constant 0 : i32
    %c0_i32_1 = arith.constant 0 : i32
    return %c0_i32, %c0_i32_0 : i32, i32
  }
  func.func @transform_5(%arg0: i32, %arg1: i32) -> (i32, i32) {
    %c0_i32 = arith.constant 0 : i32
    %c0_i32_0 = arith.constant 0 : i32
    %c0_i32_1 = arith.constant 0 : i32
    return %c0_i32, %c0_i32_0 : i32, i32
  }
  func.func @transform_6(%arg0: i32, %arg1: i32) -> (i32, i32) {
    %c0_i32 = arith.constant 0 : i32
    %c0_i32_0 = arith.constant 0 : i32
    %c0_i32_1 = arith.constant 0 : i32
    return %c0_i32, %c0_i32_0 : i32, i32
  }
  func.func @transform_7(%arg0: i32, %arg1: i32) -> (i32, i32, i32) {
    %c0_i32 = arith.constant 0 : i32
    %c0_i32_0 = arith.constant 0 : i32
    return %arg0, %arg1, %c0_i32 : i32, i32, i32
  }
  func.func @transform_8(%arg0: i32, %arg1: i32) -> (i32, i32) {
    %c0_i32 = arith.constant 0 : i32
    %c0_i32_0 = arith.constant 0 : i32
    return %arg0, %c0_i32 : i32, i32
  }
}

module attributes {stable_mosaic.version = 11 : i64} {
  func.func @cls_kernel(%arg0: i32, %arg1: i32, %arg2: memref<16x32xf32, #tpu.memory_space<vmem>>, %arg3: memref<32x128xf32, #tpu.memory_space<vmem>>, %arg4: memref<1x128xf32, #tpu.memory_space<vmem>>, %arg5: memref<16x128xf32, #tpu.memory_space<vmem>>) attributes {dimension_semantics = [#tpu.dimension_semantics<parallel>, #tpu.dimension_semantics<parallel>], iteration_bounds = array<i64: 1, 1>, scalar_prefetch = 0 : i64, scratch_operands = 0 : i64, tpu.core_type = #tpu.core_type<tc>, window_params = [{transform_indices = @transform_0, window_bounds = array<i64: 16, 32>}, {transform_indices = @transform_1, window_bounds = array<i64: 32, 128>}, {transform_indices = @transform_2, window_bounds = array<i64: 1, 128>}, {transform_indices = @transform_3, window_bounds = array<i64: 16, 128>}]} {
    %c0 = arith.constant 0 : index
    %c0_0 = arith.constant 0 : index
    %0 = vector.load %arg2[%c0, %c0_0] : memref<16x32xf32, #tpu.memory_space<vmem>>, vector<16x32xf32>
    %c0_1 = arith.constant 0 : index
    %c0_2 = arith.constant 0 : index
    %1 = vector.load %arg3[%c0_1, %c0_2] : memref<32x128xf32, #tpu.memory_space<vmem>>, vector<32x128xf32>
    %cst = arith.constant dense<0.000000e+00> : vector<16x128xf32>
    %2 = tpu.matmul %0, %1, %cst {dimension_numbers = #tpu.dot_dimension_numbers<[1], [0], [0], [1], [0, 0, 1, 1], [], []>} : vector<16x32xf32>, vector<32x128xf32>, vector<16x128xf32> -> vector<16x128xf32>
    %c0_3 = arith.constant 0 : index
    %c0_4 = arith.constant 0 : index
    %3 = vector.load %arg4[%c0_3, %c0_4] : memref<1x128xf32, #tpu.memory_space<vmem>>, vector<1x128xf32>
    %4 = vector.broadcast %3 : vector<1x128xf32> to vector<16x128xf32>
    %5 = arith.addf %2, %4 : vector<16x128xf32>
    %c0_5 = arith.constant 0 : index
    %c0_6 = arith.constant 0 : index
    %6 = vector.load %arg5[%c0_5, %c0_6] : memref<16x128xf32, #tpu.memory_space<vmem>>, vector<16x128xf32>
    tpu.vector_store %arg5[%c0_5, %c0_6], %5 {strides = array<i32>} : memref<16x128xf32, #tpu.memory_space<vmem>>, vector<16x128xf32>,
    return
  }
  func.func @transform_0(%arg0: i32, %arg1: i32) -> (i32, i32) {
    %c0_i32 = arith.constant 0 : i32
    %c0_i32_0 = arith.constant 0 : i32
    return %arg1, %c0_i32 : i32, i32
  }
  func.func @transform_1(%arg0: i32, %arg1: i32) -> (i32, i32) {
    %c0_i32 = arith.constant 0 : i32
    %c0_i32_0 = arith.constant 0 : i32
    return %c0_i32, %arg0 : i32, i32
  }
  func.func @transform_2(%arg0: i32, %arg1: i32) -> (i32, i32) {
    %c0_i32 = arith.constant 0 : i32
    %c0_i32_0 = arith.constant 0 : i32
    return %c0_i32, %arg0 : i32, i32
  }
  func.func @transform_3(%arg0: i32, %arg1: i32) -> (i32, i32) {
    %c0_i32 = arith.constant 0 : i32
    return %arg1, %arg0 : i32, i32
  }
}

</mosaic_0001>

<llo_original>
// kernel: _lambda_.3
$region0: #{_lambda_.3}
  #allocation0 [shape = 'u32[]', space=smem, size = 0x4, offset = 0x4, fixed_abs, tag = 'smem constant byte address 0x4 - core index']
  #allocation1 [shape = 'u32[144,128]{1,0:T(1,128)}', space=vmem, size = 0x12000, scoped, tag = 'internal scratch']
  %s0 = inlined_call_operand.vmem [shape: f32[16,32], index: 0, kind: input, shape index: {}]
  %s1 = inlined_call_operand.vmem [shape: f32[32,128], index: 1, kind: input, shape index: {}]
  %s2 = inlined_call_operand.vmem [shape: f32[1,128], index: 2, kind: input, shape index: {}]
  %s3 = inlined_call_operand.vmem [shape: f32[16,128], index: 3, kind: output, shape index: {}]
  %s4 = sld [smem:[#allocation0]]
  $region22: #{_lambda_.3} parent=0
    _
  %s6 = ssub.s32 1, %s4
  %s7 = scalar_select 0, %s6, %s4
  // Predicated region
  $region2: #{_lambda_.3} parent=0 // pred_check
    _
  $region3: #{_lambda_.3} parent=0 // pred_check_branch
    %9 = sbr.rel (0) target = $region5
  $region4: #{_lambda_.3} parent=0 // pred_region
    _
  $region5: #{_lambda_.3} parent=0 // pred_fallthru
    _
  // Predicated region
  $region6: #{_lambda_.3} parent=0 // pred_check
    _
  $region7: #{_lambda_.3} parent=0 // pred_check_branch
    %11 = sbr.rel (0) target = $region9
  $region8: #{_lambda_.3} parent=0 // pred_region
    _
  $region9: #{_lambda_.3} parent=0 // pred_fallthru
    _
  // Predicated region
  $region10: #{_lambda_.3} parent=0 // pred_check
    _
  $region11: #{_lambda_.3} parent=0 // pred_check_branch
    %13 = sbr.rel (0) target = $region13
  $region12: #{_lambda_.3} parent=0 // pred_region
    _
  $region13: #{_lambda_.3} parent=0 // pred_fallthru
    _
  %v14 = vld [vmem:[%s0] sm:$0xff]
  %v15 = vld [vmem:[%s0 + $0x8] sm:$0xff]
  %v16 = vld [vmem:[%s1] sm:$0xff]
  %v17 = vld [vmem:[%s1 + $0x8] sm:$0xff]
  %v18 = vld [vmem:[%s1 + $0x10] sm:$0xff]
  %v19 = vld [vmem:[%s1 + $0x18] sm:$0xff]
  %v20 = vld [vmem:[%s2] sm:$0x1]
  %v22 = vlaneseq
  %v23 = vshrl.u32 %v22, 7
  %v24 = vsub.s32 0, %v23
  %v25 = vrot.slane %v20, %v24
  %vm27 = vcmask 261120
  %v29 = vsel %vm27, %v14, 0
  %v32 = vsel %vm27, %v15, 0
  %34 = vmatprep.subr.mxu0 0.0
  %35 = vmatpush1.msra.mxu0 0.0
  %36 = vmatprep.subr.mxu0 0.0
  %37 = vmatpush1.msra.mxu0 0.0
  %38 = vmatprep.subr.mxu0 0.0
  %39 = vmatpush1.msra.mxu0 0.0
  %40 = vmatprep.subr.mxu0 0.0
  %41 = vmatpush1.msra.mxu0 0.0
  %42 = vmatprep.subr.mxu0 0.0
  %43 = vmatpush1.msra.mxu0 0.0
  %44 = vmatprep.subr.mxu0 0.0
  %45 = vmatpush1.msra.mxu0 0.0
  %46 = vmatprep.subr.mxu0 0.0
  %47 = vmatpush1.msra.mxu0 0.0
  %48 = vmatprep.subr.mxu0 0.0
  %49 = vmatpush1.msra.mxu0 0.0
  %50 = vmatprep.subr.mxu0 0.0
  %51 = vmatpush1.msra.mxu0 0.0
  %52 = vmatprep.subr.mxu0 0.0
  %53 = vmatpush1.msra.mxu0 0.0
  %54 = vmatprep.subr.mxu0 0.0
  %55 = vmatpush1.msra.mxu0 0.0
  %56 = vmatprep.subr.mxu0 0.0
  %57 = vmatpush1.msra.mxu0 0.0
  %58 = vmatprep.subr.mxu0 0.0
  %59 = vmatpush1.msra.mxu0 %v19
  %60 = vmatprep.subr.mxu0 0.0
  %61 = vmatpush1.msra.mxu0 %v18
  %62 = vmatprep.subr.mxu0 0.0
  %63 = vmatpush1.msra.mxu0 %v17
  %64 = vmatprep.subr.mxu0 0.0
  %65 = vmatpush1.msra.mxu0 %v16
  %66 = vmatprep.subr.mxu0 0.0
  %67 = vmatpush2.msra.mxu0 0.0
  %68 = vmatprep.subr.mxu0 0.0
  %69 = vmatpush2.msra.mxu0 0.0
  %70 = vmatprep.subr.mxu0 0.0
  %71 = vmatpush2.msra.mxu0 0.0
  %72 = vmatprep.subr.mxu0 0.0
  %73 = vmatpush2.msra.mxu0 0.0
  %74 = vmatprep.subr.mxu0 0.0
  %75 = vmatpush2.msra.mxu0 0.0
  %76 = vmatprep.subr.mxu0 0.0
  %77 = vmatpush2.msra.mxu0 0.0
  %78 = vmatprep.subr.mxu0 0.0
  %79 = vmatpush2.msra.mxu0 0.0
  %80 = vmatprep.subr.mxu0 0.0
  %81 = vmatpush2.msra.mxu0 0.0
  %82 = vmatprep.subr.mxu0 0.0
  %83 = vmatpush2.msra.mxu0 0.0
  %84 = vmatprep.subr.mxu0 0.0
  %85 = vmatpush2.msra.mxu0 0.0
  %86 = vmatprep.subr.mxu0 0.0
  %87 = vmatpush2.msra.mxu0 0.0
  %88 = vmatprep.subr.mxu0 0.0
  %89 = vmatpush2.msra.mxu0 0.0
  %90 = vmatprep.subr.mxu0 0.0
  %91 = vmatpush2.msra.mxu0 0.0
  %92 = vmatprep.subr.mxu0 0.0
  %93 = vmatpush2.msra.mxu0 0.0
  %94 = vmatprep.subr.mxu0 0.0
  %95 = vmatpush2.msra.mxu0 0.0
  %96 = vmatprep.subr.mxu0 0.0
  %97 = vmatpush2.msra.mxu0 0.0
  %98 = vmatprep.mubr.f32.mxu0 0.0
  %99 = vmatmul.mubr.f32.gmra.mxu0 %v29
  %v100 = vpop.f32.mrf.mxu0
  %v101 = vadd.f32 %v25, %v100
  %v102 = vpop.f32.mrf.mxu0
  %103 = vmatprep.mubr.f32.mxu0 0.0
  %104 = vmatmul.mubr.f32.gmra.mxu0 %v32
  %v105 = vpop.f32.mrf.mxu0
  %v106 = vadd.f32 %v25, %v105
  %v107 = vpop.f32.mrf.mxu0
  %108 = vdwg.mxu0
  %109 = vst [vmem:[%s3] sm:$0xff] %v101
  %110 = vst [vmem:[%s3 + $0x8] sm:$0xff] %v106
  // Predicated region
  $region14: #{_lambda_.3} parent=0 // pred_check
    _
  $region15: #{_lambda_.3} parent=0 // pred_check_branch
    %112 = sbr.rel (0) target = $region17
  $region16: #{_lambda_.3} parent=0 // pred_region
    _
  $region17: #{_lambda_.3} parent=0 // pred_fallthru
    _
  // Predicated region
  $region18: #{_lambda_.3} parent=0 // pred_check
    _
  $region19: #{_lambda_.3} parent=0 // pred_check_branch
    %114 = sbr.rel (0) target = $region21
  $region20: #{_lambda_.3} parent=0 // pred_region
    _
  $region21: #{_lambda_.3} parent=0 // pred_fallthru
    _

// kernel: _lambda_.2
$region0: #{_lambda_.2}
  #allocation0 [shape = 'u32[]', space=smem, size = 0x4, offset = 0x4, fixed_abs, tag = 'smem constant byte address 0x4 - core index']
  #allocation1 [shape = 'u32[144,128]{1,0:T(1,128)}', space=vmem, size = 0x12000, scoped, tag = 'internal scratch']
  #allocation2 [shape = 'f32[16,32]{1,0:T(8,128)}', space=vmem, size = 0x2000, scoped, tag = 'scratch operand']
  #allocation3 [shape = 'f32[8,16,96]{2,1,0:T(8,128)}', space=vmem, size = 0x10000, scoped, tag = 'scratch operand']
  %s0 = inlined_call_operand.vmem [shape: f32[8,16,16], index: 0, kind: input, shape index: {}]
  %s1 = inlined_call_operand.vmem [shape: f32[16,96], index: 1, kind: input, shape index: {}]
  %s2 = inlined_call_operand.vmem [shape: f32[32,96], index: 2, kind: input, shape index: {}]
  %s3 = inlined_call_operand.vmem [shape: f32[1,96], index: 3, kind: input, shape index: {}]
  %s4 = inlined_call_operand.vmem [shape: f32[1,96], index: 4, kind: input, shape index: {}]
  %s5 = inlined_call_operand.vmem [shape: f32[1,32], index: 5, kind: input, shape index: {}]
  %s6 = inlined_call_operand.vmem [shape: f32[1,32], index: 6, kind: input, shape index: {}]
  %s7 = inlined_call_operand.vmem [shape: f32[16,8,32], index: 7, kind: output, shape index: {0}]
  %s8 = inlined_call_operand.vmem [shape: f32[16,32], index: 8, kind: output, shape index: {1}]
  %9 = xla_tuple %s7, %s8
  %s10 = sld [smem:[#allocation0]]
  $region54: #{_lambda_.2} parent=0
    _
  %s12 = ssub.s32 1, %s10
  %s13 = scalar_select 0, %s12, %s10
  // Predicated region
  $region2: #{_lambda_.2} parent=0 // pred_check
    _
  $region3: #{_lambda_.2} parent=0 // pred_check_branch
    %15 = sbr.rel (0) target = $region5
  $region4: #{_lambda_.2} parent=0 // pred_region
    _
  $region5: #{_lambda_.2} parent=0 // pred_fallthru
    _
  // Predicated region
  $region6: #{_lambda_.2} parent=0 // pred_check
    _
  $region7: #{_lambda_.2} parent=0 // pred_check_branch
    %17 = sbr.rel (0) target = $region9
  $region8: #{_lambda_.2} parent=0 // pred_region
    _
  $region9: #{_lambda_.2} parent=0 // pred_fallthru
    _
  // Predicated region
  $region10: #{_lambda_.2} parent=0 // pred_check
    _
  $region11: #{_lambda_.2} parent=0 // pred_check_branch
    %19 = sbr.rel (0) target = $region13
  $region12: #{_lambda_.2} parent=0 // pred_region
    _
  $region13: #{_lambda_.2} parent=0 // pred_fallthru
    _
  // Predicated region
  $region14: #{_lambda_.2} parent=0 // pred_check
    _
  $region15: #{_lambda_.2} parent=0 // pred_check_branch
    %21 = sbr.rel (0) target = $region17
  $region16: #{_lambda_.2} parent=0 // pred_region
    _
  $region17: #{_lambda_.2} parent=0 // pred_fallthru
    _
  // Predicated region
  $region18: #{_lambda_.2} parent=0 // pred_check
    _
  $region19: #{_lambda_.2} parent=0 // pred_check_branch
    %23 = sbr.rel (0) target = $region21
  $region20: #{_lambda_.2} parent=0 // pred_region
    _
  $region21: #{_lambda_.2} parent=0 // pred_fallthru
    _
  // Predicated region
  $region22: #{_lambda_.2} parent=0 // pred_check
    _
  $region23: #{_lambda_.2} parent=0 // pred_check_branch
    %25 = sbr.rel (0) target = $region25
  $region24: #{_lambda_.2} parent=0 // pred_region
    _
  $region25: #{_lambda_.2} parent=0 // pred_fallthru
    _
  // Predicated region
  $region26: #{_lambda_.2} parent=0 // pred_check
    _
  $region27: #{_lambda_.2} parent=0 // pred_check_branch
    %27 = sbr.rel (0) target = $region29
  $region28: #{_lambda_.2} parent=0 // pred_region
    _
  $region29: #{_lambda_.2} parent=0 // pred_fallthru
    _
  %p28 = scmp.eq.s32.totalorder 0, 0
  // Predicated region
  $region30: #{_lambda_.2} parent=0 // pred_check
    %p29 = pneg %p28
  $region31: #{_lambda_.2} parent=0 // pred_check_branch
    %31 = sbr.rel (%p29) target = $region33
  $region32: #{_lambda_.2} parent=0 // pred_region
    %vm32 = vcmask 261120
    %33 = vst.msk [vmem:[#allocation2] sm:$0xff] %vm32, 0.0
    %34 = vst.msk [vmem:[#allocation2 + $0x8] sm:$0xff] %vm32, 0.0
  $region33: #{_lambda_.2} parent=0 // pred_fallthru
    _
  %v35 = vld [vmem:[%s0] sm:$0xff]
  %v36 = vld [vmem:[%s0 + $0x8] sm:$0xff]
  %v37 = vld [vmem:[%s0 + $0x10] sm:$0xff]
  %v38 = vld [vmem:[%s0 + $0x18] sm:$0xff]
  %v39 = vld [vmem:[%s0 + $0x20] sm:$0xff]
  %v40 = vld [vmem:[%s0 + $0x28] sm:$0xff]
  %v41 = vld [vmem:[%s0 + $0x30] sm:$0xff]
  %v42 = vld [vmem:[%s0 + $0x38] sm:$0xff]
  %v43 = vld [vmem:[%s0 + $0x40] sm:$0xff]
  %v44 = vld [vmem:[%s0 + $0x48] sm:$0xff]
  %v45 = vld [vmem:[%s0 + $0x50] sm:$0xff]
  %v46 = vld [vmem:[%s0 + $0x58] sm:$0xff]
  %v47 = vld [vmem:[%s0 + $0x60] sm:$0xff]
  %v48 = vld [vmem:[%s0 + $0x68] sm:$0xff]
  %v49 = vld [vmem:[%s0 + $0x70] sm:$0xff]
  %v50 = vld [vmem:[%s0 + $0x78] sm:$0xff]
  %v51 = vld [vmem:[%s1] sm:$0xff]
  %v52 = vld [vmem:[%s1 + $0x8] sm:$0xff]
  %v53 = vld [vmem:[%s3] sm:$0x1]
  %v55 = vlaneseq
  %v56 = vshrl.u32 %v55, 7
  %v57 = vsub.s32 0, %v56
  %v58 = vrot.slane %v53, %v57
  %vm60 = vcmask 130048
  %v62 = vsel %vm60, %v35, 0
  %v65 = vsel %vm60, %v36, 0
  %v68 = vsel %vm60, %v37, 0
  %v71 = vsel %vm60, %v38, 0
  %v74 = vsel %vm60, %v39, 0
  %v77 = vsel %vm60, %v40, 0
  %v80 = vsel %vm60, %v41, 0
  %v83 = vsel %vm60, %v42, 0
  %v86 = vsel %vm60, %v43, 0
  %v89 = vsel %vm60, %v44, 0
  %v92 = vsel %vm60, %v45, 0
  %v95 = vsel %vm60, %v46, 0
  %v98 = vsel %vm60, %v47, 0
  %v101 = vsel %vm60, %v48, 0
  %v104 = vsel %vm60, %v49, 0
  %v107 = vsel %vm60, %v50, 0
  %109 = vmatprep.subr.mxu0 0.0
  %110 = vmatpush1.msra.mxu0 0.0
  %111 = vmatprep.subr.mxu0 0.0
  %112 = vmatpush1.msra.mxu0 0.0
  %113 = vmatprep.subr.mxu0 0.0
  %114 = vmatpush1.msra.mxu0 0.0
  %115 = vmatprep.subr.mxu0 0.0
  %116 = vmatpush1.msra.mxu0 0.0
  %117 = vmatprep.subr.mxu0 0.0
  %118 = vmatpush1.msra.mxu0 0.0
  %119 = vmatprep.subr.mxu0 0.0
  %120 = vmatpush1.msra.mxu0 0.0
  %121 = vmatprep.subr.mxu0 0.0
  %122 = vmatpush1.msra.mxu0 0.0
  %123 = vmatprep.subr.mxu0 0.0
  %124 = vmatpush1.msra.mxu0 0.0
  %125 = vmatprep.subr.mxu0 0.0
  %126 = vmatpush1.msra.mxu0 0.0
  %127 = vmatprep.subr.mxu0 0.0
  %128 = vmatpush1.msra.mxu0 0.0
  %129 = vmatprep.subr.mxu0 0.0
  %130 = vmatpush1.msra.mxu0 0.0
  %131 = vmatprep.subr.mxu0 0.0
  %132 = vmatpush1.msra.mxu0 0.0
  %133 = vmatprep.subr.mxu0 0.0
  %134 = vmatpush1.msra.mxu0 0.0
  %135 = vmatprep.subr.mxu0 0.0
  %136 = vmatpush1.msra.mxu0 0.0
  %137 = vmatprep.subr.mxu0 0.0
  %138 = vmatpush1.msra.mxu0 %v52
  %139 = vmatprep.subr.mxu0 0.0
  %140 = vmatpush1.msra.mxu0 %v51
  %141 = vmatprep.subr.mxu0 0.0
  %142 = vmatpush2.msra.mxu0 0.0
  %143 = vmatprep.subr.mxu0 0.0
  %144 = vmatpush2.msra.mxu0 0.0
  %145 = vmatprep.subr.mxu0 0.0
  %146 = vmatpush2.msra.mxu0 0.0
  %147 = vmatprep.subr.mxu0 0.0
  %148 = vmatpush2.msra.mxu0 0.0
  %149 = vmatprep.subr.mxu0 0.0
  %150 = vmatpush2.msra.mxu0 0.0
  %151 = vmatprep.subr.mxu0 0.0
  %152 = vmatpush2.msra.mxu0 0.0
  %153 = vmatprep.subr.mxu0 0.0
  %154 = vmatpush2.msra.mxu0 0.0
  %155 = vmatprep.subr.mxu0 0.0
  %156 = vmatpush2.msra.mxu0 0.0
  %157 = vmatprep.subr.mxu0 0.0
  %158 = vmatpush2.msra.mxu0 0.0
  %159 = vmatprep.subr.mxu0 0.0
  %160 = vmatpush2.msra.mxu0 0.0
  %161 = vmatprep.subr.mxu0 0.0
  %162 = vmatpush2.msra.mxu0 0.0
  %163 = vmatprep.subr.mxu0 0.0
  %164 = vmatpush2.msra.mxu0 0.0
  %165 = vmatprep.subr.mxu0 0.0
  %166 = vmatpush2.msra.mxu0 0.0
  %167 = vmatprep.subr.mxu0 0.0
  %168 = vmatpush2.msra.mxu0 0.0
  %169 = vmatprep.subr.mxu0 0.0
  %170 = vmatpush2.msra.mxu0 0.0
  %171 = vmatprep.subr.mxu0 0.0
  %172 = vmatpush2.msra.mxu0 0.0
  %173 = vmatprep.mubr.f32.mxu0 0.0
  %174 = vmatmul.mubr.f32.gmra.mxu0 %v62
  %v175 = vpop.f32.mrf.mxu0
  %v176 = vadd.f32 %v58, %v175
  %v177 = vpop.f32.mrf.mxu0
  %178 = vmatprep.mubr.f32.mxu0 0.0
  %179 = vmatmul.mubr.f32.gmra.mxu0 %v65
  %v180 = vpop.f32.mrf.mxu0
  %v181 = vadd.f32 %v58, %v180
  %v182 = vpop.f32.mrf.mxu0
  %183 = vmatprep.mubr.f32.mxu0 0.0
  %184 = vmatmul.mubr.f32.gmra.mxu0 %v68
  %v185 = vpop.f32.mrf.mxu0
  %v186 = vadd.f32 %v58, %v185
  %v187 = vpop.f32.mrf.mxu0
  %188 = vmatprep.mubr.f32.mxu0 0.0
  %189 = vmatmul.mubr.f32.gmra.mxu0 %v71
  %v190 = vpop.f32.mrf.mxu0
  %v191 = vadd.f32 %v58, %v190
  %v192 = vpop.f32.mrf.mxu0
  %193 = vmatprep.mubr.f32.mxu0 0.0
  %194 = vmatmul.mubr.f32.gmra.mxu0 %v74
  %v195 = vpop.f32.mrf.mxu0
  %v196 = vadd.f32 %v58, %v195
  %v197 = vpop.f32.mrf.mxu0
  %198 = vmatprep.mubr.f32.mxu0 0.0
  %199 = vmatmul.mubr.f32.gmra.mxu0 %v77
  %v200 = vpop.f32.mrf.mxu0
  %v201 = vadd.f32 %v58, %v200
  %v202 = vpop.f32.mrf.mxu0
  %203 = vmatprep.mubr.f32.mxu0 0.0
  %204 = vmatmul.mubr.f32.gmra.mxu0 %v80
  %v205 = vpop.f32.mrf.mxu0
  %v206 = vadd.f32 %v58, %v205
  %v207 = vpop.f32.mrf.mxu0
  %208 = vmatprep.mubr.f32.mxu0 0.0
  %209 = vmatmul.mubr.f32.gmra.mxu0 %v83
  %v210 = vpop.f32.mrf.mxu0
  %v211 = vadd.f32 %v58, %v210
  %v212 = vpop.f32.mrf.mxu0
  %213 = vmatprep.mubr.f32.mxu0 0.0
  %214 = vmatmul.mubr.f32.gmra.mxu0 %v86
  %v215 = vpop.f32.mrf.mxu0
  %v216 = vadd.f32 %v58, %v215
  %v217 = vpop.f32.mrf.mxu0
  %218 = vmatprep.mubr.f32.mxu0 0.0
  %219 = vmatmul.mubr.f32.gmra.mxu0 %v89
  %v220 = vpop.f32.mrf.mxu0
  %v221 = vadd.f32 %v58, %v220
  %v222 = vpop.f32.mrf.mxu0
  %223 = vmatprep.mubr.f32.mxu0 0.0
  %224 = vmatmul.mubr.f32.gmra.mxu0 %v92
  %v225 = vpop.f32.mrf.mxu0
  %v226 = vadd.f32 %v58, %v225
  %v227 = vpop.f32.mrf.mxu0
  %228 = vmatprep.mubr.f32.mxu0 0.0
  %229 = vmatmul.mubr.f32.gmra.mxu0 %v95
  %v230 = vpop.f32.mrf.mxu0
  %v231 = vadd.f32 %v58, %v230
  %v232 = vpop.f32.mrf.mxu0
  %233 = vmatprep.mubr.f32.mxu0 0.0
  %234 = vmatmul.mubr.f32.gmra.mxu0 %v98
  %v235 = vpop.f32.mrf.mxu0
  %v236 = vadd.f32 %v58, %v235
  %v237 = vpop.f32.mrf.mxu0
  %238 = vmatprep.mubr.f32.mxu0 0.0
  %239 = vmatmul.mubr.f32.gmra.mxu0 %v101
  %v240 = vpop.f32.mrf.mxu0
  %v241 = vadd.f32 %v58, %v240
  %v242 = vpop.f32.mrf.mxu0
  %243 = vmatprep.mubr.f32.mxu0 0.0
  %244 = vmatmul.mubr.f32.gmra.mxu0 %v104
  %v245 = vpop.f32.mrf.mxu0
  %v246 = vadd.f32 %v58, %v245
  %v247 = vpop.f32.mrf.mxu0
  %248 = vmatprep.mubr.f32.mxu0 0.0
  %249 = vmatmul.mubr.f32.gmra.mxu0 %v107
  %v250 = vpop.f32.mrf.mxu0
  %v251 = vadd.f32 %v58, %v250
  %v252 = vpop.f32.mrf.mxu0
  %253 = vdwg.mxu0
  %vm254 = vcmask 785408
  %255 = vst.msk [vmem:[#allocation3] sm:$0xff] %vm254, %v176
  %256 = vst.msk [vmem:[#allocation3 + $0x8] sm:$0xff] %vm254, %v181
  %257 = vst.msk [vmem:[#allocation3 + $0x10] sm:$0xff] %vm254, %v186
  %258 = vst.msk [vmem:[#allocation3 + $0x18] sm:$0xff] %vm254, %v191
  %259 = vst.msk [vmem:[#allocation3 + $0x20] sm:$0xff] %vm254, %v196
  %260 = vst.msk [vmem:[#allocation3 + $0x28] sm:$0xff] %vm254, %v201
  %261 = vst.msk [vmem:[#allocation3 + $0x30] sm:$0xff] %vm254, %v206
  %262 = vst.msk [vmem:[#allocation3 + $0x38] sm:$0xff] %vm254, %v211
  %263 = vst.msk [vmem:[#allocation3 + $0x40] sm:$0xff] %vm254, %v216
  %264 = vst.msk [vmem:[#allocation3 + $0x48] sm:$0xff] %vm254, %v221
  %265 = vst.msk [vmem:[#allocation3 + $0x50] sm:$0xff] %vm254, %v226
  %266 = vst.msk [vmem:[#allocation3 + $0x58] sm:$0xff] %vm254, %v231
  %267 = vst.msk [vmem:[#allocation3 + $0x60] sm:$0xff] %vm254, %v236
  %268 = vst.msk [vmem:[#allocation3 + $0x68] sm:$0xff] %vm254, %v241
  %269 = vst.msk [vmem:[#allocation3 + $0x70] sm:$0xff] %vm254, %v246
  %270 = vst.msk [vmem:[#allocation3 + $0x78] sm:$0xff] %vm254, %v251
  %v271 = vld [vmem:[%s4] sm:$0x1]
  %v273 = vlaneseq
  %v274 = vshrl.u32 %v273, 7
  %v275 = vsub.s32 0, %v274
  %v276 = vrot.slane %v271, %v275
  %v278 = vld [vmem:[%s5] sm:$0x1]
  %v280 = vlaneseq
  %v281 = vshrl.u32 %v280, 7
  %v282 = vsub.s32 0, %v281
  %v283 = vrot.slane %v278, %v282
  %v284 = vld [vmem:[%s6] sm:$0x1]
  %v286 = vlaneseq
  %v287 = vshrl.u32 %v286, 7
  %v288 = vsub.s32 0, %v287
  %v289 = vrot.slane %v284, %v288
  %v290 = vld [vmem:[#allocation2] sm:$0xff]
  %v291 = vld [vmem:[#allocation2 + $0x8] sm:$0xff]
  %v292 = vld [vmem:[%s2] sm:$0xff]
  %v293 = vld [vmem:[%s2 + $0x8] sm:$0xff]
  %v294 = vld [vmem:[%s2 + $0x10] sm:$0xff]
  %v295 = vld [vmem:[%s2 + $0x18] sm:$0xff]
  %vm296 = vcmask 261120
  %v298 = vsel %vm296, %v290, 0
  %v301 = vsel %vm296, %v291, 0
  %303 = vmatprep.subr.mxu0 0.0
  %304 = vmatpush1.msra.mxu0 0.0
  %305 = vmatprep.subr.mxu0 0.0
  %306 = vmatpush1.msra.mxu0 0.0
  %307 = vmatprep.subr.mxu0 0.0
  %308 = vmatpush1.msra.mxu0 0.0
  %309 = vmatprep.subr.mxu0 0.0
  %310 = vmatpush1.msra.mxu0 0.0
  %311 = vmatprep.subr.mxu0 0.0
  %312 = vmatpush1.msra.mxu0 0.0
  %313 = vmatprep.subr.mxu0 0.0
  %314 = vmatpush1.msra.mxu0 0.0
  %315 = vmatprep.subr.mxu0 0.0
  %316 = vmatpush1.msra.mxu0 0.0
  %317 = vmatprep.subr.mxu0 0.0
  %318 = vmatpush1.msra.mxu0 0.0
  %319 = vmatprep.subr.mxu0 0.0
  %320 = vmatpush1.msra.mxu0 0.0
  %321 = vmatprep.subr.mxu0 0.0
  %322 = vmatpush1.msra.mxu0 0.0
  %323 = vmatprep.subr.mxu0 0.0
  %324 = vmatpush1.msra.mxu0 0.0
  %325 = vmatprep.subr.mxu0 0.0
  %326 = vmatpush1.msra.mxu0 0.0
  %327 = vmatprep.subr.mxu0 0.0
  %328 = vmatpush1.msra.mxu0 %v295
  %329 = vmatprep.subr.mxu0 0.0
  %330 = vmatpush1.msra.mxu0 %v294
  %331 = vmatprep.subr.mxu0 0.0
  %332 = vmatpush1.msra.mxu0 %v293
  %333 = vmatprep.subr.mxu0 0.0
  %334 = vmatpush1.msra.mxu0 %v292
  %335 = vmatprep.subr.mxu0 0.0
  %336 = vmatpush2.msra.mxu0 0.0
  %337 = vmatprep.subr.mxu0 0.0
  %338 = vmatpush2.msra.mxu0 0.0
  %339 = vmatprep.subr.mxu0 0.0
  %340 = vmatpush2.msra.mxu0 0.0
  %341 = vmatprep.subr.mxu0 0.0
  %342 = vmatpush2.msra.mxu0 0.0
  %343 = vmatprep.subr.mxu0 0.0
  %344 = vmatpush2.msra.mxu0 0.0
  %345 = vmatprep.subr.mxu0 0.0
  %346 = vmatpush2.msra.mxu0 0.0
  %347 = vmatprep.subr.mxu0 0.0
  %348 = vmatpush2.msra.mxu0 0.0
  %349 = vmatprep.subr.mxu0 0.0
  %350 = vmatpush2.msra.mxu0 0.0
  %351 = vmatprep.subr.mxu0 0.0
  %352 = vmatpush2.msra.mxu0 0.0
  %353 = vmatprep.subr.mxu0 0.0
  %354 = vmatpush2.msra.mxu0 0.0
  %355 = vmatprep.subr.mxu0 0.0
  %356 = vmatpush2.msra.mxu0 0.0
  %357 = vmatprep.subr.mxu0 0.0
  %358 = vmatpush2.msra.mxu0 0.0
  %359 = vmatprep.subr.mxu0 0.0
  %360 = vmatpush2.msra.mxu0 0.0
  %361 = vmatprep.subr.mxu0 0.0
  %362 = vmatpush2.msra.mxu0 0.0
  %363 = vmatprep.subr.mxu0 0.0
  %364 = vmatpush2.msra.mxu0 0.0
  %365 = vmatprep.subr.mxu0 0.0
  %366 = vmatpush2.msra.mxu0 0.0
  %367 = vmatprep.mubr.f32.mxu0 0.0
  %368 = vmatmul.mubr.f32.gmra.mxu0 %v298
  %v369 = vpop.f32.mrf.mxu0
  %v370 = vadd.f32 %v276, %v369
  %v371 = vpop.f32.mrf.mxu0
  %372 = vmatprep.mubr.f32.mxu0 0.0
  %373 = vmatmul.mubr.f32.gmra.mxu0 %v301
  %v374 = vpop.f32.mrf.mxu0
  %v375 = vadd.f32 %v276, %v374
  %v376 = vpop.f32.mrf.mxu0
  %377 = vdwg.mxu0
  %v378 = vld [vmem:[#allocation3] sm:$0xff]
  %v379 = vld [vmem:[#allocation3 + $0x8] sm:$0xff]
  %v380 = vadd.f32 %v378, %v370
  %v381 = vadd.f32 %v379, %v375
  %v382 = vxor.u32 %v380, 2147483648
  %v383 = vxor.u32 %v381, 2147483648
  %v384 = vmul.f32 %v382, 1.442695
  %v385 = vpow.pop %v384
  %v386 = vmul.f32 %v383, 1.442695
  %v387 = vpow.pop %v386
  %v388 = vadd.f32 %v385, 1.0
  %v389 = vadd.f32 %v387, 1.0
  %v390 = vrcp.pop %v388
  %v391 = vmul.f32 1.0, %v390
  %v392 = vrcp.pop %v389
  %v393 = vmul.f32 1.0, %v392
  %396 = vrot.lane.b32.xlu0 %v370, 64
  %v397 = vpop.permute.xlu0 %396
  %398 = vrot.lane.b32.xlu0 %v375, 64
  %v399 = vpop.permute.xlu0 %398
  %v402 = vmul.f32 %v391, %v397
  %v403 = vmul.f32 %v393, %v399
  %406 = vrot.lane.b32.xlu0 %v402, 64
  %v407 = vpop.permute.xlu0 %406
  %408 = vrot.lane.b32.xlu0 %v403, 64
  %v409 = vpop.permute.xlu0 %408
  %v412 = vadd.f32 %v378, %v407
  %v413 = vadd.f32 %v379, %v409
  %v414 = vtanh.pop %v412
  %v415 = vtanh.pop %v413
  %v416 = vsub.f32 1.0, %v391
  %v417 = vsub.f32 1.0, %v393
  %420 = vrot.lane.b32.xlu0 %v414, 96
  %v421 = vpop.permute.xlu0 %420
  %422 = vrot.lane.b32.xlu0 %v415, 96
  %v423 = vpop.permute.xlu0 %422
  %v426 = vmul.f32 %v416, %v421
  %v427 = vmul.f32 %v417, %v423
  %428 = vrot.lane.b32.xlu0 %v290, 32
  %v429 = vpop.permute.xlu0 %428
  %430 = vrot.lane.b32.xlu0 %v291, 32
  %v431 = vpop.permute.xlu0 %430
  %v434 = vmul.f32 %v391, %v429
  %v435 = vmul.f32 %v393, %v431
  %v436 = vadd.f32 %v426, %v434
  %v437 = vadd.f32 %v427, %v435
  %440 = vrot.lane.b32.xlu0 %v436, 96
  %v441 = vpop.permute.xlu0 %440
  %442 = vrot.lane.b32.xlu0 %v437, 96
  %v443 = vpop.permute.xlu0 %442
  %446 = vst.msk [vmem:[#allocation2] sm:$0xff] %vm296, %v441
  %447 = vst.msk [vmem:[#allocation2 + $0x8] sm:$0xff] %vm296, %v443
  %v448 = vsel %vm296, %v441, 0.0
  %449 = vadd.xlane.f32.xlu0 %v448
  %v450 = vpop.xlane.xlu0 %449
  %v451 = vsel %vm296, %v443, 0.0
  %452 = vadd.xlane.f32.xlu0 %v451
  %v453 = vpop.xlane.xlu0 %452
  %v454 = vrcp.pop 32.0
  %v455 = vmul.f32 %v450, %v454
  %v456 = vmul.f32 %v453, %v454
  %v457 = vsub.f32 %v436, %v455
  %v458 = vsub.f32 %v437, %v456
  %v459 = vmul.f32 %v457, %v457
  %v460 = vmul.f32 %v458, %v458
  %463 = vrot.lane.b32.xlu0 %v459, 96
  %v464 = vpop.permute.xlu0 %463
  %465 = vrot.lane.b32.xlu0 %v460, 96
  %v466 = vpop.permute.xlu0 %465
  %v469 = vsel %vm296, %v464, 0.0
  %470 = vadd.xlane.f32.xlu0 %v469
  %v471 = vpop.xlane.xlu0 %470
  %v472 = vsel %vm296, %v466, 0.0
  %473 = vadd.xlane.f32.xlu0 %v472
  %v474 = vpop.xlane.xlu0 %473
  %v475 = vmul.f32 %v471, %v454
  %v476 = vmul.f32 %v474, %v454
  %v477 = vadd.f32 %v475, 1e-05
  %v478 = vadd.f32 %v476, 1e-05
  %v479 = vrsqrt.pop %v477
  %v480 = vrsqrt.pop %v478
  %v481 = vmul.f32 %v457, %v479
  %v482 = vmul.f32 %v458, %v480
  %483 = vrot.lane.b32.xlu0 %v283, 32
  %v484 = vpop.permute.xlu0 %483
  %v486 = vmul.f32 %v481, %v484
  %v487 = vmul.f32 %v482, %v484
  %488 = vrot.lane.b32.xlu0 %v289, 32
  %v489 = vpop.permute.xlu0 %488
  %v491 = vadd.f32 %v486, %v489
  %v492 = vadd.f32 %v487, %v489
  %v495 = vcombine.high %v491, %v491
  %v497 = vunpack.c.l.s4 1966171168
  %v498 = vunpack.c.0.s8 %v497
  %v499 = vlaneseq
  %v500 = vshrl.u32 %v499, 7
  %v501 = vsub.s32 %v498, %v500
  %v502 = vrot.slane %v491, %v501
  %v504 = vunpack.c.l.s4 1966171168
  %v505 = vunpack.c.0.s8 %v504
  %v506 = vlaneseq
  %v507 = vshrl.u32 %v506, 7
  %v508 = vsub.s32 %v505, %v507
  %v509 = vrot.slane %v495, %v508
  %v510 = vcombine.high %v502, %v502
  %v511 = vcombine.high %v509, %v509
  %v513 = vunpack.c.l.s4 1966171168
  %v514 = vunpack.c.0.s8 %v513
  %v515 = vlaneseq
  %v516 = vshrl.u32 %v515, 7
  %v517 = vsub.s32 %v514, %v516
  %v518 = vrot.slane %v502, %v517
  %v520 = vunpack.c.l.s4 1966171168
  %v521 = vunpack.c.0.s8 %v520
  %v522 = vlaneseq
  %v523 = vshrl.u32 %v522, 7
  %v524 = vsub.s32 %v521, %v523
  %v525 = vrot.slane %v509, %v524
  %v527 = vunpack.c.l.s4 1966171168
  %v528 = vunpack.c.0.s8 %v527
  %v529 = vlaneseq
  %v530 = vshrl.u32 %v529, 7
  %v531 = vsub.s32 %v528, %v530
  %v532 = vrot.slane %v510, %v531
  %v534 = vunpack.c.l.s4 1966171168
  %v535 = vunpack.c.0.s8 %v534
  %v536 = vlaneseq
  %v537 = vshrl.u32 %v536, 7
  %v538 = vsub.s32 %v535, %v537
  %v539 = vrot.slane %v511, %v538
  %v540 = vcombine.high %v518, %v518
  %v541 = vcombine.high %v525, %v525
  %v542 = vcombine.high %v532, %v532
  %v543 = vcombine.high %v539, %v539
  %v544 = vcombine.high %v492, %v492
  %v546 = vunpack.c.l.s4 1966171168
  %v547 = vunpack.c.0.s8 %v546
  %v548 = vlaneseq
  %v549 = vshrl.u32 %v548, 7
  %v550 = vsub.s32 %v547, %v549
  %v551 = vrot.slane %v492, %v550
  %v553 = vunpack.c.l.s4 1966171168
  %v554 = vunpack.c.0.s8 %v553
  %v555 = vlaneseq
  %v556 = vshrl.u32 %v555, 7
  %v557 = vsub.s32 %v554, %v556
  %v558 = vrot.slane %v544, %v557
  %v559 = vcombine.high %v551, %v551
  %v560 = vcombine.high %v558, %v558
  %v562 = vunpack.c.l.s4 1966171168
  %v563 = vunpack.c.0.s8 %v562
  %v564 = vlaneseq
  %v565 = vshrl.u32 %v564, 7
  %v566 = vsub.s32 %v563, %v565
  %v567 = vrot.slane %v551, %v566
  %v569 = vunpack.c.l.s4 1966171168
  %v570 = vunpack.c.0.s8 %v569
  %v571 = vlaneseq
  %v572 = vshrl.u32 %v571, 7
  %v573 = vsub.s32 %v570, %v572
  %v574 = vrot.slane %v558, %v573
  %v576 = vunpack.c.l.s4 1966171168
  %v577 = vunpack.c.0.s8 %v576
  %v578 = vlaneseq
  %v579 = vshrl.u32 %v578, 7
  %v580 = vsub.s32 %v577, %v579
  %v581 = vrot.slane %v559, %v580
  %v583 = vunpack.c.l.s4 1966171168
  %v584 = vunpack.c.0.s8 %v583
  %v585 = vlaneseq
  %v586 = vshrl.u32 %v585, 7
  %v587 = vsub.s32 %v584, %v586
  %v588 = vrot.slane %v560, %v587
  %v589 = vcombine.high %v567, %v567
  %v590 = vcombine.high %v574, %v574
  %v591 = vcombine.high %v581, %v581
  %v592 = vcombine.high %v588, %v588
  %v593 = vlaneseq
  %v594 = vshrl.u32 %v593, 7
  %v595 = vsub.s32 0, %v594
  %v596 = vrot.slane %v518, %v595
  %v597 = vlaneseq
  %v598 = vshrl.u32 %v597, 7
  %v599 = vsub.s32 0, %v598
  %v600 = vrot.slane %v532, %v599
  %v601 = vlaneseq
  %v602 = vshrl.u32 %v601, 7
  %v603 = vsub.s32 0, %v602
  %v604 = vrot.slane %v540, %v603
  %v605 = vlaneseq
  %v606 = vshrl.u32 %v605, 7
  %v607 = vsub.s32 0, %v606
  %v608 = vrot.slane %v542, %v607
  %v609 = vlaneseq
  %v610 = vshrl.u32 %v609, 7
  %v611 = vsub.s32 0, %v610
  %v612 = vrot.slane %v525, %v611
  %v613 = vlaneseq
  %v614 = vshrl.u32 %v613, 7
  %v615 = vsub.s32 0, %v614
  %v616 = vrot.slane %v539, %v615
  %v617 = vlaneseq
  %v618 = vshrl.u32 %v617, 7
  %v619 = vsub.s32 0, %v618
  %v620 = vrot.slane %v541, %v619
  %v621 = vlaneseq
  %v622 = vshrl.u32 %v621, 7
  %v623 = vsub.s32 0, %v622
  %v624 = vrot.slane %v543, %v623
  %v625 = vlaneseq
  %v626 = vshrl.u32 %v625, 7
  %v627 = vsub.s32 0, %v626
  %v628 = vrot.slane %v567, %v627
  %v629 = vlaneseq
  %v630 = vshrl.u32 %v629, 7
  %v631 = vsub.s32 0, %v630
  %v632 = vrot.slane %v581, %v631
  %v633 = vlaneseq
  %v634 = vshrl.u32 %v633, 7
  %v635 = vsub.s32 0, %v634
  %v636 = vrot.slane %v589, %v635
  %v637 = vlaneseq
  %v638 = vshrl.u32 %v637, 7
  %v639 = vsub.s32 0, %v638
  %v640 = vrot.slane %v591, %v639
  %v641 = vlaneseq
  %v642 = vshrl.u32 %v641, 7
  %v643 = vsub.s32 0, %v642
  %v644 = vrot.slane %v574, %v643
  %v645 = vlaneseq
  %v646 = vshrl.u32 %v645, 7
  %v647 = vsub.s32 0, %v646
  %v648 = vrot.slane %v588, %v647
  %v649 = vlaneseq
  %v650 = vshrl.u32 %v649, 7
  %v651 = vsub.s32 0, %v650
  %v652 = vrot.slane %v590, %v651
  %v653 = vlaneseq
  %v654 = vshrl.u32 %v653, 7
  %v655 = vsub.s32 0, %v654
  %v656 = vrot.slane %v592, %v655
  %657 = vrot.lane.b32.xlu0 %v596, 96
  %v658 = vpop.permute.xlu0 %657
  %659 = vrot.lane.b32.xlu0 %v600, 96
  %v660 = vpop.permute.xlu0 %659
  %661 = vrot.lane.b32.xlu0 %v604, 96
  %v662 = vpop.permute.xlu0 %661
  %663 = vrot.lane.b32.xlu0 %v608, 96
  %v664 = vpop.permute.xlu0 %663
  %665 = vrot.lane.b32.xlu0 %v612, 96
  %v666 = vpop.permute.xlu0 %665
  %667 = vrot.lane.b32.xlu0 %v616, 96
  %v668 = vpop.permute.xlu0 %667
  %669 = vrot.lane.b32.xlu0 %v620, 96
  %v670 = vpop.permute.xlu0 %669
  %671 = vrot.lane.b32.xlu0 %v624, 96
  %v672 = vpop.permute.xlu0 %671
  %673 = vrot.lane.b32.xlu0 %v628, 96
  %v674 = vpop.permute.xlu0 %673
  %675 = vrot.lane.b32.xlu0 %v632, 96
  %v676 = vpop.permute.xlu0 %675
  %677 = vrot.lane.b32.xlu0 %v636, 96
  %v678 = vpop.permute.xlu0 %677
  %679 = vrot.lane.b32.xlu0 %v640, 96
  %v680 = vpop.permute.xlu0 %679
  %681 = vrot.lane.b32.xlu0 %v644, 96
  %v682 = vpop.permute.xlu0 %681
  %683 = vrot.lane.b32.xlu0 %v648, 96
  %v684 = vpop.permute.xlu0 %683
  %685 = vrot.lane.b32.xlu0 %v652, 96
  %v686 = vpop.permute.xlu0 %685
  %687 = vrot.lane.b32.xlu0 %v656, 96
  %v688 = vpop.permute.xlu0 %687
  %vm705 = vcmask 253952
  %706 = vst.msk [vmem:[%s7] sm:$0x1] %vm705, %v658
  %707 = vst.msk [vmem:[%s7 + $0x8] sm:$0x1] %vm705, %v660
  %708 = vst.msk [vmem:[%s7 + $0x10] sm:$0x1] %vm705, %v662
  %709 = vst.msk [vmem:[%s7 + $0x18] sm:$0x1] %vm705, %v664
  %710 = vst.msk [vmem:[%s7 + $0x20] sm:$0x1] %vm705, %v666
  %711 = vst.msk [vmem:[%s7 + $0x28] sm:$0x1] %vm705, %v668
  %712 = vst.msk [vmem:[%s7 + $0x30] sm:$0x1] %vm705, %v670
  %713 = vst.msk [vmem:[%s7 + $0x38] sm:$0x1] %vm705, %v672
  %714 = vst.msk [vmem:[%s7 + $0x40] sm:$0x1] %vm705, %v674
  %715 = vst.msk [vmem:[%s7 + $0x48] sm:$0x1] %vm705, %v676
  %716 = vst.msk [vmem:[%s7 + $0x50] sm:$0x1] %vm705, %v678
  %717 = vst.msk [vmem:[%s7 + $0x58] sm:$0x1] %vm705, %v680
  %718 = vst.msk [vmem:[%s7 + $0x60] sm:$0x1] %vm705, %v682
  %719 = vst.msk [vmem:[%s7 + $0x68] sm:$0x1] %vm705, %v684
  %720 = vst.msk [vmem:[%s7 + $0x70] sm:$0x1] %vm705, %v686
  %721 = vst.msk [vmem:[%s7 + $0x78] sm:$0x1] %vm705, %v688
  %v722 = vld [vmem:[#allocation2] sm:$0xff]
  %v723 = vld [vmem:[#allocation2 + $0x8] sm:$0xff]
  %v724 = vld [vmem:[%s2] sm:$0xff]
  %v725 = vld [vmem:[%s2 + $0x8] sm:$0xff]
  %v726 = vld [vmem:[%s2 + $0x10] sm:$0xff]
  %v727 = vld [vmem:[%s2 + $0x18] sm:$0xff]
  %v729 = vsel %vm296, %v722, 0
  %v732 = vsel %vm296, %v723, 0
  %734 = vmatprep.subr.mxu0 0.0
  %735 = vmatpush1.msra.mxu0 0.0
  %736 = vmatprep.subr.mxu0 0.0
  %737 = vmatpush1.msra.mxu0 0.0
  %738 = vmatprep.subr.mxu0 0.0
  %739 = vmatpush1.msra.mxu0 0.0
  %740 = vmatprep.subr.mxu0 0.0
  %741 = vmatpush1.msra.mxu0 0.0
  %742 = vmatprep.subr.mxu0 0.0
  %743 = vmatpush1.msra.mxu0 0.0
  %744 = vmatprep.subr.mxu0 0.0
  %745 = vmatpush1.msra.mxu0 0.0
  %746 = vmatprep.subr.mxu0 0.0
  %747 = vmatpush1.msra.mxu0 0.0
  %748 = vmatprep.subr.mxu0 0.0
  %749 = vmatpush1.msra.mxu0 0.0
  %750 = vmatprep.subr.mxu0 0.0
  %751 = vmatpush1.msra.mxu0 0.0
  %752 = vmatprep.subr.mxu0 0.0
  %753 = vmatpush1.msra.mxu0 0.0
  %754 = vmatprep.subr.mxu0 0.0
  %755 = vmatpush1.msra.mxu0 0.0
  %756 = vmatprep.subr.mxu0 0.0
  %757 = vmatpush1.msra.mxu0 0.0
  %758 = vmatprep.subr.mxu0 0.0
  %759 = vmatpush1.msra.mxu0 %v727
  %760 = vmatprep.subr.mxu0 0.0
  %761 = vmatpush1.msra.mxu0 %v726
  %762 = vmatprep.subr.mxu0 0.0
  %763 = vmatpush1.msra.mxu0 %v725
  %764 = vmatprep.subr.mxu0 0.0
  %765 = vmatpush1.msra.mxu0 %v724
  %766 = vmatprep.subr.mxu0 0.0
  %767 = vmatpush2.msra.mxu0 0.0
  %768 = vmatprep.subr.mxu0 0.0
  %769 = vmatpush2.msra.mxu0 0.0
  %770 = vmatprep.subr.mxu0 0.0
  %771 = vmatpush2.msra.mxu0 0.0
  %772 = vmatprep.subr.mxu0 0.0
  %773 = vmatpush2.msra.mxu0 0.0
  %774 = vmatprep.subr.mxu0 0.0
  %775 = vmatpush2.msra.mxu0 0.0
  %776 = vmatprep.subr.mxu0 0.0
  %777 = vmatpush2.msra.mxu0 0.0
  %778 = vmatprep.subr.mxu0 0.0
  %779 = vmatpush2.msra.mxu0 0.0
  %780 = vmatprep.subr.mxu0 0.0
  %781 = vmatpush2.msra.mxu0 0.0
  %782 = vmatprep.subr.mxu0 0.0
  %783 = vmatpush2.msra.mxu0 0.0
  %784 = vmatprep.subr.mxu0 0.0
  %785 = vmatpush2.msra.mxu0 0.0
  %786 = vmatprep.subr.mxu0 0.0
  %787 = vmatpush2.msra.mxu0 0.0
  %788 = vmatprep.subr.mxu0 0.0
  %789 = vmatpush2.msra.mxu0 0.0
  %790 = vmatprep.subr.mxu0 0.0
  %791 = vmatpush2.msra.mxu0 0.0
  %792 = vmatprep.subr.mxu0 0.0
  %793 = vmatpush2.msra.mxu0 0.0
  %794 = vmatprep.subr.mxu0 0.0
  %795 = vmatpush2.msra.mxu0 0.0
  %796 = vmatprep.subr.mxu0 0.0
  %797 = vmatpush2.msra.mxu0 0.0
  %798 = vmatprep.mubr.f32.mxu0 0.0
  %799 = vmatmul.mubr.f32.gmra.mxu0 %v729
  %v800 = vpop.f32.mrf.mxu0
  %v801 = vadd.f32 %v276, %v800
  %v802 = vpop.f32.mrf.mxu0
  %803 = vmatprep.mubr.f32.mxu0 0.0
  %804 = vmatmul.mubr.f32.gmra.mxu0 %v732
  %v805 = vpop.f32.mrf.mxu0
  %v806 = vadd.f32 %v276, %v805
  %v807 = vpop.f32.mrf.mxu0
  %808 = vdwg.mxu0
  %s809 = scalar_lea.vmem [#allocation3], 16
  %v810 = vld [vmem:[%s809] sm:$0xff]
  %v811 = vld [vmem:[%s809 + $0x8] sm:$0xff]
  %v812 = vadd.f32 %v810, %v801
  %v813 = vadd.f32 %v811, %v806
  %v814 = vxor.u32 %v812, 2147483648
  %v815 = vxor.u32 %v813, 2147483648
  %v816 = vmul.f32 %v814, 1.442695
  %v817 = vpow.pop %v816
  %v818 = vmul.f32 %v815, 1.442695
  %v819 = vpow.pop %v818
  %v820 = vadd.f32 %v817, 1.0
  %v821 = vadd.f32 %v819, 1.0
  %v822 = vrcp.pop %v820
  %v823 = vmul.f32 1.0, %v822
  %v824 = vrcp.pop %v821
  %v825 = vmul.f32 1.0, %v824
  %828 = vrot.lane.b32.xlu0 %v801, 64
  %v829 = vpop.permute.xlu0 %828
  %830 = vrot.lane.b32.xlu0 %v806, 64
  %v831 = vpop.permute.xlu0 %830
  %v834 = vmul.f32 %v823, %v829
  %v835 = vmul.f32 %v825, %v831
  %838 = vrot.lane.b32.xlu0 %v834, 64
  %v839 = vpop.permute.xlu0 %838
  %840 = vrot.lane.b32.xlu0 %v835, 64
  %v841 = vpop.permute.xlu0 %840
  %v844 = vadd.f32 %v810, %v839
  %v845 = vadd.f32 %v811, %v841
  %v846 = vtanh.pop %v844
  %v847 = vtanh.pop %v845
  %v848 = vsub.f32 1.0, %v823
  %v849 = vsub.f32 1.0, %v825
  %852 = vrot.lane.b32.xlu0 %v846, 96
  %v853 = vpop.permute.xlu0 %852
  %854 = vrot.lane.b32.xlu0 %v847, 96
  %v855 = vpop.permute.xlu0 %854
  %v858 = vmul.f32 %v848, %v853
  %v859 = vmul.f32 %v849, %v855
  %860 = vrot.lane.b32.xlu0 %v722, 32
  %v861 = vpop.permute.xlu0 %860
  %862 = vrot.lane.b32.xlu0 %v723, 32
  %v863 = vpop.permute.xlu0 %862
  %v866 = vmul.f32 %v823, %v861
  %v867 = vmul.f32 %v825, %v863
  %v868 = vadd.f32 %v858, %v866
  %v869 = vadd.f32 %v859, %v867
  %872 = vrot.lane.b32.xlu0 %v868, 96
  %v873 = vpop.permute.xlu0 %872
  %874 = vrot.lane.b32.xlu0 %v869, 96
  %v875 = vpop.permute.xlu0 %874
  %878 = vst.msk [vmem:[#allocation2] sm:$0xff] %vm296, %v873
  %879 = vst.msk [vmem:[#allocation2 + $0x8] sm:$0xff] %vm296, %v875
  %v880 = vsel %vm296, %v873, 0.0
  %881 = vadd.xlane.f32.xlu0 %v880
  %v882 = vpop.xlane.xlu0 %881
  %v883 = vsel %vm296, %v875, 0.0
  %884 = vadd.xlane.f32.xlu0 %v883
  %v885 = vpop.xlane.xlu0 %884
  %v886 = vmul.f32 %v882, %v454
  %v887 = vmul.f32 %v885, %v454
  %v888 = vsub.f32 %v868, %v886
  %v889 = vsub.f32 %v869, %v887
  %v890 = vmul.f32 %v888, %v888
  %v891 = vmul.f32 %v889, %v889
  %894 = vrot.lane.b32.xlu0 %v890, 96
  %v895 = vpop.permute.xlu0 %894
  %896 = vrot.lane.b32.xlu0 %v891, 96
  %v897 = vpop.permute.xlu0 %896
  %v900 = vsel %vm296, %v895, 0.0
  %901 = vadd.xlane.f32.xlu0 %v900
  %v902 = vpop.xlane.xlu0 %901
  %v903 = vsel %vm296, %v897, 0.0
  %904 = vadd.xlane.f32.xlu0 %v903
  %v905 = vpop.xlane.xlu0 %904
  %v906 = vmul.f32 %v902, %v454
  %v907 = vmul.f32 %v905, %v454
  %v908 = vadd.f32 %v906, 1e-05
  %v909 = vadd.f32 %v907, 1e-05
  %v910 = vrsqrt.pop %v908
  %v911 = vrsqrt.pop %v909
  %v912 = vmul.f32 %v888, %v910
  %v913 = vmul.f32 %v889, %v911
  %v914 = vmul.f32 %v912, %v484
  %v915 = vmul.f32 %v913, %v484
  %v916 = vadd.f32 %v914, %v489
  %v917 = vadd.f32 %v915, %v489
  %v920 = vcombine.high %v916, %v916
  %v922 = vunpack.c.l.s4 1966171168
  %v923 = vunpack.c.0.s8 %v922
  %v924 = vlaneseq
  %v925 = vshrl.u32 %v924, 7
  %v926 = vsub.s32 %v923, %v925
  %v927 = vrot.slane %v916, %v926
  %v929 = vunpack.c.l.s4 1966171168
  %v930 = vunpack.c.0.s8 %v929
  %v931 = vlaneseq
  %v932 = vshrl.u32 %v931, 7
  %v933 = vsub.s32 %v930, %v932
  %v934 = vrot.slane %v920, %v933
  %v935 = vcombine.high %v927, %v927
  %v936 = vcombine.high %v934, %v934
  %v938 = vunpack.c.l.s4 1966171168
  %v939 = vunpack.c.0.s8 %v938
  %v940 = vlaneseq
  %v941 = vshrl.u32 %v940, 7
  %v942 = vsub.s32 %v939, %v941
  %v943 = vrot.slane %v927, %v942
  %v945 = vunpack.c.l.s4 1966171168
  %v946 = vunpack.c.0.s8 %v945
  %v947 = vlaneseq
  %v948 = vshrl.u32 %v947, 7
  %v949 = vsub.s32 %v946, %v948
  %v950 = vrot.slane %v934, %v949
  %v952 = vunpack.c.l.s4 1966171168
  %v953 = vunpack.c.0.s8 %v952
  %v954 = vlaneseq
  %v955 = vshrl.u32 %v954, 7
  %v956 = vsub.s32 %v953, %v955
  %v957 = vrot.slane %v935, %v956
  %v959 = vunpack.c.l.s4 1966171168
  %v960 = vunpack.c.0.s8 %v959
  %v961 = vlaneseq
  %v962 = vshrl.u32 %v961, 7
  %v963 = vsub.s32 %v960, %v962
  %v964 = vrot.slane %v936, %v963
  %v965 = vcombine.high %v943, %v943
  %v966 = vcombine.high %v950, %v950
  %v967 = vcombine.high %v957, %v957
  %v968 = vcombine.high %v964, %v964
  %v969 = vcombine.high %v917, %v917
  %v971 = vunpack.c.l.s4 1966171168
  %v972 = vunpack.c.0.s8 %v971
  %v973 = vlaneseq
  %v974 = vshrl.u32 %v973, 7
  %v975 = vsub.s32 %v972, %v974
  %v976 = vrot.slane %v917, %v975
  %v978 = vunpack.c.l.s4 1966171168
  %v979 = vunpack.c.0.s8 %v978
  %v980 = vlaneseq
  %v981 = vshrl.u32 %v980, 7
  %v982 = vsub.s32 %v979, %v981
  %v983 = vrot.slane %v969, %v982
  %v984 = vcombine.high %v976, %v976
  %v985 = vcombine.high %v983, %v983
  %v987 = vunpack.c.l.s4 1966171168
  %v988 = vunpack.c.0.s8 %v987
  %v989 = vlaneseq
  %v990 = vshrl.u32 %v989, 7
  %v991 = vsub.s32 %v988, %v990
  %v992 = vrot.slane %v976, %v991
  %v994 = vunpack.c.l.s4 1966171168
  %v995 = vunpack.c.0.s8 %v994
  %v996 = vlaneseq
  %v997 = vshrl.u32 %v996, 7
  %v998 = vsub.s32 %v995, %v997
  %v999 = vrot.slane %v983, %v998
  %v1001 = vunpack.c.l.s4 1966171168
  %v1002 = vunpack.c.0.s8 %v1001
  %v1003 = vlaneseq
  %v1004 = vshrl.u32 %v1003, 7
  %v1005 = vsub.s32 %v1002, %v1004
  %v1006 = vrot.slane %v984, %v1005
  %v1008 = vunpack.c.l.s4 1966171168
  %v1009 = vunpack.c.0.s8 %v1008
  %v1010 = vlaneseq
  %v1011 = vshrl.u32 %v1010, 7
  %v1012 = vsub.s32 %v1009, %v1011
  %v1013 = vrot.slane %v985, %v1012
  %v1014 = vcombine.high %v992, %v992
  %v1015 = vcombine.high %v999, %v999
  %v1016 = vcombine.high %v1006, %v1006
  %v1017 = vcombine.high %v1013, %v1013
  %v1018 = vlaneseq
  %v1019 = vshrl.u32 %v1018, 7
  %v1020 = vsub.s32 0, %v1019
  %v1021 = vrot.slane %v943, %v1020
  %v1022 = vlaneseq
  %v1023 = vshrl.u32 %v1022, 7
  %v1024 = vsub.s32 0, %v1023
  %v1025 = vrot.slane %v957, %v1024
  %v1026 = vlaneseq
  %v1027 = vshrl.u32 %v1026, 7
  %v1028 = vsub.s32 0, %v1027
  %v1029 = vrot.slane %v965, %v1028
  %v1030 = vlaneseq
  %v1031 = vshrl.u32 %v1030, 7
  %v1032 = vsub.s32 0, %v1031
  %v1033 = vrot.slane %v967, %v1032
  %v1034 = vlaneseq
  %v1035 = vshrl.u32 %v1034, 7
  %v1036 = vsub.s32 0, %v1035
  %v1037 = vrot.slane %v950, %v1036
  %v1038 = vlaneseq
  %v1039 = vshrl.u32 %v1038, 7
  %v1040 = vsub.s32 0, %v1039
  %v1041 = vrot.slane %v964, %v1040
  %v1042 = vlaneseq
  %v1043 = vshrl.u32 %v1042, 7
  %v1044 = vsub.s32 0, %v1043
  %v1045 = vrot.slane %v966, %v1044
  %v1046 = vlaneseq
  %v1047 = vshrl.u32 %v1046, 7
  %v1048 = vsub.s32 0, %v1047
  %v1049 = vrot.slane %v968, %v1048
  %v1050 = vlaneseq
  %v1051 = vshrl.u32 %v1050, 7
  %v1052 = vsub.s32 0, %v1051
  %v1053 = vrot.slane %v992, %v1052
  %v1054 = vlaneseq
  %v1055 = vshrl.u32 %v1054, 7
  %v1056 = vsub.s32 0, %v1055
  %v1057 = vrot.slane %v1006, %v1056
  %v1058 = vlaneseq
  %v1059 = vshrl.u32 %v1058, 7
  %v1060 = vsub.s32 0, %v1059
  %v1061 = vrot.slane %v1014, %v1060
  %v1062 = vlaneseq
  %v1063 = vshrl.u32 %v1062, 7
  %v1064 = vsub.s32 0, %v1063
  %v1065 = vrot.slane %v1016, %v1064
  %v1066 = vlaneseq
  %v1067 = vshrl.u32 %v1066, 7
  %v1068 = vsub.s32 0, %v1067
  %v1069 = vrot.slane %v999, %v1068
  %v1070 = vlaneseq
  %v1071 = vshrl.u32 %v1070, 7
  %v1072 = vsub.s32 0, %v1071
  %v1073 = vrot.slane %v1013, %v1072
  %v1074 = vlaneseq
  %v1075 = vshrl.u32 %v1074, 7
  %v1076 = vsub.s32 0, %v1075
  %v1077 = vrot.slane %v1015, %v1076
  %v1078 = vlaneseq
  %v1079 = vshrl.u32 %v1078, 7
  %v1080 = vsub.s32 0, %v1079
  %v1081 = vrot.slane %v1017, %v1080
  %1082 = vrot.lane.b32.xlu0 %v1021, 96
  %v1083 = vpop.permute.xlu0 %1082
  %1084 = vrot.lane.b32.xlu0 %v1025, 96
  %v1085 = vpop.permute.xlu0 %1084
  %1086 = vrot.lane.b32.xlu0 %v1029, 96
  %v1087 = vpop.permute.xlu0 %1086
  %1088 = vrot.lane.b32.xlu0 %v1033, 96
  %v1089 = vpop.permute.xlu0 %1088
  %1090 = vrot.lane.b32.xlu0 %v1037, 96
  %v1091 = vpop.permute.xlu0 %1090
  %1092 = vrot.lane.b32.xlu0 %v1041, 96
  %v1093 = vpop.permute.xlu0 %1092
  %1094 = vrot.lane.b32.xlu0 %v1045, 96
  %v1095 = vpop.permute.xlu0 %1094
  %1096 = vrot.lane.b32.xlu0 %v1049, 96
  %v1097 = vpop.permute.xlu0 %1096
  %1098 = vrot.lane.b32.xlu0 %v1053, 96
  %v1099 = vpop.permute.xlu0 %1098
  %1100 = vrot.lane.b32.xlu0 %v1057, 96
  %v1101 = vpop.permute.xlu0 %1100
  %1102 = vrot.lane.b32.xlu0 %v1061, 96
  %v1103 = vpop.permute.xlu0 %1102
  %1104 = vrot.lane.b32.xlu0 %v1065, 96
  %v1105 = vpop.permute.xlu0 %1104
  %1106 = vrot.lane.b32.xlu0 %v1069, 96
  %v1107 = vpop.permute.xlu0 %1106
  %1108 = vrot.lane.b32.xlu0 %v1073, 96
  %v1109 = vpop.permute.xlu0 %1108
  %1110 = vrot.lane.b32.xlu0 %v1077, 96
  %v1111 = vpop.permute.xlu0 %1110
  %1112 = vrot.lane.b32.xlu0 %v1081, 96
  %v1113 = vpop.permute.xlu0 %1112
  %1130 = vst.msk [vmem:[%s7 + $0x1] sm:$0x1] %vm705, %v1083
  %1131 = vst.msk [vmem:[%s7 + $0x9] sm:$0x1] %vm705, %v1085
  %1132 = vst.msk [vmem:[%s7 + $0x11] sm:$0x1] %vm705, %v1087
  %1133 = vst.msk [vmem:[%s7 + $0x19] sm:$0x1] %vm705, %v1089
  %1134 = vst.msk [vmem:[%s7 + $0x21] sm:$0x1] %vm705, %v1091
  %1135 = vst.msk [vmem:[%s7 + $0x29] sm:$0x1] %vm705, %v1093
  %1136 = vst.msk [vmem:[%s7 + $0x31] sm:$0x1] %vm705, %v1095
  %1137 = vst.msk [vmem:[%s7 + $0x39] sm:$0x1] %vm705, %v1097
  %1138 = vst.msk [vmem:[%s7 + $0x41] sm:$0x1] %vm705, %v1099
  %1139 = vst.msk [vmem:[%s7 + $0x49] sm:$0x1] %vm705, %v1101
  %1140 = vst.msk [vmem:[%s7 + $0x51] sm:$0x1] %vm705, %v1103
  %1141 = vst.msk [vmem:[%s7 + $0x59] sm:$0x1] %vm705, %v1105
  %1142 = vst.msk [vmem:[%s7 + $0x61] sm:$0x1] %vm705, %v1107
  %1143 = vst.msk [vmem:[%s7 + $0x69] sm:$0x1] %vm705, %v1109
  %1144 = vst.msk [vmem:[%s7 + $0x71] sm:$0x1] %vm705, %v1111
  %1145 = vst.msk [vmem:[%s7 + $0x79] sm:$0x1] %vm705, %v1113
  %v1146 = vld [vmem:[#allocation2] sm:$0xff]
  %v1147 = vld [vmem:[#allocation2 + $0x8] sm:$0xff]
  %v1148 = vld [vmem:[%s2] sm:$0xff]
  %v1149 = vld [vmem:[%s2 + $0x8] sm:$0xff]
  %v1150 = vld [vmem:[%s2 + $0x10] sm:$0xff]
  %v1151 = vld [vmem:[%s2 + $0x18] sm:$0xff]
  %v1153 = vsel %vm296, %v1146, 0
  %v1156 = vsel %vm296, %v1147, 0
  %1158 = vmatprep.subr.mxu0 0.0
  %1159 = vmatpush1.msra.mxu0 0.0
  %1160 = vmatprep.subr.mxu0 0.0
  %1161 = vmatpush1.msra.mxu0 0.0
  %1162 = vmatprep.subr.mxu0 0.0
  %1163 = vmatpush1.msra.mxu0 0.0
  %1164 = vmatprep.subr.mxu0 0.0
  %1165 = vmatpush1.msra.mxu0 0.0
  %1166 = vmatprep.subr.mxu0 0.0
  %1167 = vmatpush1.msra.mxu0 0.0
  %1168 = vmatprep.subr.mxu0 0.0
  %1169 = vmatpush1.msra.mxu0 0.0
  %1170 = vmatprep.subr.mxu0 0.0
  %1171 = vmatpush1.msra.mxu0 0.0
  %1172 = vmatprep.subr.mxu0 0.0
  %1173 = vmatpush1.msra.mxu0 0.0
  %1174 = vmatprep.subr.mxu0 0.0
  %1175 = vmatpush1.msra.mxu0 0.0
  %1176 = vmatprep.subr.mxu0 0.0
  %1177 = vmatpush1.msra.mxu0 0.0
  %1178 = vmatprep.subr.mxu0 0.0
  %1179 = vmatpush1.msra.mxu0 0.0
  %1180 = vmatprep.subr.mxu0 0.0
  %1181 = vmatpush1.msra.mxu0 0.0
  %1182 = vmatprep.subr.mxu0 0.0
  %1183 = vmatpush1.msra.mxu0 %v1151
  %1184 = vmatprep.subr.mxu0 0.0
  %1185 = vmatpush1.msra.mxu0 %v1150
  %1186 = vmatprep.subr.mxu0 0.0
  %1187 = vmatpush1.msra.mxu0 %v1149
  %1188 = vmatprep.subr.mxu0 0.0
  %1189 = vmatpush1.msra.mxu0 %v1148
  %1190 = vmatprep.subr.mxu0 0.0
  %1191 = vmatpush2.msra.mxu0 0.0
  %1192 = vmatprep.subr.mxu0 0.0
  %1193 = vmatpush2.msra.mxu0 0.0
  %1194 = vmatprep.subr.mxu0 0.0
  %1195 = vmatpush2.msra.mxu0 0.0
  %1196 = vmatprep.subr.mxu0 0.0
  %1197 = vmatpush2.msra.mxu0 0.0
  %1198 = vmatprep.subr.mxu0 0.0
  %1199 = vmatpush2.msra.mxu0 0.0
  %1200 = vmatprep.subr.mxu0 0.0
  %1201 = vmatpush2.msra.mxu0 0.0
  %1202 = vmatprep.subr.mxu0 0.0
  %1203 = vmatpush2.msra.mxu0 0.0
  %1204 = vmatprep.subr.mxu0 0.0
  %1205 = vmatpush2.msra.mxu0 0.0
  %1206 = vmatprep.subr.mxu0 0.0
  %1207 = vmatpush2.msra.mxu0 0.0
  %1208 = vmatprep.subr.mxu0 0.0
  %1209 = vmatpush2.msra.mxu0 0.0
  %1210 = vmatprep.subr.mxu0 0.0
  %1211 = vmatpush2.msra.mxu0 0.0
  %1212 = vmatprep.subr.mxu0 0.0
  %1213 = vmatpush2.msra.mxu0 0.0
  %1214 = vmatprep.subr.mxu0 0.0
  %1215 = vmatpush2.msra.mxu0 0.0
  %1216 = vmatprep.subr.mxu0 0.0
  %1217 = vmatpush2.msra.mxu0 0.0
  %1218 = vmatprep.subr.mxu0 0.0
  %1219 = vmatpush2.msra.mxu0 0.0
  %1220 = vmatprep.subr.mxu0 0.0
  %1221 = vmatpush2.msra.mxu0 0.0
  %1222 = vmatprep.mubr.f32.mxu0 0.0
  %1223 = vmatmul.mubr.f32.gmra.mxu0 %v1153
  %v1224 = vpop.f32.mrf.mxu0
  %v1225 = vadd.f32 %v276, %v1224
  %v1226 = vpop.f32.mrf.mxu0
  %1227 = vmatprep.mubr.f32.mxu0 0.0
  %1228 = vmatmul.mubr.f32.gmra.mxu0 %v1156
  %v1229 = vpop.f32.mrf.mxu0
  %v1230 = vadd.f32 %v276, %v1229
  %v1231 = vpop.f32.mrf.mxu0
  %1232 = vdwg.mxu0
  %s1233 = scalar_lea.vmem [#allocation3], 32
  %v1234 = vld [vmem:[%s1233] sm:$0xff]
  %v1235 = vld [vmem:[%s1233 + $0x8] sm:$0xff]
  %v1236 = vadd.f32 %v1234, %v1225
  %v1237 = vadd.f32 %v1235, %v1230
  %v1238 = vxor.u32 %v1236, 2147483648
  %v1239 = vxor.u32 %v1237, 2147483648
  %v1240 = vmul.f32 %v1238, 1.442695
  %v1241 = vpow.pop %v1240
  %v1242 = vmul.f32 %v1239, 1.442695
  %v1243 = vpow.pop %v1242
  %v1244 = vadd.f32 %v1241, 1.0
  %v1245 = vadd.f32 %v1243, 1.0
  %v1246 = vrcp.pop %v1244
  %v1247 = vmul.f32 1.0, %v1246
  %v1248 = vrcp.pop %v1245
  %v1249 = vmul.f32 1.0, %v1248
  %1252 = vrot.lane.b32.xlu0 %v1225, 64
  %v1253 = vpop.permute.xlu0 %1252
  %1254 = vrot.lane.b32.xlu0 %v1230, 64
  %v1255 = vpop.permute.xlu0 %1254
  %v1258 = vmul.f32 %v1247, %v1253
  %v1259 = vmul.f32 %v1249, %v1255
  %1262 = vrot.lane.b32.xlu0 %v1258, 64
  %v1263 = vpop.permute.xlu0 %1262
  %1264 = vrot.lane.b32.xlu0 %v1259, 64
  %v1265 = vpop.permute.xlu0 %1264
  %v1268 = vadd.f32 %v1234, %v1263
  %v1269 = vadd.f32 %v1235, %v1265
  %v1270 = vtanh.pop %v1268
  %v1271 = vtanh.pop %v1269
  %v1272 = vsub.f32 1.0, %v1247
  %v1273 = vsub.f32 1.0, %v1249
  %1276 = vrot.lane.b32.xlu0 %v1270, 96
  %v1277 = vpop.permute.xlu0 %1276
  %1278 = vrot.lane.b32.xlu0 %v1271, 96
  %v1279 = vpop.permute.xlu0 %1278
  %v1282 = vmul.f32 %v1272, %v1277
  %v1283 = vmul.f32 %v1273, %v1279
  %1284 = vrot.lane.b32.xlu0 %v1146, 32
  %v1285 = vpop.permute.xlu0 %1284
  %1286 = vrot.lane.b32.xlu0 %v1147, 32
  %v1287 = vpop.permute.xlu0 %1286
  %v1290 = vmul.f32 %v1247, %v1285
  %v1291 = vmul.f32 %v1249, %v1287
  %v1292 = vadd.f32 %v1282, %v1290
  %v1293 = vadd.f32 %v1283, %v1291
  %1296 = vrot.lane.b32.xlu0 %v1292, 96
  %v1297 = vpop.permute.xlu0 %1296
  %1298 = vrot.lane.b32.xlu0 %v1293, 96
  %v1299 = vpop.permute.xlu0 %1298
  %1302 = vst.msk [vmem:[#allocation2] sm:$0xff] %vm296, %v1297
  %1303 = vst.msk [vmem:[#allocation2 + $0x8] sm:$0xff] %vm296, %v1299
  %v1304 = vsel %vm296, %v1297, 0.0
  %1305 = vadd.xlane.f32.xlu0 %v1304
  %v1306 = vpop.xlane.xlu0 %1305
  %v1307 = vsel %vm296, %v1299, 0.0
  %1308 = vadd.xlane.f32.xlu0 %v1307
  %v1309 = vpop.xlane.xlu0 %1308
  %v1310 = vmul.f32 %v1306, %v454
  %v1311 = vmul.f32 %v1309, %v454
  %v1312 = vsub.f32 %v1292, %v1310
  %v1313 = vsub.f32 %v1293, %v1311
  %v1314 = vmul.f32 %v1312, %v1312
  %v1315 = vmul.f32 %v1313, %v1313
  %1318 = vrot.lane.b32.xlu0 %v1314, 96
  %v1319 = vpop.permute.xlu0 %1318
  %1320 = vrot.lane.b32.xlu0 %v1315, 96
  %v1321 = vpop.permute.xlu0 %1320
  %v1324 = vsel %vm296, %v1319, 0.0
  %1325 = vadd.xlane.f32.xlu0 %v1324
  %v1326 = vpop.xlane.xlu0 %1325
  %v1327 = vsel %vm296, %v1321, 0.0
  %1328 = vadd.xlane.f32.xlu0 %v1327
  %v1329 = vpop.xlane.xlu0 %1328
  %v1330 = vmul.f32 %v1326, %v454
  %v1331 = vmul.f32 %v1329, %v454
  %v1332 = vadd.f32 %v1330, 1e-05
  %v1333 = vadd.f32 %v1331, 1e-05
  %v1334 = vrsqrt.pop %v1332
  %v1335 = vrsqrt.pop %v1333
  %v1336 = vmul.f32 %v1312, %v1334
  %v1337 = vmul.f32 %v1313, %v1335
  %v1338 = vmul.f32 %v1336, %v484
  %v1339 = vmul.f32 %v1337, %v484
  %v1340 = vadd.f32 %v1338, %v489
  %v1341 = vadd.f32 %v1339, %v489
  %v1344 = vcombine.high %v1340, %v1340
  %v1346 = vunpack.c.l.s4 1966171168
  %v1347 = vunpack.c.0.s8 %v1346
  %v1348 = vlaneseq
  %v1349 = vshrl.u32 %v1348, 7
  %v1350 = vsub.s32 %v1347, %v1349
  %v1351 = vrot.slane %v1340, %v1350
  %v1353 = vunpack.c.l.s4 1966171168
  %v1354 = vunpack.c.0.s8 %v1353
  %v1355 = vlaneseq
  %v1356 = vshrl.u32 %v1355, 7
  %v1357 = vsub.s32 %v1354, %v1356
  %v1358 = vrot.slane %v1344, %v1357
  %v1359 = vcombine.high %v1351, %v1351
  %v1360 = vcombine.high %v1358, %v1358
  %v1362 = vunpack.c.l.s4 1966171168
  %v1363 = vunpack.c.0.s8 %v1362
  %v1364 = vlaneseq
  %v1365 = vshrl.u32 %v1364, 7
  %v1366 = vsub.s32 %v1363, %v1365
  %v1367 = vrot.slane %v1351, %v1366
  %v1369 = vunpack.c.l.s4 1966171168
  %v1370 = vunpack.c.0.s8 %v1369
  %v1371 = vlaneseq
  %v1372 = vshrl.u32 %v1371, 7
  %v1373 = vsub.s32 %v1370, %v1372
  %v1374 = vrot.slane %v1358, %v1373
  %v1376 = vunpack.c.l.s4 1966171168
  %v1377 = vunpack.c.0.s8 %v1376
  %v1378 = vlaneseq
  %v1379 = vshrl.u32 %v1378, 7
  %v1380 = vsub.s32 %v1377, %v1379
  %v1381 = vrot.slane %v1359, %v1380
  %v1383 = vunpack.c.l.s4 1966171168
  %v1384 = vunpack.c.0.s8 %v1383
  %v1385 = vlaneseq
  %v1386 = vshrl.u32 %v1385, 7
  %v1387 = vsub.s32 %v1384, %v1386
  %v1388 = vrot.slane %v1360, %v1387
  %v1389 = vcombine.high %v1367, %v1367
  %v1390 = vcombine.high %v1374, %v1374
  %v1391 = vcombine.high %v1381, %v1381
  %v1392 = vcombine.high %v1388, %v1388
  %v1393 = vcombine.high %v1341, %v1341
  %v1395 = vunpack.c.l.s4 1966171168
  %v1396 = vunpack.c.0.s8 %v1395
  %v1397 = vlaneseq
  %v1398 = vshrl.u32 %v1397, 7
  %v1399 = vsub.s32 %v1396, %v1398
  %v1400 = vrot.slane %v1341, %v1399
  %v1402 = vunpack.c.l.s4 1966171168
  %v1403 = vunpack.c.0.s8 %v1402
  %v1404 = vlaneseq
  %v1405 = vshrl.u32 %v1404, 7
  %v1406 = vsub.s32 %v1403, %v1405
  %v1407 = vrot.slane %v1393, %v1406
  %v1408 = vcombine.high %v1400, %v1400
  %v1409 = vcombine.high %v1407, %v1407
  %v1411 = vunpack.c.l.s4 1966171168
  %v1412 = vunpack.c.0.s8 %v1411
  %v1413 = vlaneseq
  %v1414 = vshrl.u32 %v1413, 7
  %v1415 = vsub.s32 %v1412, %v1414
  %v1416 = vrot.slane %v1400, %v1415
  %v1418 = vunpack.c.l.s4 1966171168
  %v1419 = vunpack.c.0.s8 %v1418
  %v1420 = vlaneseq
  %v1421 = vshrl.u32 %v1420, 7
  %v1422 = vsub.s32 %v1419, %v1421
  %v1423 = vrot.slane %v1407, %v1422
  %v1425 = vunpack.c.l.s4 1966171168
  %v1426 = vunpack.c.0.s8 %v1425
  %v1427 = vlaneseq
  %v1428 = vshrl.u32 %v1427, 7
  %v1429 = vsub.s32 %v1426, %v1428
  %v1430 = vrot.slane %v1408, %v1429
  %v1432 = vunpack.c.l.s4 1966171168
  %v1433 = vunpack.c.0.s8 %v1432
  %v1434 = vlaneseq
  %v1435 = vshrl.u32 %v1434, 7
  %v1436 = vsub.s32 %v1433, %v1435
  %v1437 = vrot.slane %v1409, %v1436
  %v1438 = vcombine.high %v1416, %v1416
  %v1439 = vcombine.high %v1423, %v1423
  %v1440 = vcombine.high %v1430, %v1430
  %v1441 = vcombine.high %v1437, %v1437
  %v1442 = vlaneseq
  %v1443 = vshrl.u32 %v1442, 7
  %v1444 = vsub.s32 0, %v1443
  %v1445 = vrot.slane %v1367, %v1444
  %v1446 = vlaneseq
  %v1447 = vshrl.u32 %v1446, 7
  %v1448 = vsub.s32 0, %v1447
  %v1449 = vrot.slane %v1381, %v1448
  %v1450 = vlaneseq
  %v1451 = vshrl.u32 %v1450, 7
  %v1452 = vsub.s32 0, %v1451
  %v1453 = vrot.slane %v1389, %v1452
  %v1454 = vlaneseq
  %v1455 = vshrl.u32 %v1454, 7
  %v1456 = vsub.s32 0, %v1455
  %v1457 = vrot.slane %v1391, %v1456
  %v1458 = vlaneseq
  %v1459 = vshrl.u32 %v1458, 7
  %v1460 = vsub.s32 0, %v1459
  %v1461 = vrot.slane %v1374, %v1460
  %v1462 = vlaneseq
  %v1463 = vshrl.u32 %v1462, 7
  %v1464 = vsub.s32 0, %v1463
  %v1465 = vrot.slane %v1388, %v1464
  %v1466 = vlaneseq
  %v1467 = vshrl.u32 %v1466, 7
  %v1468 = vsub.s32 0, %v1467
  %v1469 = vrot.slane %v1390, %v1468
  %v1470 = vlaneseq
  %v1471 = vshrl.u32 %v1470, 7
  %v1472 = vsub.s32 0, %v1471
  %v1473 = vrot.slane %v1392, %v1472
  %v1474 = vlaneseq
  %v1475 = vshrl.u32 %v1474, 7
  %v1476 = vsub.s32 0, %v1475
  %v1477 = vrot.slane %v1416, %v1476
  %v1478 = vlaneseq
  %v1479 = vshrl.u32 %v1478, 7
  %v1480 = vsub.s32 0, %v1479
  %v1481 = vrot.slane %v1430, %v1480
  %v1482 = vlaneseq
  %v1483 = vshrl.u32 %v1482, 7
  %v1484 = vsub.s32 0, %v1483
  %v1485 = vrot.slane %v1438, %v1484
  %v1486 = vlaneseq
  %v1487 = vshrl.u32 %v1486, 7
  %v1488 = vsub.s32 0, %v1487
  %v1489 = vrot.slane %v1440, %v1488
  %v1490 = vlaneseq
  %v1491 = vshrl.u32 %v1490, 7
  %v1492 = vsub.s32 0, %v1491
  %v1493 = vrot.slane %v1423, %v1492
  %v1494 = vlaneseq
  %v1495 = vshrl.u32 %v1494, 7
  %v1496 = vsub.s32 0, %v1495
  %v1497 = vrot.slane %v1437, %v1496
  %v1498 = vlaneseq
  %v1499 = vshrl.u32 %v1498, 7
  %v1500 = vsub.s32 0, %v1499
  %v1501 = vrot.slane %v1439, %v1500
  %v1502 = vlaneseq
  %v1503 = vshrl.u32 %v1502, 7
  %v1504 = vsub.s32 0, %v1503
  %v1505 = vrot.slane %v1441, %v1504
  %1506 = vrot.lane.b32.xlu0 %v1445, 96
  %v1507 = vpop.permute.xlu0 %1506
  %1508 = vrot.lane.b32.xlu0 %v1449, 96
  %v1509 = vpop.permute.xlu0 %1508
  %1510 = vrot.lane.b32.xlu0 %v1453, 96
  %v1511 = vpop.permute.xlu0 %1510
  %1512 = vrot.lane.b32.xlu0 %v1457, 96
  %v1513 = vpop.permute.xlu0 %1512
  %1514 = vrot.lane.b32.xlu0 %v1461, 96
  %v1515 = vpop.permute.xlu0 %1514
  %1516 = vrot.lane.b32.xlu0 %v1465, 96
  %v1517 = vpop.permute.xlu0 %1516
  %1518 = vrot.lane.b32.xlu0 %v1469, 96
  %v1519 = vpop.permute.xlu0 %1518
  %1520 = vrot.lane.b32.xlu0 %v1473, 96
  %v1521 = vpop.permute.xlu0 %1520
  %1522 = vrot.lane.b32.xlu0 %v1477, 96
  %v1523 = vpop.permute.xlu0 %1522
  %1524 = vrot.lane.b32.xlu0 %v1481, 96
  %v1525 = vpop.permute.xlu0 %1524
  %1526 = vrot.lane.b32.xlu0 %v1485, 96
  %v1527 = vpop.permute.xlu0 %1526
  %1528 = vrot.lane.b32.xlu0 %v1489, 96
  %v1529 = vpop.permute.xlu0 %1528
  %1530 = vrot.lane.b32.xlu0 %v1493, 96
  %v1531 = vpop.permute.xlu0 %1530
  %1532 = vrot.lane.b32.xlu0 %v1497, 96
  %v1533 = vpop.permute.xlu0 %1532
  %1534 = vrot.lane.b32.xlu0 %v1501, 96
  %v1535 = vpop.permute.xlu0 %1534
  %1536 = vrot.lane.b32.xlu0 %v1505, 96
  %v1537 = vpop.permute.xlu0 %1536
  %1554 = vst.msk [vmem:[%s7 + $0x2] sm:$0x1] %vm705, %v1507
  %1555 = vst.msk [vmem:[%s7 + $0xa] sm:$0x1] %vm705, %v1509
  %1556 = vst.msk [vmem:[%s7 + $0x12] sm:$0x1] %vm705, %v1511
  %1557 = vst.msk [vmem:[%s7 + $0x1a] sm:$0x1] %vm705, %v1513
  %1558 = vst.msk [vmem:[%s7 + $0x22] sm:$0x1] %vm705, %v1515
  %1559 = vst.msk [vmem:[%s7 + $0x2a] sm:$0x1] %vm705, %v1517
  %1560 = vst.msk [vmem:[%s7 + $0x32] sm:$0x1] %vm705, %v1519
  %1561 = vst.msk [vmem:[%s7 + $0x3a] sm:$0x1] %vm705, %v1521
  %1562 = vst.msk [vmem:[%s7 + $0x42] sm:$0x1] %vm705, %v1523
  %1563 = vst.msk [vmem:[%s7 + $0x4a] sm:$0x1] %vm705, %v1525
  %1564 = vst.msk [vmem:[%s7 + $0x52] sm:$0x1] %vm705, %v1527
  %1565 = vst.msk [vmem:[%s7 + $0x5a] sm:$0x1] %vm705, %v1529
  %1566 = vst.msk [vmem:[%s7 + $0x62] sm:$0x1] %vm705, %v1531
  %1567 = vst.msk [vmem:[%s7 + $0x6a] sm:$0x1] %vm705, %v1533
  %1568 = vst.msk [vmem:[%s7 + $0x72] sm:$0x1] %vm705, %v1535
  %1569 = vst.msk [vmem:[%s7 + $0x7a] sm:$0x1] %vm705, %v1537
  %v1570 = vld [vmem:[#allocation2] sm:$0xff]
  %v1571 = vld [vmem:[#allocation2 + $0x8] sm:$0xff]
  %v1572 = vld [vmem:[%s2] sm:$0xff]
  %v1573 = vld [vmem:[%s2 + $0x8] sm:$0xff]
  %v1574 = vld [vmem:[%s2 + $0x10] sm:$0xff]
  %v1575 = vld [vmem:[%s2 + $0x18] sm:$0xff]
  %v1577 = vsel %vm296, %v1570, 0
  %v1580 = vsel %vm296, %v1571, 0
  %1582 = vmatprep.subr.mxu0 0.0
  %1583 = vmatpush1.msra.mxu0 0.0
  %1584 = vmatprep.subr.mxu0 0.0
  %1585 = vmatpush1.msra.mxu0 0.0
  %1586 = vmatprep.subr.mxu0 0.0
  %1587 = vmatpush1.msra.mxu0 0.0
  %1588 = vmatprep.subr.mxu0 0.0
  %1589 = vmatpush1.msra.mxu0 0.0
  %1590 = vmatprep.subr.mxu0 0.0
  %1591 = vmatpush1.msra.mxu0 0.0
  %1592 = vmatprep.subr.mxu0 0.0
  %1593 = vmatpush1.msra.mxu0 0.0
  %1594 = vmatprep.subr.mxu0 0.0
  %1595 = vmatpush1.msra.mxu0 0.0
  %1596 = vmatprep.subr.mxu0 0.0
  %1597 = vmatpush1.msra.mxu0 0.0
  %1598 = vmatprep.subr.mxu0 0.0
  %1599 = vmatpush1.msra.mxu0 0.0
  %1600 = vmatprep.subr.mxu0 0.0
  %1601 = vmatpush1.msra.mxu0 0.0
  %1602 = vmatprep.subr.mxu0 0.0
  %1603 = vmatpush1.msra.mxu0 0.0
  %1604 = vmatprep.subr.mxu0 0.0
  %1605 = vmatpush1.msra.mxu0 0.0
  %1606 = vmatprep.subr.mxu0 0.0
  %1607 = vmatpush1.msra.mxu0 %v1575
  %1608 = vmatprep.subr.mxu0 0.0
  %1609 = vmatpush1.msra.mxu0 %v1574
  %1610 = vmatprep.subr.mxu0 0.0
  %1611 = vmatpush1.msra.mxu0 %v1573
  %1612 = vmatprep.subr.mxu0 0.0
  %1613 = vmatpush1.msra.mxu0 %v1572
  %1614 = vmatprep.subr.mxu0 0.0
  %1615 = vmatpush2.msra.mxu0 0.0
  %1616 = vmatprep.subr.mxu0 0.0
  %1617 = vmatpush2.msra.mxu0 0.0
  %1618 = vmatprep.subr.mxu0 0.0
  %1619 = vmatpush2.msra.mxu0 0.0
  %1620 = vmatprep.subr.mxu0 0.0
  %1621 = vmatpush2.msra.mxu0 0.0
  %1622 = vmatprep.subr.mxu0 0.0
  %1623 = vmatpush2.msra.mxu0 0.0
  %1624 = vmatprep.subr.mxu0 0.0
  %1625 = vmatpush2.msra.mxu0 0.0
  %1626 = vmatprep.subr.mxu0 0.0
  %1627 = vmatpush2.msra.mxu0 0.0
  %1628 = vmatprep.subr.mxu0 0.0
  %1629 = vmatpush2.msra.mxu0 0.0
  %1630 = vmatprep.subr.mxu0 0.0
  %1631 = vmatpush2.msra.mxu0 0.0
  %1632 = vmatprep.subr.mxu0 0.0
  %1633 = vmatpush2.msra.mxu0 0.0
  %1634 = vmatprep.subr.mxu0 0.0
  %1635 = vmatpush2.msra.mxu0 0.0
  %1636 = vmatprep.subr.mxu0 0.0
  %1637 = vmatpush2.msra.mxu0 0.0
  %1638 = vmatprep.subr.mxu0 0.0
  %1639 = vmatpush2.msra.mxu0 0.0
  %1640 = vmatprep.subr.mxu0 0.0
  %1641 = vmatpush2.msra.mxu0 0.0
  %1642 = vmatprep.subr.mxu0 0.0
  %1643 = vmatpush2.msra.mxu0 0.0
  %1644 = vmatprep.subr.mxu0 0.0
  %1645 = vmatpush2.msra.mxu0 0.0
  %1646 = vmatprep.mubr.f32.mxu0 0.0
  %1647 = vmatmul.mubr.f32.gmra.mxu0 %v1577
  %v1648 = vpop.f32.mrf.mxu0
  %v1649 = vadd.f32 %v276, %v1648
  %v1650 = vpop.f32.mrf.mxu0
  %1651 = vmatprep.mubr.f32.mxu0 0.0
  %1652 = vmatmul.mubr.f32.gmra.mxu0 %v1580
  %v1653 = vpop.f32.mrf.mxu0
  %v1654 = vadd.f32 %v276, %v1653
  %v1655 = vpop.f32.mrf.mxu0
  %1656 = vdwg.mxu0
  %s1657 = scalar_lea.vmem [#allocation3], 48
  %v1658 = vld [vmem:[%s1657] sm:$0xff]
  %v1659 = vld [vmem:[%s1657 + $0x8] sm:$0xff]
  %v1660 = vadd.f32 %v1658, %v1649
  %v1661 = vadd.f32 %v1659, %v1654
  %v1662 = vxor.u32 %v1660, 2147483648
  %v1663 = vxor.u32 %v1661, 2147483648
  %v1664 = vmul.f32 %v1662, 1.442695
  %v1665 = vpow.pop %v1664
  %v1666 = vmul.f32 %v1663, 1.442695
  %v1667 = vpow.pop %v1666
  %v1668 = vadd.f32 %v1665, 1.0
  %v1669 = vadd.f32 %v1667, 1.0
  %v1670 = vrcp.pop %v1668
  %v1671 = vmul.f32 1.0, %v1670
  %v1672 = vrcp.pop %v1669
  %v1673 = vmul.f32 1.0, %v1672
  %1676 = vrot.lane.b32.xlu0 %v1649, 64
  %v1677 = vpop.permute.xlu0 %1676
  %1678 = vrot.lane.b32.xlu0 %v1654, 64
  %v1679 = vpop.permute.xlu0 %1678
  %v1682 = vmul.f32 %v1671, %v1677
  %v1683 = vmul.f32 %v1673, %v1679
  %1686 = vrot.lane.b32.xlu0 %v1682, 64
  %v1687 = vpop.permute.xlu0 %1686
  %1688 = vrot.lane.b32.xlu0 %v1683, 64
  %v1689 = vpop.permute.xlu0 %1688
  %v1692 = vadd.f32 %v1658, %v1687
  %v1693 = vadd.f32 %v1659, %v1689
  %v1694 = vtanh.pop %v1692
  %v1695 = vtanh.pop %v1693
  %v1696 = vsub.f32 1.0, %v1671
  %v1697 = vsub.f32 1.0, %v1673
  %1700 = vrot.lane.b32.xlu0 %v1694, 96
  %v1701 = vpop.permute.xlu0 %1700
  %1702 = vrot.lane.b32.xlu0 %v1695, 96
  %v1703 = vpop.permute.xlu0 %1702
  %v1706 = vmul.f32 %v1696, %v1701
  %v1707 = vmul.f32 %v1697, %v1703
  %1708 = vrot.lane.b32.xlu0 %v1570, 32
  %v1709 = vpop.permute.xlu0 %1708
  %1710 = vrot.lane.b32.xlu0 %v1571, 32
  %v1711 = vpop.permute.xlu0 %1710
  %v1714 = vmul.f32 %v1671, %v1709
  %v1715 = vmul.f32 %v1673, %v1711
  %v1716 = vadd.f32 %v1706, %v1714
  %v1717 = vadd.f32 %v1707, %v1715
  %1720 = vrot.lane.b32.xlu0 %v1716, 96
  %v1721 = vpop.permute.xlu0 %1720
  %1722 = vrot.lane.b32.xlu0 %v1717, 96
  %v1723 = vpop.permute.xlu0 %1722
  %1726 = vst.msk [vmem:[#allocation2] sm:$0xff] %vm296, %v1721
  %1727 = vst.msk [vmem:[#allocation2 + $0x8] sm:$0xff] %vm296, %v1723
  %v1728 = vsel %vm296, %v1721, 0.0
  %1729 = vadd.xlane.f32.xlu0 %v1728
  %v1730 = vpop.xlane.xlu0 %1729
  %v1731 = vsel %vm296, %v1723, 0.0
  %1732 = vadd.xlane.f32.xlu0 %v1731
  %v1733 = vpop.xlane.xlu0 %1732
  %v1734 = vmul.f32 %v1730, %v454
  %v1735 = vmul.f32 %v1733, %v454
  %v1736 = vsub.f32 %v1716, %v1734
  %v1737 = vsub.f32 %v1717, %v1735
  %v1738 = vmul.f32 %v1736, %v1736
  %v1739 = vmul.f32 %v1737, %v1737
  %1742 = vrot.lane.b32.xlu0 %v1738, 96
  %v1743 = vpop.permute.xlu0 %1742
  %1744 = vrot.lane.b32.xlu0 %v1739, 96
  %v1745 = vpop.permute.xlu0 %1744
  %v1748 = vsel %vm296, %v1743, 0.0
  %1749 = vadd.xlane.f32.xlu0 %v1748
  %v1750 = vpop.xlane.xlu0 %1749
  %v1751 = vsel %vm296, %v1745, 0.0
  %1752 = vadd.xlane.f32.xlu0 %v1751
  %v1753 = vpop.xlane.xlu0 %1752
  %v1754 = vmul.f32 %v1750, %v454
  %v1755 = vmul.f32 %v1753, %v454
  %v1756 = vadd.f32 %v1754, 1e-05
  %v1757 = vadd.f32 %v1755, 1e-05
  %v1758 = vrsqrt.pop %v1756
  %v1759 = vrsqrt.pop %v1757
  %v1760 = vmul.f32 %v1736, %v1758
  %v1761 = vmul.f32 %v1737, %v1759
  %v1762 = vmul.f32 %v1760, %v484
  %v1763 = vmul.f32 %v1761, %v484
  %v1764 = vadd.f32 %v1762, %v489
  %v1765 = vadd.f32 %v1763, %v489
  %v1768 = vcombine.high %v1764, %v1764
  %v1770 = vunpack.c.l.s4 1966171168
  %v1771 = vunpack.c.0.s8 %v1770
  %v1772 = vlaneseq
  %v1773 = vshrl.u32 %v1772, 7
  %v1774 = vsub.s32 %v1771, %v1773
  %v1775 = vrot.slane %v1764, %v1774
  %v1777 = vunpack.c.l.s4 1966171168
  %v1778 = vunpack.c.0.s8 %v1777
  %v1779 = vlaneseq
  %v1780 = vshrl.u32 %v1779, 7
  %v1781 = vsub.s32 %v1778, %v1780
  %v1782 = vrot.slane %v1768, %v1781
  %v1783 = vcombine.high %v1775, %v1775
  %v1784 = vcombine.high %v1782, %v1782
  %v1786 = vunpack.c.l.s4 1966171168
  %v1787 = vunpack.c.0.s8 %v1786
  %v1788 = vlaneseq
  %v1789 = vshrl.u32 %v1788, 7
  %v1790 = vsub.s32 %v1787, %v1789
  %v1791 = vrot.slane %v1775, %v1790
  %v1793 = vunpack.c.l.s4 1966171168
  %v1794 = vunpack.c.0.s8 %v1793
  %v1795 = vlaneseq
  %v1796 = vshrl.u32 %v1795, 7
  %v1797 = vsub.s32 %v1794, %v1796
  %v1798 = vrot.slane %v1782, %v1797
  %v1800 = vunpack.c.l.s4 1966171168
  %v1801 = vunpack.c.0.s8 %v1800
  %v1802 = vlaneseq
  %v1803 = vshrl.u32 %v1802, 7
  %v1804 = vsub.s32 %v1801, %v1803
  %v1805 = vrot.slane %v1783, %v1804
  %v1807 = vunpack.c.l.s4 1966171168
  %v1808 = vunpack.c.0.s8 %v1807
  %v1809 = vlaneseq
  %v1810 = vshrl.u32 %v1809, 7
  %v1811 = vsub.s32 %v1808, %v1810
  %v1812 = vrot.slane %v1784, %v1811
  %v1813 = vcombine.high %v1791, %v1791
  %v1814 = vcombine.high %v1798, %v1798
  %v1815 = vcombine.high %v1805, %v1805
  %v1816 = vcombine.high %v1812, %v1812
  %v1817 = vcombine.high %v1765, %v1765
  %v1819 = vunpack.c.l.s4 1966171168
  %v1820 = vunpack.c.0.s8 %v1819
  %v1821 = vlaneseq
  %v1822 = vshrl.u32 %v1821, 7
  %v1823 = vsub.s32 %v1820, %v1822
  %v1824 = vrot.slane %v1765, %v1823
  %v1826 = vunpack.c.l.s4 1966171168
  %v1827 = vunpack.c.0.s8 %v1826
  %v1828 = vlaneseq
  %v1829 = vshrl.u32 %v1828, 7
  %v1830 = vsub.s32 %v1827, %v1829
  %v1831 = vrot.slane %v1817, %v1830
  %v1832 = vcombine.high %v1824, %v1824
  %v1833 = vcombine.high %v1831, %v1831
  %v1835 = vunpack.c.l.s4 1966171168
  %v1836 = vunpack.c.0.s8 %v1835
  %v1837 = vlaneseq
  %v1838 = vshrl.u32 %v1837, 7
  %v1839 = vsub.s32 %v1836, %v1838
  %v1840 = vrot.slane %v1824, %v1839
  %v1842 = vunpack.c.l.s4 1966171168
  %v1843 = vunpack.c.0.s8 %v1842
  %v1844 = vlaneseq
  %v1845 = vshrl.u32 %v1844, 7
  %v1846 = vsub.s32 %v1843, %v1845
  %v1847 = vrot.slane %v1831, %v1846
  %v1849 = vunpack.c.l.s4 1966171168
  %v1850 = vunpack.c.0.s8 %v1849
  %v1851 = vlaneseq
  %v1852 = vshrl.u32 %v1851, 7
  %v1853 = vsub.s32 %v1850, %v1852
  %v1854 = vrot.slane %v1832, %v1853
  %v1856 = vunpack.c.l.s4 1966171168
  %v1857 = vunpack.c.0.s8 %v1856
  %v1858 = vlaneseq
  %v1859 = vshrl.u32 %v1858, 7
  %v1860 = vsub.s32 %v1857, %v1859
  %v1861 = vrot.slane %v1833, %v1860
  %v1862 = vcombine.high %v1840, %v1840
  %v1863 = vcombine.high %v1847, %v1847
  %v1864 = vcombine.high %v1854, %v1854
  %v1865 = vcombine.high %v1861, %v1861
  %v1866 = vlaneseq
  %v1867 = vshrl.u32 %v1866, 7
  %v1868 = vsub.s32 0, %v1867
  %v1869 = vrot.slane %v1791, %v1868
  %v1870 = vlaneseq
  %v1871 = vshrl.u32 %v1870, 7
  %v1872 = vsub.s32 0, %v1871
  %v1873 = vrot.slane %v1805, %v1872
  %v1874 = vlaneseq
  %v1875 = vshrl.u32 %v1874, 7
  %v1876 = vsub.s32 0, %v1875
  %v1877 = vrot.slane %v1813, %v1876
  %v1878 = vlaneseq
  %v1879 = vshrl.u32 %v1878, 7
  %v1880 = vsub.s32 0, %v1879
  %v1881 = vrot.slane %v1815, %v1880
  %v1882 = vlaneseq
  %v1883 = vshrl.u32 %v1882, 7
  %v1884 = vsub.s32 0, %v1883
  %v1885 = vrot.slane %v1798, %v1884
  %v1886 = vlaneseq
  %v1887 = vshrl.u32 %v1886, 7
  %v1888 = vsub.s32 0, %v1887
  %v1889 = vrot.slane %v1812, %v1888
  %v1890 = vlaneseq
  %v1891 = vshrl.u32 %v1890, 7
  %v1892 = vsub.s32 0, %v1891
  %v1893 = vrot.slane %v1814, %v1892
  %v1894 = vlaneseq
  %v1895 = vshrl.u32 %v1894, 7
  %v1896 = vsub.s32 0, %v1895
  %v1897 = vrot.slane %v1816, %v1896
  %v1898 = vlaneseq
  %v1899 = vshrl.u32 %v1898, 7
  %v1900 = vsub.s32 0, %v1899
  %v1901 = vrot.slane %v1840, %v1900
  %v1902 = vlaneseq
  %v1903 = vshrl.u32 %v1902, 7
  %v1904 = vsub.s32 0, %v1903
  %v1905 = vrot.slane %v1854, %v1904
  %v1906 = vlaneseq
  %v1907 = vshrl.u32 %v1906, 7
  %v1908 = vsub.s32 0, %v1907
  %v1909 = vrot.slane %v1862, %v1908
  %v1910 = vlaneseq
  %v1911 = vshrl.u32 %v1910, 7
  %v1912 = vsub.s32 0, %v1911
  %v1913 = vrot.slane %v1864, %v1912
  %v1914 = vlaneseq
  %v1915 = vshrl.u32 %v1914, 7
  %v1916 = vsub.s32 0, %v1915
  %v1917 = vrot.slane %v1847, %v1916
  %v1918 = vlaneseq
  %v1919 = vshrl.u32 %v1918, 7
  %v1920 = vsub.s32 0, %v1919
  %v1921 = vrot.slane %v1861, %v1920
  %v1922 = vlaneseq
  %v1923 = vshrl.u32 %v1922, 7
  %v1924 = vsub.s32 0, %v1923
  %v1925 = vrot.slane %v1863, %v1924
  %v1926 = vlaneseq
  %v1927 = vshrl.u32 %v1926, 7
  %v1928 = vsub.s32 0, %v1927
  %v1929 = vrot.slane %v1865, %v1928
  %1930 = vrot.lane.b32.xlu0 %v1869, 96
  %v1931 = vpop.permute.xlu0 %1930
  %1932 = vrot.lane.b32.xlu0 %v1873, 96
  %v1933 = vpop.permute.xlu0 %1932
  %1934 = vrot.lane.b32.xlu0 %v1877, 96
  %v1935 = vpop.permute.xlu0 %1934
  %1936 = vrot.lane.b32.xlu0 %v1881, 96
  %v1937 = vpop.permute.xlu0 %1936
  %1938 = vrot.lane.b32.xlu0 %v1885, 96
  %v1939 = vpop.permute.xlu0 %1938
  %1940 = vrot.lane.b32.xlu0 %v1889, 96
  %v1941 = vpop.permute.xlu0 %1940
  %1942 = vrot.lane.b32.xlu0 %v1893, 96
  %v1943 = vpop.permute.xlu0 %1942
  %1944 = vrot.lane.b32.xlu0 %v1897, 96
  %v1945 = vpop.permute.xlu0 %1944
  %1946 = vrot.lane.b32.xlu0 %v1901, 96
  %v1947 = vpop.permute.xlu0 %1946
  %1948 = vrot.lane.b32.xlu0 %v1905, 96
  %v1949 = vpop.permute.xlu0 %1948
  %1950 = vrot.lane.b32.xlu0 %v1909, 96
  %v1951 = vpop.permute.xlu0 %1950
  %1952 = vrot.lane.b32.xlu0 %v1913, 96
  %v1953 = vpop.permute.xlu0 %1952
  %1954 = vrot.lane.b32.xlu0 %v1917, 96
  %v1955 = vpop.permute.xlu0 %1954
  %1956 = vrot.lane.b32.xlu0 %v1921, 96
  %v1957 = vpop.permute.xlu0 %1956
  %1958 = vrot.lane.b32.xlu0 %v1925, 96
  %v1959 = vpop.permute.xlu0 %1958
  %1960 = vrot.lane.b32.xlu0 %v1929, 96
  %v1961 = vpop.permute.xlu0 %1960
  %1978 = vst.msk [vmem:[%s7 + $0x3] sm:$0x1] %vm705, %v1931
  %1979 = vst.msk [vmem:[%s7 + $0xb] sm:$0x1] %vm705, %v1933
  %1980 = vst.msk [vmem:[%s7 + $0x13] sm:$0x1] %vm705, %v1935
  %1981 = vst.msk [vmem:[%s7 + $0x1b] sm:$0x1] %vm705, %v1937
  %1982 = vst.msk [vmem:[%s7 + $0x23] sm:$0x1] %vm705, %v1939
  %1983 = vst.msk [vmem:[%s7 + $0x2b] sm:$0x1] %vm705, %v1941
  %1984 = vst.msk [vmem:[%s7 + $0x33] sm:$0x1] %vm705, %v1943
  %1985 = vst.msk [vmem:[%s7 + $0x3b] sm:$0x1] %vm705, %v1945
  %1986 = vst.msk [vmem:[%s7 + $0x43] sm:$0x1] %vm705, %v1947
  %1987 = vst.msk [vmem:[%s7 + $0x4b] sm:$0x1] %vm705, %v1949
  %1988 = vst.msk [vmem:[%s7 + $0x53] sm:$0x1] %vm705, %v1951
  %1989 = vst.msk [vmem:[%s7 + $0x5b] sm:$0x1] %vm705, %v1953
  %1990 = vst.msk [vmem:[%s7 + $0x63] sm:$0x1] %vm705, %v1955
  %1991 = vst.msk [vmem:[%s7 + $0x6b] sm:$0x1] %vm705, %v1957
  %1992 = vst.msk [vmem:[%s7 + $0x73] sm:$0x1] %vm705, %v1959
  %1993 = vst.msk [vmem:[%s7 + $0x7b] sm:$0x1] %vm705, %v1961
  %v1994 = vld [vmem:[#allocation2] sm:$0xff]
  %v1995 = vld [vmem:[#allocation2 + $0x8] sm:$0xff]
  %v1996 = vld [vmem:[%s2] sm:$0xff]
  %v1997 = vld [vmem:[%s2 + $0x8] sm:$0xff]
  %v1998 = vld [vmem:[%s2 + $0x10] sm:$0xff]
  %v1999 = vld [vmem:[%s2 + $0x18] sm:$0xff]
  %v2001 = vsel %vm296, %v1994, 0
  %v2004 = vsel %vm296, %v1995, 0
  %2006 = vmatprep.subr.mxu0 0.0
  %2007 = vmatpush1.msra.mxu0 0.0
  %2008 = vmatprep.subr.mxu0 0.0
  %2009 = vmatpush1.msra.mxu0 0.0
  %2010 = vmatprep.subr.mxu0 0.0
  %2011 = vmatpush1.msra.mxu0 0.0
  %2012 = vmatprep.subr.mxu0 0.0
  %2013 = vmatpush1.msra.mxu0 0.0
  %2014 = vmatprep.subr.mxu0 0.0
  %2015 = vmatpush1.msra.mxu0 0.0
  %2016 = vmatprep.subr.mxu0 0.0
  %2017 = vmatpush1.msra.mxu0 0.0
  %2018 = vmatprep.subr.mxu0 0.0
  %2019 = vmatpush1.msra.mxu0 0.0
  %2020 = vmatprep.subr.mxu0 0.0
  %2021 = vmatpush1.msra.mxu0 0.0
  %2022 = vmatprep.subr.mxu0 0.0
  %2023 = vmatpush1.msra.mxu0 0.0
  %2024 = vmatprep.subr.mxu0 0.0
  %2025 = vmatpush1.msra.mxu0 0.0
  %2026 = vmatprep.subr.mxu0 0.0
  %2027 = vmatpush1.msra.mxu0 0.0
  %2028 = vmatprep.subr.mxu0 0.0
  %2029 = vmatpush1.msra.mxu0 0.0
  %2030 = vmatprep.subr.mxu0 0.0
  %2031 = vmatpush1.msra.mxu0 %v1999
  %2032 = vmatprep.subr.mxu0 0.0
  %2033 = vmatpush1.msra.mxu0 %v1998
  %2034 = vmatprep.subr.mxu0 0.0
  %2035 = vmatpush1.msra.mxu0 %v1997
  %2036 = vmatprep.subr.mxu0 0.0
  %2037 = vmatpush1.msra.mxu0 %v1996
  %2038 = vmatprep.subr.mxu0 0.0
  %2039 = vmatpush2.msra.mxu0 0.0
  %2040 = vmatprep.subr.mxu0 0.0
  %2041 = vmatpush2.msra.mxu0 0.0
  %2042 = vmatprep.subr.mxu0 0.0
  %2043 = vmatpush2.msra.mxu0 0.0
  %2044 = vmatprep.subr.mxu0 0.0
  %2045 = vmatpush2.msra.mxu0 0.0
  %2046 = vmatprep.subr.mxu0 0.0
  %2047 = vmatpush2.msra.mxu0 0.0
  %2048 = vmatprep.subr.mxu0 0.0
  %2049 = vmatpush2.msra.mxu0 0.0
  %2050 = vmatprep.subr.mxu0 0.0
  %2051 = vmatpush2.msra.mxu0 0.0
  %2052 = vmatprep.subr.mxu0 0.0
  %2053 = vmatpush2.msra.mxu0 0.0
  %2054 = vmatprep.subr.mxu0 0.0
  %2055 = vmatpush2.msra.mxu0 0.0
  %2056 = vmatprep.subr.mxu0 0.0
  %2057 = vmatpush2.msra.mxu0 0.0
  %2058 = vmatprep.subr.mxu0 0.0
  %2059 = vmatpush2.msra.mxu0 0.0
  %2060 = vmatprep.subr.mxu0 0.0
  %2061 = vmatpush2.msra.mxu0 0.0
  %2062 = vmatprep.subr.mxu0 0.0
  %2063 = vmatpush2.msra.mxu0 0.0
  %2064 = vmatprep.subr.mxu0 0.0
  %2065 = vmatpush2.msra.mxu0 0.0
  %2066 = vmatprep.subr.mxu0 0.0
  %2067 = vmatpush2.msra.mxu0 0.0
  %2068 = vmatprep.subr.mxu0 0.0
  %2069 = vmatpush2.msra.mxu0 0.0
  %2070 = vmatprep.mubr.f32.mxu0 0.0
  %2071 = vmatmul.mubr.f32.gmra.mxu0 %v2001
  %v2072 = vpop.f32.mrf.mxu0
  %v2073 = vadd.f32 %v276, %v2072
  %v2074 = vpop.f32.mrf.mxu0
  %2075 = vmatprep.mubr.f32.mxu0 0.0
  %2076 = vmatmul.mubr.f32.gmra.mxu0 %v2004
  %v2077 = vpop.f32.mrf.mxu0
  %v2078 = vadd.f32 %v276, %v2077
  %v2079 = vpop.f32.mrf.mxu0
  %2080 = vdwg.mxu0
  %s2081 = scalar_lea.vmem [#allocation3], 64
  %v2082 = vld [vmem:[%s2081] sm:$0xff]
  %v2083 = vld [vmem:[%s2081 + $0x8] sm:$0xff]
  %v2084 = vadd.f32 %v2082, %v2073
  %v2085 = vadd.f32 %v2083, %v2078
  %v2086 = vxor.u32 %v2084, 2147483648
  %v2087 = vxor.u32 %v2085, 2147483648
  %v2088 = vmul.f32 %v2086, 1.442695
  %v2089 = vpow.pop %v2088
  %v2090 = vmul.f32 %v2087, 1.442695
  %v2091 = vpow.pop %v2090
  %v2092 = vadd.f32 %v2089, 1.0
  %v2093 = vadd.f32 %v2091, 1.0
  %v2094 = vrcp.pop %v2092
  %v2095 = vmul.f32 1.0, %v2094
  %v2096 = vrcp.pop %v2093
  %v2097 = vmul.f32 1.0, %v2096
  %2100 = vrot.lane.b32.xlu0 %v2073, 64
  %v2101 = vpop.permute.xlu0 %2100
  %2102 = vrot.lane.b32.xlu0 %v2078, 64
  %v2103 = vpop.permute.xlu0 %2102
  %v2106 = vmul.f32 %v2095, %v2101
  %v2107 = vmul.f32 %v2097, %v2103
  %2110 = vrot.lane.b32.xlu0 %v2106, 64
  %v2111 = vpop.permute.xlu0 %2110
  %2112 = vrot.lane.b32.xlu0 %v2107, 64
  %v2113 = vpop.permute.xlu0 %2112
  %v2116 = vadd.f32 %v2082, %v2111
  %v2117 = vadd.f32 %v2083, %v2113
  %v2118 = vtanh.pop %v2116
  %v2119 = vtanh.pop %v2117
  %v2120 = vsub.f32 1.0, %v2095
  %v2121 = vsub.f32 1.0, %v2097
  %2124 = vrot.lane.b32.xlu0 %v2118, 96
  %v2125 = vpop.permute.xlu0 %2124
  %2126 = vrot.lane.b32.xlu0 %v2119, 96
  %v2127 = vpop.permute.xlu0 %2126
  %v2130 = vmul.f32 %v2120, %v2125
  %v2131 = vmul.f32 %v2121, %v2127
  %2132 = vrot.lane.b32.xlu0 %v1994, 32
  %v2133 = vpop.permute.xlu0 %2132
  %2134 = vrot.lane.b32.xlu0 %v1995, 32
  %v2135 = vpop.permute.xlu0 %2134
  %v2138 = vmul.f32 %v2095, %v2133
  %v2139 = vmul.f32 %v2097, %v2135
  %v2140 = vadd.f32 %v2130, %v2138
  %v2141 = vadd.f32 %v2131, %v2139
  %2144 = vrot.lane.b32.xlu0 %v2140, 96
  %v2145 = vpop.permute.xlu0 %2144
  %2146 = vrot.lane.b32.xlu0 %v2141, 96
  %v2147 = vpop.permute.xlu0 %2146
  %2150 = vst.msk [vmem:[#allocation2] sm:$0xff] %vm296, %v2145
  %2151 = vst.msk [vmem:[#allocation2 + $0x8] sm:$0xff] %vm296, %v2147
  %v2152 = vsel %vm296, %v2145, 0.0
  %2153 = vadd.xlane.f32.xlu0 %v2152
  %v2154 = vpop.xlane.xlu0 %2153
  %v2155 = vsel %vm296, %v2147, 0.0
  %2156 = vadd.xlane.f32.xlu0 %v2155
  %v2157 = vpop.xlane.xlu0 %2156
  %v2158 = vmul.f32 %v2154, %v454
  %v2159 = vmul.f32 %v2157, %v454
  %v2160 = vsub.f32 %v2140, %v2158
  %v2161 = vsub.f32 %v2141, %v2159
  %v2162 = vmul.f32 %v2160, %v2160
  %v2163 = vmul.f32 %v2161, %v2161
  %2166 = vrot.lane.b32.xlu0 %v2162, 96
  %v2167 = vpop.permute.xlu0 %2166
  %2168 = vrot.lane.b32.xlu0 %v2163, 96
  %v2169 = vpop.permute.xlu0 %2168
  %v2172 = vsel %vm296, %v2167, 0.0
  %2173 = vadd.xlane.f32.xlu0 %v2172
  %v2174 = vpop.xlane.xlu0 %2173
  %v2175 = vsel %vm296, %v2169, 0.0
  %2176 = vadd.xlane.f32.xlu0 %v2175
  %v2177 = vpop.xlane.xlu0 %2176
  %v2178 = vmul.f32 %v2174, %v454
  %v2179 = vmul.f32 %v2177, %v454
  %v2180 = vadd.f32 %v2178, 1e-05
  %v2181 = vadd.f32 %v2179, 1e-05
  %v2182 = vrsqrt.pop %v2180
  %v2183 = vrsqrt.pop %v2181
  %v2184 = vmul.f32 %v2160, %v2182
  %v2185 = vmul.f32 %v2161, %v2183
  %v2186 = vmul.f32 %v2184, %v484
  %v2187 = vmul.f32 %v2185, %v484
  %v2188 = vadd.f32 %v2186, %v489
  %v2189 = vadd.f32 %v2187, %v489
  %v2192 = vcombine.high %v2188, %v2188
  %v2194 = vunpack.c.l.s4 1966171168
  %v2195 = vunpack.c.0.s8 %v2194
  %v2196 = vlaneseq
  %v2197 = vshrl.u32 %v2196, 7
  %v2198 = vsub.s32 %v2195, %v2197
  %v2199 = vrot.slane %v2188, %v2198
  %v2201 = vunpack.c.l.s4 1966171168
  %v2202 = vunpack.c.0.s8 %v2201
  %v2203 = vlaneseq
  %v2204 = vshrl.u32 %v2203, 7
  %v2205 = vsub.s32 %v2202, %v2204
  %v2206 = vrot.slane %v2192, %v2205
  %v2207 = vcombine.high %v2199, %v2199
  %v2208 = vcombine.high %v2206, %v2206
  %v2210 = vunpack.c.l.s4 1966171168
  %v2211 = vunpack.c.0.s8 %v2210
  %v2212 = vlaneseq
  %v2213 = vshrl.u32 %v2212, 7
  %v2214 = vsub.s32 %v2211, %v2213
  %v2215 = vrot.slane %v2199, %v2214
  %v2217 = vunpack.c.l.s4 1966171168
  %v2218 = vunpack.c.0.s8 %v2217
  %v2219 = vlaneseq
  %v2220 = vshrl.u32 %v2219, 7
  %v2221 = vsub.s32 %v2218, %v2220
  %v2222 = vrot.slane %v2206, %v2221
  %v2224 = vunpack.c.l.s4 1966171168
  %v2225 = vunpack.c.0.s8 %v2224
  %v2226 = vlaneseq
  %v2227 = vshrl.u32 %v2226, 7
  %v2228 = vsub.s32 %v2225, %v2227
  %v2229 = vrot.slane %v2207, %v2228
  %v2231 = vunpack.c.l.s4 1966171168
  %v2232 = vunpack.c.0.s8 %v2231
  %v2233 = vlaneseq
  %v2234 = vshrl.u32 %v2233, 7
  %v2235 = vsub.s32 %v2232, %v2234
  %v2236 = vrot.slane %v2208, %v2235
  %v2237 = vcombine.high %v2215, %v2215
  %v2238 = vcombine.high %v2222, %v2222
  %v2239 = vcombine.high %v2229, %v2229
  %v2240 = vcombine.high %v2236, %v2236
  %v2241 = vcombine.high %v2189, %v2189
  %v2243 = vunpack.c.l.s4 1966171168
  %v2244 = vunpack.c.0.s8 %v2243
  %v2245 = vlaneseq
  %v2246 = vshrl.u32 %v2245, 7
  %v2247 = vsub.s32 %v2244, %v2246
  %v2248 = vrot.slane %v2189, %v2247
  %v2250 = vunpack.c.l.s4 1966171168
  %v2251 = vunpack.c.0.s8 %v2250
  %v2252 = vlaneseq
  %v2253 = vshrl.u32 %v2252, 7
  %v2254 = vsub.s32 %v2251, %v2253
  %v2255 = vrot.slane %v2241, %v2254
  %v2256 = vcombine.high %v2248, %v2248
  %v2257 = vcombine.high %v2255, %v2255
  %v2259 = vunpack.c.l.s4 1966171168
  %v2260 = vunpack.c.0.s8 %v2259
  %v2261 = vlaneseq
  %v2262 = vshrl.u32 %v2261, 7
  %v2263 = vsub.s32 %v2260, %v2262
  %v2264 = vrot.slane %v2248, %v2263
  %v2266 = vunpack.c.l.s4 1966171168
  %v2267 = vunpack.c.0.s8 %v2266
  %v2268 = vlaneseq
  %v2269 = vshrl.u32 %v2268, 7
  %v2270 = vsub.s32 %v2267, %v2269
  %v2271 = vrot.slane %v2255, %v2270
  %v2273 = vunpack.c.l.s4 1966171168
  %v2274 = vunpack.c.0.s8 %v2273
  %v2275 = vlaneseq
  %v2276 = vshrl.u32 %v2275, 7
  %v2277 = vsub.s32 %v2274, %v2276
  %v2278 = vrot.slane %v2256, %v2277
  %v2280 = vunpack.c.l.s4 1966171168
  %v2281 = vunpack.c.0.s8 %v2280
  %v2282 = vlaneseq
  %v2283 = vshrl.u32 %v2282, 7
  %v2284 = vsub.s32 %v2281, %v2283
  %v2285 = vrot.slane %v2257, %v2284
  %v2286 = vcombine.high %v2264, %v2264
  %v2287 = vcombine.high %v2271, %v2271
  %v2288 = vcombine.high %v2278, %v2278
  %v2289 = vcombine.high %v2285, %v2285
  %v2290 = vlaneseq
  %v2291 = vshrl.u32 %v2290, 7
  %v2292 = vsub.s32 0, %v2291
  %v2293 = vrot.slane %v2215, %v2292
  %v2294 = vlaneseq
  %v2295 = vshrl.u32 %v2294, 7
  %v2296 = vsub.s32 0, %v2295
  %v2297 = vrot.slane %v2229, %v2296
  %v2298 = vlaneseq
  %v2299 = vshrl.u32 %v2298, 7
  %v2300 = vsub.s32 0, %v2299
  %v2301 = vrot.slane %v2237, %v2300
  %v2302 = vlaneseq
  %v2303 = vshrl.u32 %v2302, 7
  %v2304 = vsub.s32 0, %v2303
  %v2305 = vrot.slane %v2239, %v2304
  %v2306 = vlaneseq
  %v2307 = vshrl.u32 %v2306, 7
  %v2308 = vsub.s32 0, %v2307
  %v2309 = vrot.slane %v2222, %v2308
  %v2310 = vlaneseq
  %v2311 = vshrl.u32 %v2310, 7
  %v2312 = vsub.s32 0, %v2311
  %v2313 = vrot.slane %v2236, %v2312
  %v2314 = vlaneseq
  %v2315 = vshrl.u32 %v2314, 7
  %v2316 = vsub.s32 0, %v2315
  %v2317 = vrot.slane %v2238, %v2316
  %v2318 = vlaneseq
  %v2319 = vshrl.u32 %v2318, 7
  %v2320 = vsub.s32 0, %v2319
  %v2321 = vrot.slane %v2240, %v2320
  %v2322 = vlaneseq
  %v2323 = vshrl.u32 %v2322, 7
  %v2324 = vsub.s32 0, %v2323
  %v2325 = vrot.slane %v2264, %v2324
  %v2326 = vlaneseq
  %v2327 = vshrl.u32 %v2326, 7
  %v2328 = vsub.s32 0, %v2327
  %v2329 = vrot.slane %v2278, %v2328
  %v2330 = vlaneseq
  %v2331 = vshrl.u32 %v2330, 7
  %v2332 = vsub.s32 0, %v2331
  %v2333 = vrot.slane %v2286, %v2332
  %v2334 = vlaneseq
  %v2335 = vshrl.u32 %v2334, 7
  %v2336 = vsub.s32 0, %v2335
  %v2337 = vrot.slane %v2288, %v2336
  %v2338 = vlaneseq
  %v2339 = vshrl.u32 %v2338, 7
  %v2340 = vsub.s32 0, %v2339
  %v2341 = vrot.slane %v2271, %v2340
  %v2342 = vlaneseq
  %v2343 = vshrl.u32 %v2342, 7
  %v2344 = vsub.s32 0, %v2343
  %v2345 = vrot.slane %v2285, %v2344
  %v2346 = vlaneseq
  %v2347 = vshrl.u32 %v2346, 7
  %v2348 = vsub.s32 0, %v2347
  %v2349 = vrot.slane %v2287, %v2348
  %v2350 = vlaneseq
  %v2351 = vshrl.u32 %v2350, 7
  %v2352 = vsub.s32 0, %v2351
  %v2353 = vrot.slane %v2289, %v2352
  %2354 = vrot.lane.b32.xlu0 %v2293, 96
  %v2355 = vpop.permute.xlu0 %2354
  %2356 = vrot.lane.b32.xlu0 %v2297, 96
  %v2357 = vpop.permute.xlu0 %2356
  %2358 = vrot.lane.b32.xlu0 %v2301, 96
  %v2359 = vpop.permute.xlu0 %2358
  %2360 = vrot.lane.b32.xlu0 %v2305, 96
  %v2361 = vpop.permute.xlu0 %2360
  %2362 = vrot.lane.b32.xlu0 %v2309, 96
  %v2363 = vpop.permute.xlu0 %2362
  %2364 = vrot.lane.b32.xlu0 %v2313, 96
  %v2365 = vpop.permute.xlu0 %2364
  %2366 = vrot.lane.b32.xlu0 %v2317, 96
  %v2367 = vpop.permute.xlu0 %2366
  %2368 = vrot.lane.b32.xlu0 %v2321, 96
  %v2369 = vpop.permute.xlu0 %2368
  %2370 = vrot.lane.b32.xlu0 %v2325, 96
  %v2371 = vpop.permute.xlu0 %2370
  %2372 = vrot.lane.b32.xlu0 %v2329, 96
  %v2373 = vpop.permute.xlu0 %2372
  %2374 = vrot.lane.b32.xlu0 %v2333, 96
  %v2375 = vpop.permute.xlu0 %2374
  %2376 = vrot.lane.b32.xlu0 %v2337, 96
  %v2377 = vpop.permute.xlu0 %2376
  %2378 = vrot.lane.b32.xlu0 %v2341, 96
  %v2379 = vpop.permute.xlu0 %2378
  %2380 = vrot.lane.b32.xlu0 %v2345, 96
  %v2381 = vpop.permute.xlu0 %2380
  %2382 = vrot.lane.b32.xlu0 %v2349, 96
  %v2383 = vpop.permute.xlu0 %2382
  %2384 = vrot.lane.b32.xlu0 %v2353, 96
  %v2385 = vpop.permute.xlu0 %2384
  %2402 = vst.msk [vmem:[%s7 + $0x4] sm:$0x1] %vm705, %v2355
  %2403 = vst.msk [vmem:[%s7 + $0xc] sm:$0x1] %vm705, %v2357
  %2404 = vst.msk [vmem:[%s7 + $0x14] sm:$0x1] %vm705, %v2359
  %2405 = vst.msk [vmem:[%s7 + $0x1c] sm:$0x1] %vm705, %v2361
  %2406 = vst.msk [vmem:[%s7 + $0x24] sm:$0x1] %vm705, %v2363
  %2407 = vst.msk [vmem:[%s7 + $0x2c] sm:$0x1] %vm705, %v2365
  %2408 = vst.msk [vmem:[%s7 + $0x34] sm:$0x1] %vm705, %v2367
  %2409 = vst.msk [vmem:[%s7 + $0x3c] sm:$0x1] %vm705, %v2369
  %2410 = vst.msk [vmem:[%s7 + $0x44] sm:$0x1] %vm705, %v2371
  %2411 = vst.msk [vmem:[%s7 + $0x4c] sm:$0x1] %vm705, %v2373
  %2412 = vst.msk [vmem:[%s7 + $0x54] sm:$0x1] %vm705, %v2375
  %2413 = vst.msk [vmem:[%s7 + $0x5c] sm:$0x1] %vm705, %v2377
  %2414 = vst.msk [vmem:[%s7 + $0x64] sm:$0x1] %vm705, %v2379
  %2415 = vst.msk [vmem:[%s7 + $0x6c] sm:$0x1] %vm705, %v2381
  %2416 = vst.msk [vmem:[%s7 + $0x74] sm:$0x1] %vm705, %v2383
  %2417 = vst.msk [vmem:[%s7 + $0x7c] sm:$0x1] %vm705, %v2385
  %v2418 = vld [vmem:[#allocation2] sm:$0xff]
  %v2419 = vld [vmem:[#allocation2 + $0x8] sm:$0xff]
  %v2420 = vld [vmem:[%s2] sm:$0xff]
  %v2421 = vld [vmem:[%s2 + $0x8] sm:$0xff]
  %v2422 = vld [vmem:[%s2 + $0x10] sm:$0xff]
  %v2423 = vld [vmem:[%s2 + $0x18] sm:$0xff]
  %v2425 = vsel %vm296, %v2418, 0
  %v2428 = vsel %vm296, %v2419, 0
  %2430 = vmatprep.subr.mxu0 0.0
  %2431 = vmatpush1.msra.mxu0 0.0
  %2432 = vmatprep.subr.mxu0 0.0
  %2433 = vmatpush1.msra.mxu0 0.0
  %2434 = vmatprep.subr.mxu0 0.0
  %2435 = vmatpush1.msra.mxu0 0.0
  %2436 = vmatprep.subr.mxu0 0.0
  %2437 = vmatpush1.msra.mxu0 0.0
  %2438 = vmatprep.subr.mxu0 0.0
  %2439 = vmatpush1.msra.mxu0 0.0
  %2440 = vmatprep.subr.mxu0 0.0
  %2441 = vmatpush1.msra.mxu0 0.0
  %2442 = vmatprep.subr.mxu0 0.0
  %2443 = vmatpush1.msra.mxu0 0.0
  %2444 = vmatprep.subr.mxu0 0.0
  %2445 = vmatpush1.msra.mxu0 0.0
  %2446 = vmatprep.subr.mxu0 0.0
  %2447 = vmatpush1.msra.mxu0 0.0
  %2448 = vmatprep.subr.mxu0 0.0
  %2449 = vmatpush1.msra.mxu0 0.0
  %2450 = vmatprep.subr.mxu0 0.0
  %2451 = vmatpush1.msra.mxu0 0.0
  %2452 = vmatprep.subr.mxu0 0.0
  %2453 = vmatpush1.msra.mxu0 0.0
  %2454 = vmatprep.subr.mxu0 0.0
  %2455 = vmatpush1.msra.mxu0 %v2423
  %2456 = vmatprep.subr.mxu0 0.0
  %2457 = vmatpush1.msra.mxu0 %v2422
  %2458 = vmatprep.subr.mxu0 0.0
  %2459 = vmatpush1.msra.mxu0 %v2421
  %2460 = vmatprep.subr.mxu0 0.0
  %2461 = vmatpush1.msra.mxu0 %v2420
  %2462 = vmatprep.subr.mxu0 0.0
  %2463 = vmatpush2.msra.mxu0 0.0
  %2464 = vmatprep.subr.mxu0 0.0
  %2465 = vmatpush2.msra.mxu0 0.0
  %2466 = vmatprep.subr.mxu0 0.0
  %2467 = vmatpush2.msra.mxu0 0.0
  %2468 = vmatprep.subr.mxu0 0.0
  %2469 = vmatpush2.msra.mxu0 0.0
  %2470 = vmatprep.subr.mxu0 0.0
  %2471 = vmatpush2.msra.mxu0 0.0
  %2472 = vmatprep.subr.mxu0 0.0
  %2473 = vmatpush2.msra.mxu0 0.0
  %2474 = vmatprep.subr.mxu0 0.0
  %2475 = vmatpush2.msra.mxu0 0.0
  %2476 = vmatprep.subr.mxu0 0.0
  %2477 = vmatpush2.msra.mxu0 0.0
  %2478 = vmatprep.subr.mxu0 0.0
  %2479 = vmatpush2.msra.mxu0 0.0
  %2480 = vmatprep.subr.mxu0 0.0
  %2481 = vmatpush2.msra.mxu0 0.0
  %2482 = vmatprep.subr.mxu0 0.0
  %2483 = vmatpush2.msra.mxu0 0.0
  %2484 = vmatprep.subr.mxu0 0.0
  %2485 = vmatpush2.msra.mxu0 0.0
  %2486 = vmatprep.subr.mxu0 0.0
  %2487 = vmatpush2.msra.mxu0 0.0
  %2488 = vmatprep.subr.mxu0 0.0
  %2489 = vmatpush2.msra.mxu0 0.0
  %2490 = vmatprep.subr.mxu0 0.0
  %2491 = vmatpush2.msra.mxu0 0.0
  %2492 = vmatprep.subr.mxu0 0.0
  %2493 = vmatpush2.msra.mxu0 0.0
  %2494 = vmatprep.mubr.f32.mxu0 0.0
  %2495 = vmatmul.mubr.f32.gmra.mxu0 %v2425
  %v2496 = vpop.f32.mrf.mxu0
  %v2497 = vadd.f32 %v276, %v2496
  %v2498 = vpop.f32.mrf.mxu0
  %2499 = vmatprep.mubr.f32.mxu0 0.0
  %2500 = vmatmul.mubr.f32.gmra.mxu0 %v2428
  %v2501 = vpop.f32.mrf.mxu0
  %v2502 = vadd.f32 %v276, %v2501
  %v2503 = vpop.f32.mrf.mxu0
  %2504 = vdwg.mxu0
  %s2505 = scalar_lea.vmem [#allocation3], 80
  %v2506 = vld [vmem:[%s2505] sm:$0xff]
  %v2507 = vld [vmem:[%s2505 + $0x8] sm:$0xff]
  %v2508 = vadd.f32 %v2506, %v2497
  %v2509 = vadd.f32 %v2507, %v2502
  %v2510 = vxor.u32 %v2508, 2147483648
  %v2511 = vxor.u32 %v2509, 2147483648
  %v2512 = vmul.f32 %v2510, 1.442695
  %v2513 = vpow.pop %v2512
  %v2514 = vmul.f32 %v2511, 1.442695
  %v2515 = vpow.pop %v2514
  %v2516 = vadd.f32 %v2513, 1.0
  %v2517 = vadd.f32 %v2515, 1.0
  %v2518 = vrcp.pop %v2516
  %v2519 = vmul.f32 1.0, %v2518
  %v2520 = vrcp.pop %v2517
  %v2521 = vmul.f32 1.0, %v2520
  %2524 = vrot.lane.b32.xlu0 %v2497, 64
  %v2525 = vpop.permute.xlu0 %2524
  %2526 = vrot.lane.b32.xlu0 %v2502, 64
  %v2527 = vpop.permute.xlu0 %2526
  %v2530 = vmul.f32 %v2519, %v2525
  %v2531 = vmul.f32 %v2521, %v2527
  %2534 = vrot.lane.b32.xlu0 %v2530, 64
  %v2535 = vpop.permute.xlu0 %2534
  %2536 = vrot.lane.b32.xlu0 %v2531, 64
  %v2537 = vpop.permute.xlu0 %2536
  %v2540 = vadd.f32 %v2506, %v2535
  %v2541 = vadd.f32 %v2507, %v2537
  %v2542 = vtanh.pop %v2540
  %v2543 = vtanh.pop %v2541
  %v2544 = vsub.f32 1.0, %v2519
  %v2545 = vsub.f32 1.0, %v2521
  %2548 = vrot.lane.b32.xlu0 %v2542, 96
  %v2549 = vpop.permute.xlu0 %2548
  %2550 = vrot.lane.b32.xlu0 %v2543, 96
  %v2551 = vpop.permute.xlu0 %2550
  %v2554 = vmul.f32 %v2544, %v2549
  %v2555 = vmul.f32 %v2545, %v2551
  %2556 = vrot.lane.b32.xlu0 %v2418, 32
  %v2557 = vpop.permute.xlu0 %2556
  %2558 = vrot.lane.b32.xlu0 %v2419, 32
  %v2559 = vpop.permute.xlu0 %2558
  %v2562 = vmul.f32 %v2519, %v2557
  %v2563 = vmul.f32 %v2521, %v2559
  %v2564 = vadd.f32 %v2554, %v2562
  %v2565 = vadd.f32 %v2555, %v2563
  %2568 = vrot.lane.b32.xlu0 %v2564, 96
  %v2569 = vpop.permute.xlu0 %2568
  %2570 = vrot.lane.b32.xlu0 %v2565, 96
  %v2571 = vpop.permute.xlu0 %2570
  %2574 = vst.msk [vmem:[#allocation2] sm:$0xff] %vm296, %v2569
  %2575 = vst.msk [vmem:[#allocation2 + $0x8] sm:$0xff] %vm296, %v2571
  %v2576 = vsel %vm296, %v2569, 0.0
  %2577 = vadd.xlane.f32.xlu0 %v2576
  %v2578 = vpop.xlane.xlu0 %2577
  %v2579 = vsel %vm296, %v2571, 0.0
  %2580 = vadd.xlane.f32.xlu0 %v2579
  %v2581 = vpop.xlane.xlu0 %2580
  %v2582 = vmul.f32 %v2578, %v454
  %v2583 = vmul.f32 %v2581, %v454
  %v2584 = vsub.f32 %v2564, %v2582
  %v2585 = vsub.f32 %v2565, %v2583
  %v2586 = vmul.f32 %v2584, %v2584
  %v2587 = vmul.f32 %v2585, %v2585
  %2590 = vrot.lane.b32.xlu0 %v2586, 96
  %v2591 = vpop.permute.xlu0 %2590
  %2592 = vrot.lane.b32.xlu0 %v2587, 96
  %v2593 = vpop.permute.xlu0 %2592
  %v2596 = vsel %vm296, %v2591, 0.0
  %2597 = vadd.xlane.f32.xlu0 %v2596
  %v2598 = vpop.xlane.xlu0 %2597
  %v2599 = vsel %vm296, %v2593, 0.0
  %2600 = vadd.xlane.f32.xlu0 %v2599
  %v2601 = vpop.xlane.xlu0 %2600
  %v2602 = vmul.f32 %v2598, %v454
  %v2603 = vmul.f32 %v2601, %v454
  %v2604 = vadd.f32 %v2602, 1e-05
  %v2605 = vadd.f32 %v2603, 1e-05
  %v2606 = vrsqrt.pop %v2604
  %v2607 = vrsqrt.pop %v2605
  %v2608 = vmul.f32 %v2584, %v2606
  %v2609 = vmul.f32 %v2585, %v2607
  %v2610 = vmul.f32 %v2608, %v484
  %v2611 = vmul.f32 %v2609, %v484
  %v2612 = vadd.f32 %v2610, %v489
  %v2613 = vadd.f32 %v2611, %v489
  %v2616 = vcombine.high %v2612, %v2612
  %v2618 = vunpack.c.l.s4 1966171168
  %v2619 = vunpack.c.0.s8 %v2618
  %v2620 = vlaneseq
  %v2621 = vshrl.u32 %v2620, 7
  %v2622 = vsub.s32 %v2619, %v2621
  %v2623 = vrot.slane %v2612, %v2622
  %v2625 = vunpack.c.l.s4 1966171168
  %v2626 = vunpack.c.0.s8 %v2625
  %v2627 = vlaneseq
  %v2628 = vshrl.u32 %v2627, 7
  %v2629 = vsub.s32 %v2626, %v2628
  %v2630 = vrot.slane %v2616, %v2629
  %v2631 = vcombine.high %v2623, %v2623
  %v2632 = vcombine.high %v2630, %v2630
  %v2634 = vunpack.c.l.s4 1966171168
  %v2635 = vunpack.c.0.s8 %v2634
  %v2636 = vlaneseq
  %v2637 = vshrl.u32 %v2636, 7
  %v2638 = vsub.s32 %v2635, %v2637
  %v2639 = vrot.slane %v2623, %v2638
  %v2641 = vunpack.c.l.s4 1966171168
  %v2642 = vunpack.c.0.s8 %v2641
  %v2643 = vlaneseq
  %v2644 = vshrl.u32 %v2643, 7
  %v2645 = vsub.s32 %v2642, %v2644
  %v2646 = vrot.slane %v2630, %v2645
  %v2648 = vunpack.c.l.s4 1966171168
  %v2649 = vunpack.c.0.s8 %v2648
  %v2650 = vlaneseq
  %v2651 = vshrl.u32 %v2650, 7
  %v2652 = vsub.s32 %v2649, %v2651
  %v2653 = vrot.slane %v2631, %v2652
  %v2655 = vunpack.c.l.s4 1966171168
  %v2656 = vunpack.c.0.s8 %v2655
  %v2657 = vlaneseq
  %v2658 = vshrl.u32 %v2657, 7
  %v2659 = vsub.s32 %v2656, %v2658
  %v2660 = vrot.slane %v2632, %v2659
  %v2661 = vcombine.high %v2639, %v2639
  %v2662 = vcombine.high %v2646, %v2646
  %v2663 = vcombine.high %v2653, %v2653
  %v2664 = vcombine.high %v2660, %v2660
  %v2665 = vcombine.high %v2613, %v2613
  %v2667 = vunpack.c.l.s4 1966171168
  %v2668 = vunpack.c.0.s8 %v2667
  %v2669 = vlaneseq
  %v2670 = vshrl.u32 %v2669, 7
  %v2671 = vsub.s32 %v2668, %v2670
  %v2672 = vrot.slane %v2613, %v2671
  %v2674 = vunpack.c.l.s4 1966171168
  %v2675 = vunpack.c.0.s8 %v2674
  %v2676 = vlaneseq
  %v2677 = vshrl.u32 %v2676, 7
  %v2678 = vsub.s32 %v2675, %v2677
  %v2679 = vrot.slane %v2665, %v2678
  %v2680 = vcombine.high %v2672, %v2672
  %v2681 = vcombine.high %v2679, %v2679
  %v2683 = vunpack.c.l.s4 1966171168
  %v2684 = vunpack.c.0.s8 %v2683
  %v2685 = vlaneseq
  %v2686 = vshrl.u32 %v2685, 7
  %v2687 = vsub.s32 %v2684, %v2686
  %v2688 = vrot.slane %v2672, %v2687
  %v2690 = vunpack.c.l.s4 1966171168
  %v2691 = vunpack.c.0.s8 %v2690
  %v2692 = vlaneseq
  %v2693 = vshrl.u32 %v2692, 7
  %v2694 = vsub.s32 %v2691, %v2693
  %v2695 = vrot.slane %v2679, %v2694
  %v2697 = vunpack.c.l.s4 1966171168
  %v2698 = vunpack.c.0.s8 %v2697
  %v2699 = vlaneseq
  %v2700 = vshrl.u32 %v2699, 7
  %v2701 = vsub.s32 %v2698, %v2700
  %v2702 = vrot.slane %v2680, %v2701
  %v2704 = vunpack.c.l.s4 1966171168
  %v2705 = vunpack.c.0.s8 %v2704
  %v2706 = vlaneseq
  %v2707 = vshrl.u32 %v2706, 7
  %v2708 = vsub.s32 %v2705, %v2707
  %v2709 = vrot.slane %v2681, %v2708
  %v2710 = vcombine.high %v2688, %v2688
  %v2711 = vcombine.high %v2695, %v2695
  %v2712 = vcombine.high %v2702, %v2702
  %v2713 = vcombine.high %v2709, %v2709
  %v2714 = vlaneseq
  %v2715 = vshrl.u32 %v2714, 7
  %v2716 = vsub.s32 0, %v2715
  %v2717 = vrot.slane %v2639, %v2716
  %v2718 = vlaneseq
  %v2719 = vshrl.u32 %v2718, 7
  %v2720 = vsub.s32 0, %v2719
  %v2721 = vrot.slane %v2653, %v2720
  %v2722 = vlaneseq
  %v2723 = vshrl.u32 %v2722, 7
  %v2724 = vsub.s32 0, %v2723
  %v2725 = vrot.slane %v2661, %v2724
  %v2726 = vlaneseq
  %v2727 = vshrl.u32 %v2726, 7
  %v2728 = vsub.s32 0, %v2727
  %v2729 = vrot.slane %v2663, %v2728
  %v2730 = vlaneseq
  %v2731 = vshrl.u32 %v2730, 7
  %v2732 = vsub.s32 0, %v2731
  %v2733 = vrot.slane %v2646, %v2732
  %v2734 = vlaneseq
  %v2735 = vshrl.u32 %v2734, 7
  %v2736 = vsub.s32 0, %v2735
  %v2737 = vrot.slane %v2660, %v2736
  %v2738 = vlaneseq
  %v2739 = vshrl.u32 %v2738, 7
  %v2740 = vsub.s32 0, %v2739
  %v2741 = vrot.slane %v2662, %v2740
  %v2742 = vlaneseq
  %v2743 = vshrl.u32 %v2742, 7
  %v2744 = vsub.s32 0, %v2743
  %v2745 = vrot.slane %v2664, %v2744
  %v2746 = vlaneseq
  %v2747 = vshrl.u32 %v2746, 7
  %v2748 = vsub.s32 0, %v2747
  %v2749 = vrot.slane %v2688, %v2748
  %v2750 = vlaneseq
  %v2751 = vshrl.u32 %v2750, 7
  %v2752 = vsub.s32 0, %v2751
  %v2753 = vrot.slane %v2702, %v2752
  %v2754 = vlaneseq
  %v2755 = vshrl.u32 %v2754, 7
  %v2756 = vsub.s32 0, %v2755
  %v2757 = vrot.slane %v2710, %v2756
  %v2758 = vlaneseq
  %v2759 = vshrl.u32 %v2758, 7
  %v2760 = vsub.s32 0, %v2759
  %v2761 = vrot.slane %v2712, %v2760
  %v2762 = vlaneseq
  %v2763 = vshrl.u32 %v2762, 7
  %v2764 = vsub.s32 0, %v2763
  %v2765 = vrot.slane %v2695, %v2764
  %v2766 = vlaneseq
  %v2767 = vshrl.u32 %v2766, 7
  %v2768 = vsub.s32 0, %v2767
  %v2769 = vrot.slane %v2709, %v2768
  %v2770 = vlaneseq
  %v2771 = vshrl.u32 %v2770, 7
  %v2772 = vsub.s32 0, %v2771
  %v2773 = vrot.slane %v2711, %v2772
  %v2774 = vlaneseq
  %v2775 = vshrl.u32 %v2774, 7
  %v2776 = vsub.s32 0, %v2775
  %v2777 = vrot.slane %v2713, %v2776
  %2778 = vrot.lane.b32.xlu0 %v2717, 96
  %v2779 = vpop.permute.xlu0 %2778
  %2780 = vrot.lane.b32.xlu0 %v2721, 96
  %v2781 = vpop.permute.xlu0 %2780
  %2782 = vrot.lane.b32.xlu0 %v2725, 96
  %v2783 = vpop.permute.xlu0 %2782
  %2784 = vrot.lane.b32.xlu0 %v2729, 96
  %v2785 = vpop.permute.xlu0 %2784
  %2786 = vrot.lane.b32.xlu0 %v2733, 96
  %v2787 = vpop.permute.xlu0 %2786
  %2788 = vrot.lane.b32.xlu0 %v2737, 96
  %v2789 = vpop.permute.xlu0 %2788
  %2790 = vrot.lane.b32.xlu0 %v2741, 96
  %v2791 = vpop.permute.xlu0 %2790
  %2792 = vrot.lane.b32.xlu0 %v2745, 96
  %v2793 = vpop.permute.xlu0 %2792
  %2794 = vrot.lane.b32.xlu0 %v2749, 96
  %v2795 = vpop.permute.xlu0 %2794
  %2796 = vrot.lane.b32.xlu0 %v2753, 96
  %v2797 = vpop.permute.xlu0 %2796
  %2798 = vrot.lane.b32.xlu0 %v2757, 96
  %v2799 = vpop.permute.xlu0 %2798
  %2800 = vrot.lane.b32.xlu0 %v2761, 96
  %v2801 = vpop.permute.xlu0 %2800
  %2802 = vrot.lane.b32.xlu0 %v2765, 96
  %v2803 = vpop.permute.xlu0 %2802
  %2804 = vrot.lane.b32.xlu0 %v2769, 96
  %v2805 = vpop.permute.xlu0 %2804
  %2806 = vrot.lane.b32.xlu0 %v2773, 96
  %v2807 = vpop.permute.xlu0 %2806
  %2808 = vrot.lane.b32.xlu0 %v2777, 96
  %v2809 = vpop.permute.xlu0 %2808
  %2826 = vst.msk [vmem:[%s7 + $0x5] sm:$0x1] %vm705, %v2779
  %2827 = vst.msk [vmem:[%s7 + $0xd] sm:$0x1] %vm705, %v2781
  %2828 = vst.msk [vmem:[%s7 + $0x15] sm:$0x1] %vm705, %v2783
  %2829 = vst.msk [vmem:[%s7 + $0x1d] sm:$0x1] %vm705, %v2785
  %2830 = vst.msk [vmem:[%s7 + $0x25] sm:$0x1] %vm705, %v2787
  %2831 = vst.msk [vmem:[%s7 + $0x2d] sm:$0x1] %vm705, %v2789
  %2832 = vst.msk [vmem:[%s7 + $0x35] sm:$0x1] %vm705, %v2791
  %2833 = vst.msk [vmem:[%s7 + $0x3d] sm:$0x1] %vm705, %v2793
  %2834 = vst.msk [vmem:[%s7 + $0x45] sm:$0x1] %vm705, %v2795
  %2835 = vst.msk [vmem:[%s7 + $0x4d] sm:$0x1] %vm705, %v2797
  %2836 = vst.msk [vmem:[%s7 + $0x55] sm:$0x1] %vm705, %v2799
  %2837 = vst.msk [vmem:[%s7 + $0x5d] sm:$0x1] %vm705, %v2801
  %2838 = vst.msk [vmem:[%s7 + $0x65] sm:$0x1] %vm705, %v2803
  %2839 = vst.msk [vmem:[%s7 + $0x6d] sm:$0x1] %vm705, %v2805
  %2840 = vst.msk [vmem:[%s7 + $0x75] sm:$0x1] %vm705, %v2807
  %2841 = vst.msk [vmem:[%s7 + $0x7d] sm:$0x1] %vm705, %v2809
  %v2842 = vld [vmem:[#allocation2] sm:$0xff]
  %v2843 = vld [vmem:[#allocation2 + $0x8] sm:$0xff]
  %v2844 = vld [vmem:[%s2] sm:$0xff]
  %v2845 = vld [vmem:[%s2 + $0x8] sm:$0xff]
  %v2846 = vld [vmem:[%s2 + $0x10] sm:$0xff]
  %v2847 = vld [vmem:[%s2 + $0x18] sm:$0xff]
  %v2849 = vsel %vm296, %v2842, 0
  %v2852 = vsel %vm296, %v2843, 0
  %2854 = vmatprep.subr.mxu0 0.0
  %2855 = vmatpush1.msra.mxu0 0.0
  %2856 = vmatprep.subr.mxu0 0.0
  %2857 = vmatpush1.msra.mxu0 0.0
  %2858 = vmatprep.subr.mxu0 0.0
  %2859 = vmatpush1.msra.mxu0 0.0
  %2860 = vmatprep.subr.mxu0 0.0
  %2861 = vmatpush1.msra.mxu0 0.0
  %2862 = vmatprep.subr.mxu0 0.0
  %2863 = vmatpush1.msra.mxu0 0.0
  %2864 = vmatprep.subr.mxu0 0.0
  %2865 = vmatpush1.msra.mxu0 0.0
  %2866 = vmatprep.subr.mxu0 0.0
  %2867 = vmatpush1.msra.mxu0 0.0
  %2868 = vmatprep.subr.mxu0 0.0
  %2869 = vmatpush1.msra.mxu0 0.0
  %2870 = vmatprep.subr.mxu0 0.0
  %2871 = vmatpush1.msra.mxu0 0.0
  %2872 = vmatprep.subr.mxu0 0.0
  %2873 = vmatpush1.msra.mxu0 0.0
  %2874 = vmatprep.subr.mxu0 0.0
  %2875 = vmatpush1.msra.mxu0 0.0
  %2876 = vmatprep.subr.mxu0 0.0
  %2877 = vmatpush1.msra.mxu0 0.0
  %2878 = vmatprep.subr.mxu0 0.0
  %2879 = vmatpush1.msra.mxu0 %v2847
  %2880 = vmatprep.subr.mxu0 0.0
  %2881 = vmatpush1.msra.mxu0 %v2846
  %2882 = vmatprep.subr.mxu0 0.0
  %2883 = vmatpush1.msra.mxu0 %v2845
  %2884 = vmatprep.subr.mxu0 0.0
  %2885 = vmatpush1.msra.mxu0 %v2844
  %2886 = vmatprep.subr.mxu0 0.0
  %2887 = vmatpush2.msra.mxu0 0.0
  %2888 = vmatprep.subr.mxu0 0.0
  %2889 = vmatpush2.msra.mxu0 0.0
  %2890 = vmatprep.subr.mxu0 0.0
  %2891 = vmatpush2.msra.mxu0 0.0
  %2892 = vmatprep.subr.mxu0 0.0
  %2893 = vmatpush2.msra.mxu0 0.0
  %2894 = vmatprep.subr.mxu0 0.0
  %2895 = vmatpush2.msra.mxu0 0.0
  %2896 = vmatprep.subr.mxu0 0.0
  %2897 = vmatpush2.msra.mxu0 0.0
  %2898 = vmatprep.subr.mxu0 0.0
  %2899 = vmatpush2.msra.mxu0 0.0
  %2900 = vmatprep.subr.mxu0 0.0
  %2901 = vmatpush2.msra.mxu0 0.0
  %2902 = vmatprep.subr.mxu0 0.0
  %2903 = vmatpush2.msra.mxu0 0.0
  %2904 = vmatprep.subr.mxu0 0.0
  %2905 = vmatpush2.msra.mxu0 0.0
  %2906 = vmatprep.subr.mxu0 0.0
  %2907 = vmatpush2.msra.mxu0 0.0
  %2908 = vmatprep.subr.mxu0 0.0
  %2909 = vmatpush2.msra.mxu0 0.0
  %2910 = vmatprep.subr.mxu0 0.0
  %2911 = vmatpush2.msra.mxu0 0.0
  %2912 = vmatprep.subr.mxu0 0.0
  %2913 = vmatpush2.msra.mxu0 0.0
  %2914 = vmatprep.subr.mxu0 0.0
  %2915 = vmatpush2.msra.mxu0 0.0
  %2916 = vmatprep.subr.mxu0 0.0
  %2917 = vmatpush2.msra.mxu0 0.0
  %2918 = vmatprep.mubr.f32.mxu0 0.0
  %2919 = vmatmul.mubr.f32.gmra.mxu0 %v2849
  %v2920 = vpop.f32.mrf.mxu0
  %v2921 = vadd.f32 %v276, %v2920
  %v2922 = vpop.f32.mrf.mxu0
  %2923 = vmatprep.mubr.f32.mxu0 0.0
  %2924 = vmatmul.mubr.f32.gmra.mxu0 %v2852
  %v2925 = vpop.f32.mrf.mxu0
  %v2926 = vadd.f32 %v276, %v2925
  %v2927 = vpop.f32.mrf.mxu0
  %2928 = vdwg.mxu0
  %s2929 = scalar_lea.vmem [#allocation3], 96
  %v2930 = vld [vmem:[%s2929] sm:$0xff]
  %v2931 = vld [vmem:[%s2929 + $0x8] sm:$0xff]
  %v2932 = vadd.f32 %v2930, %v2921
  %v2933 = vadd.f32 %v2931, %v2926
  %v2934 = vxor.u32 %v2932, 2147483648
  %v2935 = vxor.u32 %v2933, 2147483648
  %v2936 = vmul.f32 %v2934, 1.442695
  %v2937 = vpow.pop %v2936
  %v2938 = vmul.f32 %v2935, 1.442695
  %v2939 = vpow.pop %v2938
  %v2940 = vadd.f32 %v2937, 1.0
  %v2941 = vadd.f32 %v2939, 1.0
  %v2942 = vrcp.pop %v2940
  %v2943 = vmul.f32 1.0, %v2942
  %v2944 = vrcp.pop %v2941
  %v2945 = vmul.f32 1.0, %v2944
  %2948 = vrot.lane.b32.xlu0 %v2921, 64
  %v2949 = vpop.permute.xlu0 %2948
  %2950 = vrot.lane.b32.xlu0 %v2926, 64
  %v2951 = vpop.permute.xlu0 %2950
  %v2954 = vmul.f32 %v2943, %v2949
  %v2955 = vmul.f32 %v2945, %v2951
  %2958 = vrot.lane.b32.xlu0 %v2954, 64
  %v2959 = vpop.permute.xlu0 %2958
  %2960 = vrot.lane.b32.xlu0 %v2955, 64
  %v2961 = vpop.permute.xlu0 %2960
  %v2964 = vadd.f32 %v2930, %v2959
  %v2965 = vadd.f32 %v2931, %v2961
  %v2966 = vtanh.pop %v2964
  %v2967 = vtanh.pop %v2965
  %v2968 = vsub.f32 1.0, %v2943
  %v2969 = vsub.f32 1.0, %v2945
  %2972 = vrot.lane.b32.xlu0 %v2966, 96
  %v2973 = vpop.permute.xlu0 %2972
  %2974 = vrot.lane.b32.xlu0 %v2967, 96
  %v2975 = vpop.permute.xlu0 %2974
  %v2978 = vmul.f32 %v2968, %v2973
  %v2979 = vmul.f32 %v2969, %v2975
  %2980 = vrot.lane.b32.xlu0 %v2842, 32
  %v2981 = vpop.permute.xlu0 %2980
  %2982 = vrot.lane.b32.xlu0 %v2843, 32
  %v2983 = vpop.permute.xlu0 %2982
  %v2986 = vmul.f32 %v2943, %v2981
  %v2987 = vmul.f32 %v2945, %v2983
  %v2988 = vadd.f32 %v2978, %v2986
  %v2989 = vadd.f32 %v2979, %v2987
  %2992 = vrot.lane.b32.xlu0 %v2988, 96
  %v2993 = vpop.permute.xlu0 %2992
  %2994 = vrot.lane.b32.xlu0 %v2989, 96
  %v2995 = vpop.permute.xlu0 %2994
  %2998 = vst.msk [vmem:[#allocation2] sm:$0xff] %vm296, %v2993
  %2999 = vst.msk [vmem:[#allocation2 + $0x8] sm:$0xff] %vm296, %v2995
  %v3000 = vsel %vm296, %v2993, 0.0
  %3001 = vadd.xlane.f32.xlu0 %v3000
  %v3002 = vpop.xlane.xlu0 %3001
  %v3003 = vsel %vm296, %v2995, 0.0
  %3004 = vadd.xlane.f32.xlu0 %v3003
  %v3005 = vpop.xlane.xlu0 %3004
  %v3006 = vmul.f32 %v3002, %v454
  %v3007 = vmul.f32 %v3005, %v454
  %v3008 = vsub.f32 %v2988, %v3006
  %v3009 = vsub.f32 %v2989, %v3007
  %v3010 = vmul.f32 %v3008, %v3008
  %v3011 = vmul.f32 %v3009, %v3009
  %3014 = vrot.lane.b32.xlu0 %v3010, 96
  %v3015 = vpop.permute.xlu0 %3014
  %3016 = vrot.lane.b32.xlu0 %v3011, 96
  %v3017 = vpop.permute.xlu0 %3016
  %v3020 = vsel %vm296, %v3015, 0.0
  %3021 = vadd.xlane.f32.xlu0 %v3020
  %v3022 = vpop.xlane.xlu0 %3021
  %v3023 = vsel %vm296, %v3017, 0.0
  %3024 = vadd.xlane.f32.xlu0 %v3023
  %v3025 = vpop.xlane.xlu0 %3024
  %v3026 = vmul.f32 %v3022, %v454
  %v3027 = vmul.f32 %v3025, %v454
  %v3028 = vadd.f32 %v3026, 1e-05
  %v3029 = vadd.f32 %v3027, 1e-05
  %v3030 = vrsqrt.pop %v3028
  %v3031 = vrsqrt.pop %v3029
  %v3032 = vmul.f32 %v3008, %v3030
  %v3033 = vmul.f32 %v3009, %v3031
  %v3034 = vmul.f32 %v3032, %v484
  %v3035 = vmul.f32 %v3033, %v484
  %v3036 = vadd.f32 %v3034, %v489
  %v3037 = vadd.f32 %v3035, %v489
  %v3040 = vcombine.high %v3036, %v3036
  %v3042 = vunpack.c.l.s4 1966171168
  %v3043 = vunpack.c.0.s8 %v3042
  %v3044 = vlaneseq
  %v3045 = vshrl.u32 %v3044, 7
  %v3046 = vsub.s32 %v3043, %v3045
  %v3047 = vrot.slane %v3036, %v3046
  %v3049 = vunpack.c.l.s4 1966171168
  %v3050 = vunpack.c.0.s8 %v3049
  %v3051 = vlaneseq
  %v3052 = vshrl.u32 %v3051, 7
  %v3053 = vsub.s32 %v3050, %v3052
  %v3054 = vrot.slane %v3040, %v3053
  %v3055 = vcombine.high %v3047, %v3047
  %v3056 = vcombine.high %v3054, %v3054
  %v3058 = vunpack.c.l.s4 1966171168
  %v3059 = vunpack.c.0.s8 %v3058
  %v3060 = vlaneseq
  %v3061 = vshrl.u32 %v3060, 7
  %v3062 = vsub.s32 %v3059, %v3061
  %v3063 = vrot.slane %v3047, %v3062
  %v3065 = vunpack.c.l.s4 1966171168
  %v3066 = vunpack.c.0.s8 %v3065
  %v3067 = vlaneseq
  %v3068 = vshrl.u32 %v3067, 7
  %v3069 = vsub.s32 %v3066, %v3068
  %v3070 = vrot.slane %v3054, %v3069
  %v3072 = vunpack.c.l.s4 1966171168
  %v3073 = vunpack.c.0.s8 %v3072
  %v3074 = vlaneseq
  %v3075 = vshrl.u32 %v3074, 7
  %v3076 = vsub.s32 %v3073, %v3075
  %v3077 = vrot.slane %v3055, %v3076
  %v3079 = vunpack.c.l.s4 1966171168
  %v3080 = vunpack.c.0.s8 %v3079
  %v3081 = vlaneseq
  %v3082 = vshrl.u32 %v3081, 7
  %v3083 = vsub.s32 %v3080, %v3082
  %v3084 = vrot.slane %v3056, %v3083
  %v3085 = vcombine.high %v3063, %v3063
  %v3086 = vcombine.high %v3070, %v3070
  %v3087 = vcombine.high %v3077, %v3077
  %v3088 = vcombine.high %v3084, %v3084
  %v3089 = vcombine.high %v3037, %v3037
  %v3091 = vunpack.c.l.s4 1966171168
  %v3092 = vunpack.c.0.s8 %v3091
  %v3093 = vlaneseq
  %v3094 = vshrl.u32 %v3093, 7
  %v3095 = vsub.s32 %v3092, %v3094
  %v3096 = vrot.slane %v3037, %v3095
  %v3098 = vunpack.c.l.s4 1966171168
  %v3099 = vunpack.c.0.s8 %v3098
  %v3100 = vlaneseq
  %v3101 = vshrl.u32 %v3100, 7
  %v3102 = vsub.s32 %v3099, %v3101
  %v3103 = vrot.slane %v3089, %v3102
  %v3104 = vcombine.high %v3096, %v3096
  %v3105 = vcombine.high %v3103, %v3103
  %v3107 = vunpack.c.l.s4 1966171168
  %v3108 = vunpack.c.0.s8 %v3107
  %v3109 = vlaneseq
  %v3110 = vshrl.u32 %v3109, 7
  %v3111 = vsub.s32 %v3108, %v3110
  %v3112 = vrot.slane %v3096, %v3111
  %v3114 = vunpack.c.l.s4 1966171168
  %v3115 = vunpack.c.0.s8 %v3114
  %v3116 = vlaneseq
  %v3117 = vshrl.u32 %v3116, 7
  %v3118 = vsub.s32 %v3115, %v3117
  %v3119 = vrot.slane %v3103, %v3118
  %v3121 = vunpack.c.l.s4 1966171168
  %v3122 = vunpack.c.0.s8 %v3121
  %v3123 = vlaneseq
  %v3124 = vshrl.u32 %v3123, 7
  %v3125 = vsub.s32 %v3122, %v3124
  %v3126 = vrot.slane %v3104, %v3125
  %v3128 = vunpack.c.l.s4 1966171168
  %v3129 = vunpack.c.0.s8 %v3128
  %v3130 = vlaneseq
  %v3131 = vshrl.u32 %v3130, 7
  %v3132 = vsub.s32 %v3129, %v3131
  %v3133 = vrot.slane %v3105, %v3132
  %v3134 = vcombine.high %v3112, %v3112
  %v3135 = vcombine.high %v3119, %v3119
  %v3136 = vcombine.high %v3126, %v3126
  %v3137 = vcombine.high %v3133, %v3133
  %v3138 = vlaneseq
  %v3139 = vshrl.u32 %v3138, 7
  %v3140 = vsub.s32 0, %v3139
  %v3141 = vrot.slane %v3063, %v3140
  %v3142 = vlaneseq
  %v3143 = vshrl.u32 %v3142, 7
  %v3144 = vsub.s32 0, %v3143
  %v3145 = vrot.slane %v3077, %v3144
  %v3146 = vlaneseq
  %v3147 = vshrl.u32 %v3146, 7
  %v3148 = vsub.s32 0, %v3147
  %v3149 = vrot.slane %v3085, %v3148
  %v3150 = vlaneseq
  %v3151 = vshrl.u32 %v3150, 7
  %v3152 = vsub.s32 0, %v3151
  %v3153 = vrot.slane %v3087, %v3152
  %v3154 = vlaneseq
  %v3155 = vshrl.u32 %v3154, 7
  %v3156 = vsub.s32 0, %v3155
  %v3157 = vrot.slane %v3070, %v3156
  %v3158 = vlaneseq
  %v3159 = vshrl.u32 %v3158, 7
  %v3160 = vsub.s32 0, %v3159
  %v3161 = vrot.slane %v3084, %v3160
  %v3162 = vlaneseq
  %v3163 = vshrl.u32 %v3162, 7
  %v3164 = vsub.s32 0, %v3163
  %v3165 = vrot.slane %v3086, %v3164
  %v3166 = vlaneseq
  %v3167 = vshrl.u32 %v3166, 7
  %v3168 = vsub.s32 0, %v3167
  %v3169 = vrot.slane %v3088, %v3168
  %v3170 = vlaneseq
  %v3171 = vshrl.u32 %v3170, 7
  %v3172 = vsub.s32 0, %v3171
  %v3173 = vrot.slane %v3112, %v3172
  %v3174 = vlaneseq
  %v3175 = vshrl.u32 %v3174, 7
  %v3176 = vsub.s32 0, %v3175
  %v3177 = vrot.slane %v3126, %v3176
  %v3178 = vlaneseq
  %v3179 = vshrl.u32 %v3178, 7
  %v3180 = vsub.s32 0, %v3179
  %v3181 = vrot.slane %v3134, %v3180
  %v3182 = vlaneseq
  %v3183 = vshrl.u32 %v3182, 7
  %v3184 = vsub.s32 0, %v3183
  %v3185 = vrot.slane %v3136, %v3184
  %v3186 = vlaneseq
  %v3187 = vshrl.u32 %v3186, 7
  %v3188 = vsub.s32 0, %v3187
  %v3189 = vrot.slane %v3119, %v3188
  %v3190 = vlaneseq
  %v3191 = vshrl.u32 %v3190, 7
  %v3192 = vsub.s32 0, %v3191
  %v3193 = vrot.slane %v3133, %v3192
  %v3194 = vlaneseq
  %v3195 = vshrl.u32 %v3194, 7
  %v3196 = vsub.s32 0, %v3195
  %v3197 = vrot.slane %v3135, %v3196
  %v3198 = vlaneseq
  %v3199 = vshrl.u32 %v3198, 7
  %v3200 = vsub.s32 0, %v3199
  %v3201 = vrot.slane %v3137, %v3200
  %3202 = vrot.lane.b32.xlu0 %v3141, 96
  %v3203 = vpop.permute.xlu0 %3202
  %3204 = vrot.lane.b32.xlu0 %v3145, 96
  %v3205 = vpop.permute.xlu0 %3204
  %3206 = vrot.lane.b32.xlu0 %v3149, 96
  %v3207 = vpop.permute.xlu0 %3206
  %3208 = vrot.lane.b32.xlu0 %v3153, 96
  %v3209 = vpop.permute.xlu0 %3208
  %3210 = vrot.lane.b32.xlu0 %v3157, 96
  %v3211 = vpop.permute.xlu0 %3210
  %3212 = vrot.lane.b32.xlu0 %v3161, 96
  %v3213 = vpop.permute.xlu0 %3212
  %3214 = vrot.lane.b32.xlu0 %v3165, 96
  %v3215 = vpop.permute.xlu0 %3214
  %3216 = vrot.lane.b32.xlu0 %v3169, 96
  %v3217 = vpop.permute.xlu0 %3216
  %3218 = vrot.lane.b32.xlu0 %v3173, 96
  %v3219 = vpop.permute.xlu0 %3218
  %3220 = vrot.lane.b32.xlu0 %v3177, 96
  %v3221 = vpop.permute.xlu0 %3220
  %3222 = vrot.lane.b32.xlu0 %v3181, 96
  %v3223 = vpop.permute.xlu0 %3222
  %3224 = vrot.lane.b32.xlu0 %v3185, 96
  %v3225 = vpop.permute.xlu0 %3224
  %3226 = vrot.lane.b32.xlu0 %v3189, 96
  %v3227 = vpop.permute.xlu0 %3226
  %3228 = vrot.lane.b32.xlu0 %v3193, 96
  %v3229 = vpop.permute.xlu0 %3228
  %3230 = vrot.lane.b32.xlu0 %v3197, 96
  %v3231 = vpop.permute.xlu0 %3230
  %3232 = vrot.lane.b32.xlu0 %v3201, 96
  %v3233 = vpop.permute.xlu0 %3232
  %3250 = vst.msk [vmem:[%s7 + $0x6] sm:$0x1] %vm705, %v3203
  %3251 = vst.msk [vmem:[%s7 + $0xe] sm:$0x1] %vm705, %v3205
  %3252 = vst.msk [vmem:[%s7 + $0x16] sm:$0x1] %vm705, %v3207
  %3253 = vst.msk [vmem:[%s7 + $0x1e] sm:$0x1] %vm705, %v3209
  %3254 = vst.msk [vmem:[%s7 + $0x26] sm:$0x1] %vm705, %v3211
  %3255 = vst.msk [vmem:[%s7 + $0x2e] sm:$0x1] %vm705, %v3213
  %3256 = vst.msk [vmem:[%s7 + $0x36] sm:$0x1] %vm705, %v3215
  %3257 = vst.msk [vmem:[%s7 + $0x3e] sm:$0x1] %vm705, %v3217
  %3258 = vst.msk [vmem:[%s7 + $0x46] sm:$0x1] %vm705, %v3219
  %3259 = vst.msk [vmem:[%s7 + $0x4e] sm:$0x1] %vm705, %v3221
  %3260 = vst.msk [vmem:[%s7 + $0x56] sm:$0x1] %vm705, %v3223
  %3261 = vst.msk [vmem:[%s7 + $0x5e] sm:$0x1] %vm705, %v3225
  %3262 = vst.msk [vmem:[%s7 + $0x66] sm:$0x1] %vm705, %v3227
  %3263 = vst.msk [vmem:[%s7 + $0x6e] sm:$0x1] %vm705, %v3229
  %3264 = vst.msk [vmem:[%s7 + $0x76] sm:$0x1] %vm705, %v3231
  %3265 = vst.msk [vmem:[%s7 + $0x7e] sm:$0x1] %vm705, %v3233
  %v3266 = vld [vmem:[#allocation2] sm:$0xff]
  %v3267 = vld [vmem:[#allocation2 + $0x8] sm:$0xff]
  %v3268 = vld [vmem:[%s2] sm:$0xff]
  %v3269 = vld [vmem:[%s2 + $0x8] sm:$0xff]
  %v3270 = vld [vmem:[%s2 + $0x10] sm:$0xff]
  %v3271 = vld [vmem:[%s2 + $0x18] sm:$0xff]
  %v3273 = vsel %vm296, %v3266, 0
  %v3276 = vsel %vm296, %v3267, 0
  %3278 = vmatprep.subr.mxu0 0.0
  %3279 = vmatpush1.msra.mxu0 0.0
  %3280 = vmatprep.subr.mxu0 0.0
  %3281 = vmatpush1.msra.mxu0 0.0
  %3282 = vmatprep.subr.mxu0 0.0
  %3283 = vmatpush1.msra.mxu0 0.0
  %3284 = vmatprep.subr.mxu0 0.0
  %3285 = vmatpush1.msra.mxu0 0.0
  %3286 = vmatprep.subr.mxu0 0.0
  %3287 = vmatpush1.msra.mxu0 0.0
  %3288 = vmatprep.subr.mxu0 0.0
  %3289 = vmatpush1.msra.mxu0 0.0
  %3290 = vmatprep.subr.mxu0 0.0
  %3291 = vmatpush1.msra.mxu0 0.0
  %3292 = vmatprep.subr.mxu0 0.0
  %3293 = vmatpush1.msra.mxu0 0.0
  %3294 = vmatprep.subr.mxu0 0.0
  %3295 = vmatpush1.msra.mxu0 0.0
  %3296 = vmatprep.subr.mxu0 0.0
  %3297 = vmatpush1.msra.mxu0 0.0
  %3298 = vmatprep.subr.mxu0 0.0
  %3299 = vmatpush1.msra.mxu0 0.0
  %3300 = vmatprep.subr.mxu0 0.0
  %3301 = vmatpush1.msra.mxu0 0.0
  %3302 = vmatprep.subr.mxu0 0.0
  %3303 = vmatpush1.msra.mxu0 %v3271
  %3304 = vmatprep.subr.mxu0 0.0
  %3305 = vmatpush1.msra.mxu0 %v3270
  %3306 = vmatprep.subr.mxu0 0.0
  %3307 = vmatpush1.msra.mxu0 %v3269
  %3308 = vmatprep.subr.mxu0 0.0
  %3309 = vmatpush1.msra.mxu0 %v3268
  %3310 = vmatprep.subr.mxu0 0.0
  %3311 = vmatpush2.msra.mxu0 0.0
  %3312 = vmatprep.subr.mxu0 0.0
  %3313 = vmatpush2.msra.mxu0 0.0
  %3314 = vmatprep.subr.mxu0 0.0
  %3315 = vmatpush2.msra.mxu0 0.0
  %3316 = vmatprep.subr.mxu0 0.0
  %3317 = vmatpush2.msra.mxu0 0.0
  %3318 = vmatprep.subr.mxu0 0.0
  %3319 = vmatpush2.msra.mxu0 0.0
  %3320 = vmatprep.subr.mxu0 0.0
  %3321 = vmatpush2.msra.mxu0 0.0
  %3322 = vmatprep.subr.mxu0 0.0
  %3323 = vmatpush2.msra.mxu0 0.0
  %3324 = vmatprep.subr.mxu0 0.0
  %3325 = vmatpush2.msra.mxu0 0.0
  %3326 = vmatprep.subr.mxu0 0.0
  %3327 = vmatpush2.msra.mxu0 0.0
  %3328 = vmatprep.subr.mxu0 0.0
  %3329 = vmatpush2.msra.mxu0 0.0
  %3330 = vmatprep.subr.mxu0 0.0
  %3331 = vmatpush2.msra.mxu0 0.0
  %3332 = vmatprep.subr.mxu0 0.0
  %3333 = vmatpush2.msra.mxu0 0.0
  %3334 = vmatprep.subr.mxu0 0.0
  %3335 = vmatpush2.msra.mxu0 0.0
  %3336 = vmatprep.subr.mxu0 0.0
  %3337 = vmatpush2.msra.mxu0 0.0
  %3338 = vmatprep.subr.mxu0 0.0
  %3339 = vmatpush2.msra.mxu0 0.0
  %3340 = vmatprep.subr.mxu0 0.0
  %3341 = vmatpush2.msra.mxu0 0.0
  %3342 = vmatprep.mubr.f32.mxu0 0.0
  %3343 = vmatmul.mubr.f32.gmra.mxu0 %v3273
  %v3344 = vpop.f32.mrf.mxu0
  %v3345 = vadd.f32 %v276, %v3344
  %v3346 = vpop.f32.mrf.mxu0
  %3347 = vmatprep.mubr.f32.mxu0 0.0
  %3348 = vmatmul.mubr.f32.gmra.mxu0 %v3276
  %v3349 = vpop.f32.mrf.mxu0
  %v3350 = vadd.f32 %v276, %v3349
  %v3351 = vpop.f32.mrf.mxu0
  %3352 = vdwg.mxu0
  %s3353 = scalar_lea.vmem [#allocation3], 112
  %v3354 = vld [vmem:[%s3353] sm:$0xff]
  %v3355 = vld [vmem:[%s3353 + $0x8] sm:$0xff]
  %v3356 = vadd.f32 %v3354, %v3345
  %v3357 = vadd.f32 %v3355, %v3350
  %v3358 = vxor.u32 %v3356, 2147483648
  %v3359 = vxor.u32 %v3357, 2147483648
  %v3360 = vmul.f32 %v3358, 1.442695
  %v3361 = vpow.pop %v3360
  %v3362 = vmul.f32 %v3359, 1.442695
  %v3363 = vpow.pop %v3362
  %v3364 = vadd.f32 %v3361, 1.0
  %v3365 = vadd.f32 %v3363, 1.0
  %v3366 = vrcp.pop %v3364
  %v3367 = vmul.f32 1.0, %v3366
  %v3368 = vrcp.pop %v3365
  %v3369 = vmul.f32 1.0, %v3368
  %3372 = vrot.lane.b32.xlu0 %v3345, 64
  %v3373 = vpop.permute.xlu0 %3372
  %3374 = vrot.lane.b32.xlu0 %v3350, 64
  %v3375 = vpop.permute.xlu0 %3374
  %v3378 = vmul.f32 %v3367, %v3373
  %v3379 = vmul.f32 %v3369, %v3375
  %3382 = vrot.lane.b32.xlu0 %v3378, 64
  %v3383 = vpop.permute.xlu0 %3382
  %3384 = vrot.lane.b32.xlu0 %v3379, 64
  %v3385 = vpop.permute.xlu0 %3384
  %v3388 = vadd.f32 %v3354, %v3383
  %v3389 = vadd.f32 %v3355, %v3385
  %v3390 = vtanh.pop %v3388
  %v3391 = vtanh.pop %v3389
  %v3392 = vsub.f32 1.0, %v3367
  %v3393 = vsub.f32 1.0, %v3369
  %3396 = vrot.lane.b32.xlu0 %v3390, 96
  %v3397 = vpop.permute.xlu0 %3396
  %3398 = vrot.lane.b32.xlu0 %v3391, 96
  %v3399 = vpop.permute.xlu0 %3398
  %v3402 = vmul.f32 %v3392, %v3397
  %v3403 = vmul.f32 %v3393, %v3399
  %3404 = vrot.lane.b32.xlu0 %v3266, 32
  %v3405 = vpop.permute.xlu0 %3404
  %3406 = vrot.lane.b32.xlu0 %v3267, 32
  %v3407 = vpop.permute.xlu0 %3406
  %v3410 = vmul.f32 %v3367, %v3405
  %v3411 = vmul.f32 %v3369, %v3407
  %v3412 = vadd.f32 %v3402, %v3410
  %v3413 = vadd.f32 %v3403, %v3411
  %3416 = vrot.lane.b32.xlu0 %v3412, 96
  %v3417 = vpop.permute.xlu0 %3416
  %3418 = vrot.lane.b32.xlu0 %v3413, 96
  %v3419 = vpop.permute.xlu0 %3418
  %3422 = vst.msk [vmem:[#allocation2] sm:$0xff] %vm296, %v3417
  %3423 = vst.msk [vmem:[#allocation2 + $0x8] sm:$0xff] %vm296, %v3419
  %v3424 = vsel %vm296, %v3417, 0.0
  %3425 = vadd.xlane.f32.xlu0 %v3424
  %v3426 = vpop.xlane.xlu0 %3425
  %v3427 = vsel %vm296, %v3419, 0.0
  %3428 = vadd.xlane.f32.xlu0 %v3427
  %v3429 = vpop.xlane.xlu0 %3428
  %v3430 = vmul.f32 %v3426, %v454
  %v3431 = vmul.f32 %v3429, %v454
  %v3432 = vsub.f32 %v3412, %v3430
  %v3433 = vsub.f32 %v3413, %v3431
  %v3434 = vmul.f32 %v3432, %v3432
  %v3435 = vmul.f32 %v3433, %v3433
  %3438 = vrot.lane.b32.xlu0 %v3434, 96
  %v3439 = vpop.permute.xlu0 %3438
  %3440 = vrot.lane.b32.xlu0 %v3435, 96
  %v3441 = vpop.permute.xlu0 %3440
  %v3444 = vsel %vm296, %v3439, 0.0
  %3445 = vadd.xlane.f32.xlu0 %v3444
  %v3446 = vpop.xlane.xlu0 %3445
  %v3447 = vsel %vm296, %v3441, 0.0
  %3448 = vadd.xlane.f32.xlu0 %v3447
  %v3449 = vpop.xlane.xlu0 %3448
  %v3450 = vmul.f32 %v3446, %v454
  %v3451 = vmul.f32 %v3449, %v454
  %v3452 = vadd.f32 %v3450, 1e-05
  %v3453 = vadd.f32 %v3451, 1e-05
  %v3454 = vrsqrt.pop %v3452
  %v3455 = vrsqrt.pop %v3453
  %v3456 = vmul.f32 %v3432, %v3454
  %v3457 = vmul.f32 %v3433, %v3455
  %v3458 = vmul.f32 %v3456, %v484
  %v3459 = vmul.f32 %v3457, %v484
  %v3460 = vadd.f32 %v3458, %v489
  %v3461 = vadd.f32 %v3459, %v489
  %v3464 = vcombine.high %v3460, %v3460
  %v3466 = vunpack.c.l.s4 1966171168
  %v3467 = vunpack.c.0.s8 %v3466
  %v3468 = vlaneseq
  %v3469 = vshrl.u32 %v3468, 7
  %v3470 = vsub.s32 %v3467, %v3469
  %v3471 = vrot.slane %v3460, %v3470
  %v3473 = vunpack.c.l.s4 1966171168
  %v3474 = vunpack.c.0.s8 %v3473
  %v3475 = vlaneseq
  %v3476 = vshrl.u32 %v3475, 7
  %v3477 = vsub.s32 %v3474, %v3476
  %v3478 = vrot.slane %v3464, %v3477
  %v3479 = vcombine.high %v3471, %v3471
  %v3480 = vcombine.high %v3478, %v3478
  %v3482 = vunpack.c.l.s4 1966171168
  %v3483 = vunpack.c.0.s8 %v3482
  %v3484 = vlaneseq
  %v3485 = vshrl.u32 %v3484, 7
  %v3486 = vsub.s32 %v3483, %v3485
  %v3487 = vrot.slane %v3471, %v3486
  %v3489 = vunpack.c.l.s4 1966171168
  %v3490 = vunpack.c.0.s8 %v3489
  %v3491 = vlaneseq
  %v3492 = vshrl.u32 %v3491, 7
  %v3493 = vsub.s32 %v3490, %v3492
  %v3494 = vrot.slane %v3478, %v3493
  %v3496 = vunpack.c.l.s4 1966171168
  %v3497 = vunpack.c.0.s8 %v3496
  %v3498 = vlaneseq
  %v3499 = vshrl.u32 %v3498, 7
  %v3500 = vsub.s32 %v3497, %v3499
  %v3501 = vrot.slane %v3479, %v3500
  %v3503 = vunpack.c.l.s4 1966171168
  %v3504 = vunpack.c.0.s8 %v3503
  %v3505 = vlaneseq
  %v3506 = vshrl.u32 %v3505, 7
  %v3507 = vsub.s32 %v3504, %v3506
  %v3508 = vrot.slane %v3480, %v3507
  %v3509 = vcombine.high %v3487, %v3487
  %v3510 = vcombine.high %v3494, %v3494
  %v3511 = vcombine.high %v3501, %v3501
  %v3512 = vcombine.high %v3508, %v3508
  %v3513 = vcombine.high %v3461, %v3461
  %v3515 = vunpack.c.l.s4 1966171168
  %v3516 = vunpack.c.0.s8 %v3515
  %v3517 = vlaneseq
  %v3518 = vshrl.u32 %v3517, 7
  %v3519 = vsub.s32 %v3516, %v3518
  %v3520 = vrot.slane %v3461, %v3519
  %v3522 = vunpack.c.l.s4 1966171168
  %v3523 = vunpack.c.0.s8 %v3522
  %v3524 = vlaneseq
  %v3525 = vshrl.u32 %v3524, 7
  %v3526 = vsub.s32 %v3523, %v3525
  %v3527 = vrot.slane %v3513, %v3526
  %v3528 = vcombine.high %v3520, %v3520
  %v3529 = vcombine.high %v3527, %v3527
  %v3531 = vunpack.c.l.s4 1966171168
  %v3532 = vunpack.c.0.s8 %v3531
  %v3533 = vlaneseq
  %v3534 = vshrl.u32 %v3533, 7
  %v3535 = vsub.s32 %v3532, %v3534
  %v3536 = vrot.slane %v3520, %v3535
  %v3538 = vunpack.c.l.s4 1966171168
  %v3539 = vunpack.c.0.s8 %v3538
  %v3540 = vlaneseq
  %v3541 = vshrl.u32 %v3540, 7
  %v3542 = vsub.s32 %v3539, %v3541
  %v3543 = vrot.slane %v3527, %v3542
  %v3545 = vunpack.c.l.s4 1966171168
  %v3546 = vunpack.c.0.s8 %v3545
  %v3547 = vlaneseq
  %v3548 = vshrl.u32 %v3547, 7
  %v3549 = vsub.s32 %v3546, %v3548
  %v3550 = vrot.slane %v3528, %v3549
  %v3552 = vunpack.c.l.s4 1966171168
  %v3553 = vunpack.c.0.s8 %v3552
  %v3554 = vlaneseq
  %v3555 = vshrl.u32 %v3554, 7
  %v3556 = vsub.s32 %v3553, %v3555
  %v3557 = vrot.slane %v3529, %v3556
  %v3558 = vcombine.high %v3536, %v3536
  %v3559 = vcombine.high %v3543, %v3543
  %v3560 = vcombine.high %v3550, %v3550
  %v3561 = vcombine.high %v3557, %v3557
  %v3562 = vlaneseq
  %v3563 = vshrl.u32 %v3562, 7
  %v3564 = vsub.s32 0, %v3563
  %v3565 = vrot.slane %v3487, %v3564
  %v3566 = vlaneseq
  %v3567 = vshrl.u32 %v3566, 7
  %v3568 = vsub.s32 0, %v3567
  %v3569 = vrot.slane %v3501, %v3568
  %v3570 = vlaneseq
  %v3571 = vshrl.u32 %v3570, 7
  %v3572 = vsub.s32 0, %v3571
  %v3573 = vrot.slane %v3509, %v3572
  %v3574 = vlaneseq
  %v3575 = vshrl.u32 %v3574, 7
  %v3576 = vsub.s32 0, %v3575
  %v3577 = vrot.slane %v3511, %v3576
  %v3578 = vlaneseq
  %v3579 = vshrl.u32 %v3578, 7
  %v3580 = vsub.s32 0, %v3579
  %v3581 = vrot.slane %v3494, %v3580
  %v3582 = vlaneseq
  %v3583 = vshrl.u32 %v3582, 7
  %v3584 = vsub.s32 0, %v3583
  %v3585 = vrot.slane %v3508, %v3584
  %v3586 = vlaneseq
  %v3587 = vshrl.u32 %v3586, 7
  %v3588 = vsub.s32 0, %v3587
  %v3589 = vrot.slane %v3510, %v3588
  %v3590 = vlaneseq
  %v3591 = vshrl.u32 %v3590, 7
  %v3592 = vsub.s32 0, %v3591
  %v3593 = vrot.slane %v3512, %v3592
  %v3594 = vlaneseq
  %v3595 = vshrl.u32 %v3594, 7
  %v3596 = vsub.s32 0, %v3595
  %v3597 = vrot.slane %v3536, %v3596
  %v3598 = vlaneseq
  %v3599 = vshrl.u32 %v3598, 7
  %v3600 = vsub.s32 0, %v3599
  %v3601 = vrot.slane %v3550, %v3600
  %v3602 = vlaneseq
  %v3603 = vshrl.u32 %v3602, 7
  %v3604 = vsub.s32 0, %v3603
  %v3605 = vrot.slane %v3558, %v3604
  %v3606 = vlaneseq
  %v3607 = vshrl.u32 %v3606, 7
  %v3608 = vsub.s32 0, %v3607
  %v3609 = vrot.slane %v3560, %v3608
  %v3610 = vlaneseq
  %v3611 = vshrl.u32 %v3610, 7
  %v3612 = vsub.s32 0, %v3611
  %v3613 = vrot.slane %v3543, %v3612
  %v3614 = vlaneseq
  %v3615 = vshrl.u32 %v3614, 7
  %v3616 = vsub.s32 0, %v3615
  %v3617 = vrot.slane %v3557, %v3616
  %v3618 = vlaneseq
  %v3619 = vshrl.u32 %v3618, 7
  %v3620 = vsub.s32 0, %v3619
  %v3621 = vrot.slane %v3559, %v3620
  %v3622 = vlaneseq
  %v3623 = vshrl.u32 %v3622, 7
  %v3624 = vsub.s32 0, %v3623
  %v3625 = vrot.slane %v3561, %v3624
  %3626 = vrot.lane.b32.xlu0 %v3565, 96
  %v3627 = vpop.permute.xlu0 %3626
  %3628 = vrot.lane.b32.xlu0 %v3569, 96
  %v3629 = vpop.permute.xlu0 %3628
  %3630 = vrot.lane.b32.xlu0 %v3573, 96
  %v3631 = vpop.permute.xlu0 %3630
  %3632 = vrot.lane.b32.xlu0 %v3577, 96
  %v3633 = vpop.permute.xlu0 %3632
  %3634 = vrot.lane.b32.xlu0 %v3581, 96
  %v3635 = vpop.permute.xlu0 %3634
  %3636 = vrot.lane.b32.xlu0 %v3585, 96
  %v3637 = vpop.permute.xlu0 %3636
  %3638 = vrot.lane.b32.xlu0 %v3589, 96
  %v3639 = vpop.permute.xlu0 %3638
  %3640 = vrot.lane.b32.xlu0 %v3593, 96
  %v3641 = vpop.permute.xlu0 %3640
  %3642 = vrot.lane.b32.xlu0 %v3597, 96
  %v3643 = vpop.permute.xlu0 %3642
  %3644 = vrot.lane.b32.xlu0 %v3601, 96
  %v3645 = vpop.permute.xlu0 %3644
  %3646 = vrot.lane.b32.xlu0 %v3605, 96
  %v3647 = vpop.permute.xlu0 %3646
  %3648 = vrot.lane.b32.xlu0 %v3609, 96
  %v3649 = vpop.permute.xlu0 %3648
  %3650 = vrot.lane.b32.xlu0 %v3613, 96
  %v3651 = vpop.permute.xlu0 %3650
  %3652 = vrot.lane.b32.xlu0 %v3617, 96
  %v3653 = vpop.permute.xlu0 %3652
  %3654 = vrot.lane.b32.xlu0 %v3621, 96
  %v3655 = vpop.permute.xlu0 %3654
  %3656 = vrot.lane.b32.xlu0 %v3625, 96
  %v3657 = vpop.permute.xlu0 %3656
  %3674 = vst.msk [vmem:[%s7 + $0x7] sm:$0x1] %vm705, %v3627
  %3675 = vst.msk [vmem:[%s7 + $0xf] sm:$0x1] %vm705, %v3629
  %3676 = vst.msk [vmem:[%s7 + $0x17] sm:$0x1] %vm705, %v3631
  %3677 = vst.msk [vmem:[%s7 + $0x1f] sm:$0x1] %vm705, %v3633
  %3678 = vst.msk [vmem:[%s7 + $0x27] sm:$0x1] %vm705, %v3635
  %3679 = vst.msk [vmem:[%s7 + $0x2f] sm:$0x1] %vm705, %v3637
  %3680 = vst.msk [vmem:[%s7 + $0x37] sm:$0x1] %vm705, %v3639
  %3681 = vst.msk [vmem:[%s7 + $0x3f] sm:$0x1] %vm705, %v3641
  %3682 = vst.msk [vmem:[%s7 + $0x47] sm:$0x1] %vm705, %v3643
  %3683 = vst.msk [vmem:[%s7 + $0x4f] sm:$0x1] %vm705, %v3645
  %3684 = vst.msk [vmem:[%s7 + $0x57] sm:$0x1] %vm705, %v3647
  %3685 = vst.msk [vmem:[%s7 + $0x5f] sm:$0x1] %vm705, %v3649
  %3686 = vst.msk [vmem:[%s7 + $0x67] sm:$0x1] %vm705, %v3651
  %3687 = vst.msk [vmem:[%s7 + $0x6f] sm:$0x1] %vm705, %v3653
  %3688 = vst.msk [vmem:[%s7 + $0x77] sm:$0x1] %vm705, %v3655
  %3689 = vst.msk [vmem:[%s7 + $0x7f] sm:$0x1] %vm705, %v3657
  // Predicated region
  $region34: #{_lambda_.2} parent=0 // pred_check
    %p3690 = pneg %p28
  $region35: #{_lambda_.2} parent=0 // pred_check_branch
    %3692 = sbr.rel (%p3690) target = $region37
  $region36: #{_lambda_.2} parent=0 // pred_region
    %v3693 = vld [vmem:[#allocation2] sm:$0xff]
    %v3694 = vld [vmem:[#allocation2 + $0x8] sm:$0xff]
    %3695 = vst.msk [vmem:[%s8] sm:$0xff] %vm296, %v3693
    %3696 = vst.msk [vmem:[%s8 + $0x8] sm:$0xff] %vm296, %v3694
  $region37: #{_lambda_.2} parent=0 // pred_fallthru
    _
  // Predicated region
  $region38: #{_lambda_.2} parent=0 // pred_check
    _
  $region39: #{_lambda_.2} parent=0 // pred_check_branch
    %3698 = sbr.rel (0) target = $region41
  $region40: #{_lambda_.2} parent=0 // pred_region
    _
  $region41: #{_lambda_.2} parent=0 // pred_fallthru
    _
  // Predicated region
  $region42: #{_lambda_.2} parent=0 // pred_check
    _
  $region43: #{_lambda_.2} parent=0 // pred_check_branch
    %3700 = sbr.rel (0) target = $region45
  $region44: #{_lambda_.2} parent=0 // pred_region
    _
  $region45: #{_lambda_.2} parent=0 // pred_fallthru
    _
  // Predicated region
  $region46: #{_lambda_.2} parent=0 // pred_check
    _
  $region47: #{_lambda_.2} parent=0 // pred_check_branch
    %3702 = sbr.rel (0) target = $region49
  $region48: #{_lambda_.2} parent=0 // pred_region
    _
  $region49: #{_lambda_.2} parent=0 // pred_fallthru
    _
  // Predicated region
  $region50: #{_lambda_.2} parent=0 // pred_check
    _
  $region51: #{_lambda_.2} parent=0 // pred_check_branch
    %3704 = sbr.rel (0) target = $region53
  $region52: #{_lambda_.2} parent=0 // pred_region
    _
  $region53: #{_lambda_.2} parent=0 // pred_fallthru
    _

</llo_original>
